<compile_context>
chip_gen: v7x
topology: tpu7x:2x2x1
jax: 0.10.0
libtpu: 0.0.40
codegen_flags: <defaults>
</compile_context>

<pallas_src>
import numpy as np
import jax
import jax.numpy as jnp
from jax.experimental import pallas as pl
from jax.experimental.pallas import tpu as pltpu

# ----------------------------- small config ---------------------------------
B = 2            # batch
N_PTS = 16       # points per cloud
TRANS_DIM = 16   # PointEncoder.trans_dim  -> pc_feat_dim = 2 * trans_dim
PC_FEAT = 2 * TRANS_DIM
EMBED = 32       # TextEncoder.embed_dim
WIDTH = 32       # TextEncoder.trans_width
LAYERS = 2       # TextEncoder.trans_layers
HEADS = 4        # TextEncoder.trans_heads
HEAD_DIM = WIDTH // HEADS
CTX_LEN = 8      # TextEncoder.ctx_len
VOCAB = 64       # TextEncoder.vocab_size
EPS = 1e-5
NEG_INF = -1e30  # finite stand-in for -inf in the causal mask (same softmax)

PAD_ROWS = 8     # sublane-padded logits slab
PAD_COLS = 128   # lane-dense logits slab


def _layer_norm(v, w, b):
    mu = jnp.mean(v, axis=-1, keepdims=True)
    var = jnp.mean(jnp.square(v - mu), axis=-1, keepdims=True)
    return (v - mu) * jax.lax.rsqrt(var + EPS) * w + b


# ----------------------------- fused kernel ---------------------------------
def _ulip_fused_kernel(
    # SMEM scalars
    eot_ref, scale_ref,
    # activations
    pts_ref, x0_ref, mask_ref,
    # point branch weights
    pw1_ref, pb1_ref, pw2_ref, pb2_ref, pcproj_ref,
    # stacked text-transformer layer weights: leading dim = LAYERS
    ln1w_ref, ln1b_ref, wqkv_ref, bqkv_ref, wo_ref, bo_ref,
    ln2w_ref, ln2b_ref, wfc_ref, bfc_ref, wpr_ref, bpr_ref,
    # text head
    lnfw_ref, lnfb_ref, tproj_ref,
    # outputs (lane-dense padded slabs)
    logits_pc_ref, logits_text_ref,
    # scratch
    x_scr,
):
    f32 = jnp.float32

    # ---------------- point branch: per-point MLP + max/mean pooling --------
    # K=3 contraction expressed as VPU multiply-adds (avoids a padded MXU pass).
    pts = pts_ref[...]                                            # (B, N, 3)
    w1 = pw1_ref[...]                                             # (3, D)
    h = (pts[:, :, 0:1] * w1[0:1, :]
         + pts[:, :, 1:2] * w1[1:2, :]
         + pts[:, :, 2:3] * w1[2:3, :]) + pb1_ref[...]            # (B, N, D)
    h = jax.nn.gelu(h)
    h = jnp.einsum("bnd,de->bne", h, pw2_ref[...],
                   preferred_element_type=f32) + pb2_ref[...]     # (B, N, D)
    pc2d = jnp.concatenate([jnp.max(h, axis=1), jnp.mean(h, axis=1)],
                           axis=-1)                               # (B, 2D)
    pc_f = jnp.dot(pc2d, pcproj_ref[...],
                   preferred_element_type=f32)                    # (B, E)

    # ---------------- text transformer: all layers, whole batch -------------
    x2 = x0_ref[...].reshape(B * CTX_LEN, WIDTH)                  # (B*L, W)
    mask3 = jnp.broadcast_to(mask_ref[...], (B, CTX_LEN, CTX_LEN))  # hoisted
    attn_scale = 1.0 / float(np.sqrt(HEAD_DIM))

    for l in range(LAYERS):                       # static unroll (LAYERS = 2)
        wqkv = wqkv_ref[l]; bqkv = bqkv_ref[l]
        wo = wo_ref[l]; bo = bo_ref[l]
        wfc = wfc_ref[l]; bfc = bfc_ref[l]
        wpr = wpr_ref[l]; bpr = bpr_ref[l]

        # ---- multi-head causal self-attention (pre-LN) ----
        hln = _layer_norm(x2, ln1w_ref[l], ln1b_ref[l])
        qkv = jnp.dot(hln, wqkv, preferred_element_type=f32) + bqkv   # (B*L, 3W)
        qkv3 = qkv.reshape(B, CTX_LEN, 3 * WIDTH)

        attn2 = jnp.zeros((B * CTX_LEN, WIDTH), f32)
        for hh in range(HEADS):                   # static unroll (HEADS = 4)
            lo = hh * HEAD_DIM
            q_h = qkv3[:, :, lo:lo + HEAD_DIM] * attn_scale           # (B, L, hd)
            k_h = qkv3[:, :, WIDTH + lo:WIDTH + lo + HEAD_DIM]
            v_h = qkv3[:, :, 2 * WIDTH + lo:2 * WIDTH + lo + HEAD_DIM]
            s = jnp.einsum("bld,bmd->blm", q_h, k_h,
                           preferred_element_type=f32) + mask3        # (B, L, L)
            s = s - jnp.max(s, axis=-1, keepdims=True)
            p = jnp.exp(s)
            p = p / jnp.sum(p, axis=-1, keepdims=True)
            o_h = jnp.einsum("blm,bmd->bld", p, v_h,
                             preferred_element_type=f32)              # (B, L, hd)
            # Accumulate through the matching row-block of W_o
            # (identical to concat(heads) @ W_o, no lane concat needed).
            attn2 = attn2 + jnp.dot(o_h.reshape(B * CTX_LEN, HEAD_DIM),
                                    wo[lo:lo + HEAD_DIM, :],
                                    preferred_element_type=f32)
        x2 = x2 + attn2 + bo

        # ---- MLP with QuickGELU ----
        h2 = _layer_norm(x2, ln2w_ref[l], ln2b_ref[l])
        m = jnp.dot(h2, wfc, preferred_element_type=f32) + bfc
        m = m * jax.nn.sigmoid(1.702 * m)
        x2 = x2 + jnp.dot(m, wpr, preferred_element_type=f32) + bpr

    # ---------------- EOT gather + ln_final + text projection ---------------
    # LayerNorm is per-token, so applying ln_final after the gather is
    # identical to `ln_final(x)[arange(B), argmax(text)]`.
    x_scr[...] = x2.reshape(B, CTX_LEN, WIDTH)
    rows = [x_scr[b, pl.ds(eot_ref[b], 1), :] for b in range(B)]   # each (1, W)
    txt_tok = jnp.concatenate(rows, axis=0)                        # (B, W)
    t = _layer_norm(txt_tok, lnfw_ref[...], lnfb_ref[...])
    t_f = jnp.dot(t, tproj_ref[...], preferred_element_type=f32)   # (B, E)

    # ---------------- contrastive head (lane-dense padded outputs) ----------
    pc_n = pc_f * jax.lax.rsqrt(
        jnp.sum(pc_f * pc_f, axis=-1, keepdims=True) + 1e-12)
    t_n = t_f * jax.lax.rsqrt(
        jnp.sum(t_f * t_f, axis=-1, keepdims=True) + 1e-12)

    pad = jnp.zeros((PAD_COLS - B, EMBED), f32)
    pc_pad = jnp.concatenate([pc_n, pad], axis=0)                  # (128, E)
    t_pad = jnp.concatenate([t_n, pad], axis=0)                    # (128, E)

    scale = jnp.exp(scale_ref[0])
    logits_pc_ref[...] = scale * jnp.einsum(
        "ne,me->nm", pc_pad[:PAD_ROWS], t_pad, preferred_element_type=f32)
    logits_text_ref[...] = scale * jnp.einsum(
        "ne,me->nm", t_pad[:PAD_ROWS], pc_pad, preferred_element_type=f32)


# ----------------------------- wrapper ---------------------------------------
def ulip_forward(pc, text, params):
    # Glue left to XLA: embedding-table gather + positional add, and the
    # argmax that locates the EOT token (both data-dependent HBM gathers).
    x0 = (params["token_embedding"][text]
          + params["positional_embedding"][None, :, :])            # (B, L, W)
    eot = jnp.argmax(text, axis=-1).astype(jnp.int32)              # (B,)

    lp = params["layers"]
    vmem = pl.BlockSpec(memory_space=pltpu.MemorySpace.VMEM)
    smem = pl.BlockSpec(memory_space=pltpu.MemorySpace.SMEM)

    out_pc, out_text = pl.pallas_call(
        _ulip_fused_kernel,
        in_specs=[smem, smem] + [vmem] * 23,
        out_specs=(vmem, vmem),
        out_shape=(jax.ShapeDtypeStruct((PAD_ROWS, PAD_COLS), jnp.float32),
                   jax.ShapeDtypeStruct((PAD_ROWS, PAD_COLS), jnp.float32)),
        scratch_shapes=[pltpu.VMEM((B, CTX_LEN, WIDTH), jnp.float32)],
    )(
        eot, params["logit_scale"],
        pc, x0, params["attn_mask"],
        params["point"]["w1"], params["point"]["b1"],
        params["point"]["w2"], params["point"]["b2"],
        params["pc_projection"],
        lp["ln1_w"], lp["ln1_b"], lp["w_qkv"], lp["b_qkv"],
        lp["w_o"], lp["b_o"], lp["ln2_w"], lp["ln2_b"],
        lp["w_fc"], lp["b_fc"], lp["w_pr"], lp["b_pr"],
        params["ln_f_w"], params["ln_f_b"], params["text_projection"],
    )
    # Slice the lane-dense slabs back to the semantic (B, B) logits.
    return out_pc[:B, :B], out_text[:B, :B]


# ----------------------------- parameters ------------------------------------
def init_params(key):
    ks = iter(jax.random.split(key, 16))

    def nrm(shape, std):
        return std * jax.random.normal(next(ks), shape, jnp.float32)

    params = {}
    params["point"] = {
        "w1": nrm((3, TRANS_DIM), 0.02),
        "b1": jnp.zeros((1, TRANS_DIM), jnp.float32),
        "w2": nrm((TRANS_DIM, TRANS_DIM), 0.02),
        "b2": jnp.zeros((1, TRANS_DIM), jnp.float32),
    }
    params["pc_projection"] = nrm((PC_FEAT, EMBED), 512 ** -0.5)
    params["token_embedding"] = nrm((VOCAB, WIDTH), 0.02)
    params["positional_embedding"] = nrm((CTX_LEN, WIDTH), 0.01)

    # Layer weights stacked along a leading LAYERS axis (single fused kernel).
    params["layers"] = {
        "ln1_w": jnp.ones((LAYERS, 1, WIDTH), jnp.float32),
        "ln1_b": jnp.zeros((LAYERS, 1, WIDTH), jnp.float32),
        "w_qkv": nrm((LAYERS, WIDTH, 3 * WIDTH), WIDTH ** -0.5),
        "b_qkv": jnp.zeros((LAYERS, 1, 3 * WIDTH), jnp.float32),
        "w_o": nrm((LAYERS, WIDTH, WIDTH), WIDTH ** -0.5),
        "b_o": jnp.zeros((LAYERS, 1, WIDTH), jnp.float32),
        "ln2_w": jnp.ones((LAYERS, 1, WIDTH), jnp.float32),
        "ln2_b": jnp.zeros((LAYERS, 1, WIDTH), jnp.float32),
        "w_fc": nrm((LAYERS, WIDTH, 4 * WIDTH), WIDTH ** -0.5),
        "b_fc": jnp.zeros((LAYERS, 1, 4 * WIDTH), jnp.float32),
        "w_pr": nrm((LAYERS, 4 * WIDTH, WIDTH), (4 * WIDTH) ** -0.5),
        "b_pr": jnp.zeros((LAYERS, 1, WIDTH), jnp.float32),
    }

    params["ln_f_w"] = jnp.ones((1, WIDTH), jnp.float32)
    params["ln_f_b"] = jnp.zeros((1, WIDTH), jnp.float32)
    params["text_projection"] = nrm((WIDTH, EMBED), WIDTH ** -0.5)
    params["logit_scale"] = jnp.array([np.log(1.0 / 0.07)], jnp.float32)
    # build_attention_mask(): masked above the diagonal, 0 elsewhere.
    # A large finite negative gives the identical softmax result as -inf.
    params["attn_mask"] = jnp.triu(
        jnp.full((CTX_LEN, CTX_LEN), NEG_INF, jnp.float32), k=1)
    return params


# ----------------------------- main -------------------------------------------
if __name__ == "__main__":
    key = jax.random.PRNGKey(0)
    k_params, k_pc, k_text = jax.random.split(key, 3)

    params = init_params(k_params)
    pc = jax.random.normal(k_pc, (B, N_PTS, 3), jnp.float32)
    text = jax.random.randint(k_text, (B, CTX_LEN), 0, VOCAB, dtype=jnp.int32)

    fwd = jax.jit(ulip_forward)
    logits_per_pc, logits_per_text = fwd(pc, text, params)
    jax.block_until_ready((logits_per_pc, logits_per_text))

    assert logits_per_pc.shape == (B, B)
    assert logits_per_text.shape == (B, B)
    assert bool(jnp.all(jnp.isfinite(logits_per_pc)))
    assert bool(jnp.all(jnp.isfinite(logits_per_text)))
    print("KERNEL_OK")
</pallas_src>

<mosaic_0001>
module attributes {stable_mosaic.version = 11 : i64} {
  func.func @_ulip_fused_kernel(%arg0: memref<2xi32, #tpu.memory_space<smem>>, %arg1: memref<1xf32, #tpu.memory_space<smem>>, %arg2: memref<2x16x3xf32, #tpu.memory_space<vmem>>, %arg3: memref<2x8x32xf32, #tpu.memory_space<vmem>>, %arg4: memref<8x8xf32, #tpu.memory_space<vmem>>, %arg5: memref<3x16xf32, #tpu.memory_space<vmem>>, %arg6: memref<1x16xf32, #tpu.memory_space<vmem>>, %arg7: memref<16x16xf32, #tpu.memory_space<vmem>>, %arg8: memref<1x16xf32, #tpu.memory_space<vmem>>, %arg9: memref<32x32xf32, #tpu.memory_space<vmem>>, %arg10: memref<2x1x32xf32, #tpu.memory_space<vmem>>, %arg11: memref<2x1x32xf32, #tpu.memory_space<vmem>>, %arg12: memref<2x32x96xf32, #tpu.memory_space<vmem>>, %arg13: memref<2x1x96xf32, #tpu.memory_space<vmem>>, %arg14: memref<2x32x32xf32, #tpu.memory_space<vmem>>, %arg15: memref<2x1x32xf32, #tpu.memory_space<vmem>>, %arg16: memref<2x1x32xf32, #tpu.memory_space<vmem>>, %arg17: memref<2x1x32xf32, #tpu.memory_space<vmem>>, %arg18: memref<2x32x128xf32, #tpu.memory_space<vmem>>, %arg19: memref<2x1x128xf32, #tpu.memory_space<vmem>>, %arg20: memref<2x128x32xf32, #tpu.memory_space<vmem>>, %arg21: memref<2x1x32xf32, #tpu.memory_space<vmem>>, %arg22: memref<1x32xf32, #tpu.memory_space<vmem>>, %arg23: memref<1x32xf32, #tpu.memory_space<vmem>>, %arg24: memref<32x32xf32, #tpu.memory_space<vmem>>, %arg25: memref<8x128xf32, #tpu.memory_space<vmem>>, %arg26: memref<8x128xf32, #tpu.memory_space<vmem>>, %arg27: memref<2x8x32xf32, #tpu.memory_space<vmem>>) attributes {dimension_semantics = [], scalar_prefetch = 0 : i64, scratch_operands = 1 : i64, tpu.core_type = #tpu.core_type<tc>} {
    %c0 = arith.constant 0 : index
    %c0_0 = arith.constant 0 : index
    %c0_1 = arith.constant 0 : index
    %0 = vector.load %arg2[%c0, %c0_0, %c0_1] : memref<2x16x3xf32, #tpu.memory_space<vmem>>, vector<2x16x3xf32>
    %c0_2 = arith.constant 0 : index
    %c0_3 = arith.constant 0 : index
    %1 = vector.load %arg5[%c0_2, %c0_3] : memref<3x16xf32, #tpu.memory_space<vmem>>, vector<3x16xf32>
    %2 = vector.extract_strided_slice %0 {offsets = [0, 0, 0], sizes = [2, 16, 1], strides = [1, 1, 1]} : vector<2x16x3xf32> to vector<2x16x1xf32>
    %3 = vector.extract_strided_slice %1 {offsets = [0, 0], sizes = [1, 16], strides = [1, 1]} : vector<3x16xf32> to vector<1x16xf32>
    %4 = vector.shape_cast %3 : vector<1x16xf32> to vector<1x1x16xf32>
    %5 = vector.broadcast %2 : vector<2x16x1xf32> to vector<2x16x16xf32>
    %6 = vector.broadcast %4 : vector<1x1x16xf32> to vector<2x16x16xf32>
    %7 = arith.mulf %5, %6 : vector<2x16x16xf32>
    %8 = vector.extract_strided_slice %0 {offsets = [0, 0, 1], sizes = [2, 16, 1], strides = [1, 1, 1]} : vector<2x16x3xf32> to vector<2x16x1xf32>
    %9 = vector.extract_strided_slice %1 {offsets = [1, 0], sizes = [1, 16], strides = [1, 1]} : vector<3x16xf32> to vector<1x16xf32>
    %10 = vector.shape_cast %9 : vector<1x16xf32> to vector<1x1x16xf32>
    %11 = vector.broadcast %8 : vector<2x16x1xf32> to vector<2x16x16xf32>
    %12 = vector.broadcast %10 : vector<1x1x16xf32> to vector<2x16x16xf32>
    %13 = arith.mulf %11, %12 : vector<2x16x16xf32>
    %14 = arith.addf %7, %13 : vector<2x16x16xf32>
    %15 = vector.extract_strided_slice %0 {offsets = [0, 0, 2], sizes = [2, 16, 1], strides = [1, 1, 1]} : vector<2x16x3xf32> to vector<2x16x1xf32>
    %16 = vector.extract_strided_slice %1 {offsets = [2, 0], sizes = [1, 16], strides = [1, 1]} : vector<3x16xf32> to vector<1x16xf32>
    %17 = vector.shape_cast %16 : vector<1x16xf32> to vector<1x1x16xf32>
    %18 = vector.broadcast %15 : vector<2x16x1xf32> to vector<2x16x16xf32>
    %19 = vector.broadcast %17 : vector<1x1x16xf32> to vector<2x16x16xf32>
    %20 = arith.mulf %18, %19 : vector<2x16x16xf32>
    %21 = arith.addf %14, %20 : vector<2x16x16xf32>
    %c0_4 = arith.constant 0 : index
    %c0_5 = arith.constant 0 : index
    %22 = vector.load %arg6[%c0_4, %c0_5] : memref<1x16xf32, #tpu.memory_space<vmem>>, vector<1x16xf32>
    %23 = vector.shape_cast %22 : vector<1x16xf32> to vector<1x1x16xf32>
    %24 = vector.broadcast %23 : vector<1x1x16xf32> to vector<2x16x16xf32>
    %25 = arith.addf %21, %24 : vector<2x16x16xf32>
    %26 = arith.mulf %25, %25 : vector<2x16x16xf32>
    %27 = arith.mulf %25, %26 : vector<2x16x16xf32>
    %cst = arith.constant 4.471500e-02 : f32
    %28 = vector.broadcast %cst : f32 to vector<2x16x16xf32>
    %29 = arith.mulf %28, %27 : vector<2x16x16xf32>
    %30 = arith.addf %25, %29 : vector<2x16x16xf32>
    %cst_6 = arith.constant 0.797884583 : f32
    %31 = vector.broadcast %cst_6 : f32 to vector<2x16x16xf32>
    %32 = arith.mulf %31, %30 : vector<2x16x16xf32>
    %33 = math.tanh %32 : vector<2x16x16xf32>
    %cst_7 = arith.constant 1.000000e+00 : f32
    %34 = vector.broadcast %cst_7 : f32 to vector<2x16x16xf32>
    %35 = arith.addf %34, %33 : vector<2x16x16xf32>
    %cst_8 = arith.constant 5.000000e-01 : f32
    %36 = vector.broadcast %cst_8 : f32 to vector<2x16x16xf32>
    %37 = arith.mulf %36, %35 : vector<2x16x16xf32>
    %38 = arith.mulf %25, %37 : vector<2x16x16xf32>
    %c0_9 = arith.constant 0 : index
    %c0_10 = arith.constant 0 : index
    %39 = vector.load %arg7[%c0_9, %c0_10] : memref<16x16xf32, #tpu.memory_space<vmem>>, vector<16x16xf32>
    "tpu.trace_start"() <{level = 10 : i32, message = "bnd,de->bne"}> : () -> ()
    %cst_11 = arith.constant dense<0.000000e+00> : vector<2x16x16xf32>
    %40 = tpu.matmul %38, %39, %cst_11 {dimension_numbers = #tpu.dot_dimension_numbers<[2], [0], [0, 1], [1], [0, 0, 0, 1, 1, 1], [], []>} : vector<2x16x16xf32>, vector<16x16xf32>, vector<2x16x16xf32> -> vector<2x16x16xf32>
    "tpu.trace_stop"() : () -> ()
    %c0_12 = arith.constant 0 : index
    %c0_13 = arith.constant 0 : index
    %41 = vector.load %arg8[%c0_12, %c0_13] : memref<1x16xf32, #tpu.memory_space<vmem>>, vector<1x16xf32>
    %42 = vector.shape_cast %41 : vector<1x16xf32> to vector<1x1x16xf32>
    %43 = vector.broadcast %42 : vector<1x1x16xf32> to vector<2x16x16xf32>
    %44 = arith.addf %40, %43 : vector<2x16x16xf32>
    %cst_14 = arith.constant dense<0xFF800000> : vector<2x16xf32>
    %45 = vector.multi_reduction <maximumf>, %44, %cst_14 [1] : vector<2x16x16xf32> to vector<2x16xf32>
    %cst_15 = arith.constant dense<0.000000e+00> : vector<2x16xf32>
    %46 = vector.multi_reduction <add>, %44, %cst_15 [1] : vector<2x16x16xf32> to vector<2x16xf32>
    %cst_16 = arith.constant 1.600000e+01 : f32
    %47 = vector.broadcast %cst_16 : f32 to vector<2x16xf32>
    %48 = arith.divf %46, %47 : vector<2x16xf32>
    %49 = tpu.concatenate %45, %48 in 1 : vector<2x16xf32>, vector<2x16xf32> -> vector<2x32xf32>
    %c0_17 = arith.constant 0 : index
    %c0_18 = arith.constant 0 : index
    %50 = vector.load %arg9[%c0_17, %c0_18] : memref<32x32xf32, #tpu.memory_space<vmem>>, vector<32x32xf32>
    %cst_19 = arith.constant dense<0.000000e+00> : vector<2x32xf32>
    %51 = tpu.matmul %49, %50, %cst_19 {dimension_numbers = #tpu.dot_dimension_numbers<[1], [0], [0], [1], [0, 0, 1, 1], [], []>} : vector<2x32xf32>, vector<32x32xf32>, vector<2x32xf32> -> vector<2x32xf32>
    %c0_20 = arith.constant 0 : index
    %c0_21 = arith.constant 0 : index
    %c0_22 = arith.constant 0 : index
    %52 = vector.load %arg3[%c0_20, %c0_21, %c0_22] : memref<2x8x32xf32, #tpu.memory_space<vmem>>, vector<2x8x32xf32>
    %53 = vector.shape_cast %52 : vector<2x8x32xf32> to vector<16x32xf32>
    %c0_23 = arith.constant 0 : index
    %c0_24 = arith.constant 0 : index
    %54 = vector.load %arg4[%c0_23, %c0_24] : memref<8x8xf32, #tpu.memory_space<vmem>>, vector<8x8xf32>
    %55 = vector.shape_cast %54 : vector<8x8xf32> to vector<1x8x8xf32>
    %56 = vector.broadcast %55 : vector<1x8x8xf32> to vector<2x8x8xf32>
    %c0_25 = arith.constant 0 : index
    %c0_26 = arith.constant 0 : index
    %c0_27 = arith.constant 0 : index
    %57 = vector.load %arg12[%c0_25, %c0_26, %c0_27] : memref<2x32x96xf32, #tpu.memory_space<vmem>>, vector<1x32x96xf32>
    %58 = vector.shape_cast %57 : vector<1x32x96xf32> to vector<32x96xf32>
    %c0_28 = arith.constant 0 : index
    %c0_29 = arith.constant 0 : index
    %c0_30 = arith.constant 0 : index
    %59 = vector.load %arg13[%c0_28, %c0_29, %c0_30] : memref<2x1x96xf32, #tpu.memory_space<vmem>>, vector<1x1x96xf32>
    %60 = vector.shape_cast %59 : vector<1x1x96xf32> to vector<1x96xf32>
    %c0_31 = arith.constant 0 : index
    %c0_32 = arith.constant 0 : index
    %c0_33 = arith.constant 0 : index
    %61 = vector.load %arg14[%c0_31, %c0_32, %c0_33] : memref<2x32x32xf32, #tpu.memory_space<vmem>>, vector<1x32x32xf32>
    %62 = vector.shape_cast %61 : vector<1x32x32xf32> to vector<32x32xf32>
    %c0_34 = arith.constant 0 : index
    %c0_35 = arith.constant 0 : index
    %c0_36 = arith.constant 0 : index
    %63 = vector.load %arg15[%c0_34, %c0_35, %c0_36] : memref<2x1x32xf32, #tpu.memory_space<vmem>>, vector<1x1x32xf32>
    %64 = vector.shape_cast %63 : vector<1x1x32xf32> to vector<1x32xf32>
    %c0_37 = arith.constant 0 : index
    %c0_38 = arith.constant 0 : index
    %c0_39 = arith.constant 0 : index
    %65 = vector.load %arg18[%c0_37, %c0_38, %c0_39] : memref<2x32x128xf32, #tpu.memory_space<vmem>>, vector<1x32x128xf32>
    %66 = vector.shape_cast %65 : vector<1x32x128xf32> to vector<32x128xf32>
    %c0_40 = arith.constant 0 : index
    %c0_41 = arith.constant 0 : index
    %c0_42 = arith.constant 0 : index
    %67 = vector.load %arg19[%c0_40, %c0_41, %c0_42] : memref<2x1x128xf32, #tpu.memory_space<vmem>>, vector<1x1x128xf32>
    %68 = vector.shape_cast %67 : vector<1x1x128xf32> to vector<1x128xf32>
    %c0_43 = arith.constant 0 : index
    %c0_44 = arith.constant 0 : index
    %c0_45 = arith.constant 0 : index
    %69 = vector.load %arg20[%c0_43, %c0_44, %c0_45] : memref<2x128x32xf32, #tpu.memory_space<vmem>>, vector<1x128x32xf32>
    %70 = vector.shape_cast %69 : vector<1x128x32xf32> to vector<128x32xf32>
    %c0_46 = arith.constant 0 : index
    %c0_47 = arith.constant 0 : index
    %c0_48 = arith.constant 0 : index
    %71 = vector.load %arg21[%c0_46, %c0_47, %c0_48] : memref<2x1x32xf32, #tpu.memory_space<vmem>>, vector<1x1x32xf32>
    %72 = vector.shape_cast %71 : vector<1x1x32xf32> to vector<1x32xf32>
    %c0_49 = arith.constant 0 : index
    %c0_50 = arith.constant 0 : index
    %c0_51 = arith.constant 0 : index
    %73 = vector.load %arg10[%c0_49, %c0_50, %c0_51] : memref<2x1x32xf32, #tpu.memory_space<vmem>>, vector<1x1x32xf32>
    %74 = vector.shape_cast %73 : vector<1x1x32xf32> to vector<1x32xf32>
    %c0_52 = arith.constant 0 : index
    %c0_53 = arith.constant 0 : index
    %c0_54 = arith.constant 0 : index
    %75 = vector.load %arg11[%c0_52, %c0_53, %c0_54] : memref<2x1x32xf32, #tpu.memory_space<vmem>>, vector<1x1x32xf32>
    %76 = vector.shape_cast %75 : vector<1x1x32xf32> to vector<1x32xf32>
    %cst_55 = arith.constant dense<0.000000e+00> : vector<16xf32>
    %77 = vector.multi_reduction <add>, %53, %cst_55 [1] : vector<16x32xf32> to vector<16xf32>
    %78 = vector.shape_cast %77 : vector<16xf32> to vector<16x1xf32>
    %cst_56 = arith.constant 3.200000e+01 : f32
    %79 = vector.broadcast %cst_56 : f32 to vector<16x1xf32>
    %80 = arith.divf %78, %79 : vector<16x1xf32>
    %81 = vector.broadcast %80 : vector<16x1xf32> to vector<16x32xf32>
    %82 = arith.subf %53, %81 : vector<16x32xf32>
    %83 = arith.mulf %82, %82 : vector<16x32xf32>
    %cst_57 = arith.constant dense<0.000000e+00> : vector<16xf32>
    %84 = vector.multi_reduction <add>, %83, %cst_57 [1] : vector<16x32xf32> to vector<16xf32>
    %85 = vector.shape_cast %84 : vector<16xf32> to vector<16x1xf32>
    %cst_58 = arith.constant 3.200000e+01 : f32
    %86 = vector.broadcast %cst_58 : f32 to vector<16x1xf32>
    %87 = arith.divf %85, %86 : vector<16x1xf32>
    %88 = vector.broadcast %80 : vector<16x1xf32> to vector<16x32xf32>
    %89 = arith.subf %53, %88 : vector<16x32xf32>
    %cst_59 = arith.constant 9.99999974E-6 : f32
    %90 = vector.broadcast %cst_59 : f32 to vector<16x1xf32>
    %91 = arith.addf %87, %90 : vector<16x1xf32>
    %92 = math.rsqrt %91 : vector<16x1xf32>
    %93 = vector.broadcast %92 : vector<16x1xf32> to vector<16x32xf32>
    %94 = arith.mulf %89, %93 : vector<16x32xf32>
    %95 = vector.broadcast %74 : vector<1x32xf32> to vector<16x32xf32>
    %96 = arith.mulf %94, %95 : vector<16x32xf32>
    %97 = vector.broadcast %76 : vector<1x32xf32> to vector<16x32xf32>
    %98 = arith.addf %96, %97 : vector<16x32xf32>
    %cst_60 = arith.constant dense<0.000000e+00> : vector<16x96xf32>
    %99 = tpu.matmul %98, %58, %cst_60 {dimension_numbers = #tpu.dot_dimension_numbers<[1], [0], [0], [1], [0, 0, 1, 1], [], []>} : vector<16x32xf32>, vector<32x96xf32>, vector<16x96xf32> -> vector<16x96xf32>
    %100 = vector.broadcast %60 : vector<1x96xf32> to vector<16x96xf32>
    %101 = arith.addf %99, %100 : vector<16x96xf32>
    %102 = vector.shape_cast %101 : vector<16x96xf32> to vector<2x8x96xf32>
    %cst_61 = arith.constant 0.000000e+00 : f32
    %103 = vector.broadcast %cst_61 : f32 to vector<16x32xf32>
    %104 = vector.extract_strided_slice %102 {offsets = [0, 0, 0], sizes = [2, 8, 8], strides = [1, 1, 1]} : vector<2x8x96xf32> to vector<2x8x8xf32>
    %cst_62 = arith.constant 0.353553385 : f32
    %105 = vector.broadcast %cst_62 : f32 to vector<2x8x8xf32>
    %106 = arith.mulf %104, %105 : vector<2x8x8xf32>
    %107 = vector.extract_strided_slice %102 {offsets = [0, 0, 32], sizes = [2, 8, 8], strides = [1, 1, 1]} : vector<2x8x96xf32> to vector<2x8x8xf32>
    %108 = vector.extract_strided_slice %102 {offsets = [0, 0, 64], sizes = [2, 8, 8], strides = [1, 1, 1]} : vector<2x8x96xf32> to vector<2x8x8xf32>
    "tpu.trace_start"() <{level = 10 : i32, message = "bld,bmd->blm"}> : () -> ()
    %cst_63 = arith.constant dense<0.000000e+00> : vector<2x8x8xf32>
    %109 = tpu.matmul %106, %107, %cst_63 {dimension_numbers = #tpu.dot_dimension_numbers<[2], [2], [1], [1], [0, 0, 0, 1, 1, 1], [0], [0]>} : vector<2x8x8xf32>, vector<2x8x8xf32>, vector<2x8x8xf32> -> vector<2x8x8xf32>
    "tpu.trace_stop"() : () -> ()
    %110 = arith.addf %109, %56 : vector<2x8x8xf32>
    %cst_64 = arith.constant dense<0xFF800000> : vector<2x8xf32>
    %111 = vector.multi_reduction <maximumf>, %110, %cst_64 [2] : vector<2x8x8xf32> to vector<2x8xf32>
    %112 = vector.shape_cast %111 : vector<2x8xf32> to vector<2x8x1xf32>
    %113 = vector.broadcast %112 : vector<2x8x1xf32> to vector<2x8x8xf32>
    %114 = arith.subf %110, %113 : vector<2x8x8xf32>
    %115 = math.exp %114 : vector<2x8x8xf32>
    %cst_65 = arith.constant dense<0.000000e+00> : vector<2x8xf32>
    %116 = vector.multi_reduction <add>, %115, %cst_65 [2] : vector<2x8x8xf32> to vector<2x8xf32>
    %117 = vector.shape_cast %116 : vector<2x8xf32> to vector<2x8x1xf32>
    %118 = vector.broadcast %117 : vector<2x8x1xf32> to vector<2x8x8xf32>
    %119 = arith.divf %115, %118 : vector<2x8x8xf32>
    "tpu.trace_start"() <{level = 10 : i32, message = "blm,bmd->bld"}> : () -> ()
    %cst_66 = arith.constant dense<0.000000e+00> : vector<2x8x8xf32>
    %120 = tpu.matmul %119, %108, %cst_66 {dimension_numbers = #tpu.dot_dimension_numbers<[2], [1], [1], [2], [0, 0, 0, 1, 1, 2], [0], [0]>} : vector<2x8x8xf32>, vector<2x8x8xf32>, vector<2x8x8xf32> -> vector<2x8x8xf32>
    "tpu.trace_stop"() : () -> ()
    %121 = vector.shape_cast %120 : vector<2x8x8xf32> to vector<16x8xf32>
    %122 = vector.extract_strided_slice %62 {offsets = [0, 0], sizes = [8, 32], strides = [1, 1]} : vector<32x32xf32> to vector<8x32xf32>
    %cst_67 = arith.constant dense<0.000000e+00> : vector<16x32xf32>
    %123 = tpu.matmul %121, %122, %cst_67 {dimension_numbers = #tpu.dot_dimension_numbers<[1], [0], [0], [1], [0, 0, 1, 1], [], []>} : vector<16x8xf32>, vector<8x32xf32>, vector<16x32xf32> -> vector<16x32xf32>
    %124 = arith.addf %103, %123 : vector<16x32xf32>
    %125 = vector.extract_strided_slice %102 {offsets = [0, 0, 8], sizes = [2, 8, 8], strides = [1, 1, 1]} : vector<2x8x96xf32> to vector<2x8x8xf32>
    %cst_68 = arith.constant 0.353553385 : f32
    %126 = vector.broadcast %cst_68 : f32 to vector<2x8x8xf32>
    %127 = arith.mulf %125, %126 : vector<2x8x8xf32>
    %128 = vector.extract_strided_slice %102 {offsets = [0, 0, 40], sizes = [2, 8, 8], strides = [1, 1, 1]} : vector<2x8x96xf32> to vector<2x8x8xf32>
    %129 = vector.extract_strided_slice %102 {offsets = [0, 0, 72], sizes = [2, 8, 8], strides = [1, 1, 1]} : vector<2x8x96xf32> to vector<2x8x8xf32>
    "tpu.trace_start"() <{level = 10 : i32, message = "bld,bmd->blm"}> : () -> ()
    %cst_69 = arith.constant dense<0.000000e+00> : vector<2x8x8xf32>
    %130 = tpu.matmul %127, %128, %cst_69 {dimension_numbers = #tpu.dot_dimension_numbers<[2], [2], [1], [1], [0, 0, 0, 1, 1, 1], [0], [0]>} : vector<2x8x8xf32>, vector<2x8x8xf32>, vector<2x8x8xf32> -> vector<2x8x8xf32>
    "tpu.trace_stop"() : () -> ()
    %131 = arith.addf %130, %56 : vector<2x8x8xf32>
    %cst_70 = arith.constant dense<0xFF800000> : vector<2x8xf32>
    %132 = vector.multi_reduction <maximumf>, %131, %cst_70 [2] : vector<2x8x8xf32> to vector<2x8xf32>
    %133 = vector.shape_cast %132 : vector<2x8xf32> to vector<2x8x1xf32>
    %134 = vector.broadcast %133 : vector<2x8x1xf32> to vector<2x8x8xf32>
    %135 = arith.subf %131, %134 : vector<2x8x8xf32>
    %136 = math.exp %135 : vector<2x8x8xf32>
    %cst_71 = arith.constant dense<0.000000e+00> : vector<2x8xf32>
    %137 = vector.multi_reduction <add>, %136, %cst_71 [2] : vector<2x8x8xf32> to vector<2x8xf32>
    %138 = vector.shape_cast %137 : vector<2x8xf32> to vector<2x8x1xf32>
    %139 = vector.broadcast %138 : vector<2x8x1xf32> to vector<2x8x8xf32>
    %140 = arith.divf %136, %139 : vector<2x8x8xf32>
    "tpu.trace_start"() <{level = 10 : i32, message = "blm,bmd->bld"}> : () -> ()
    %cst_72 = arith.constant dense<0.000000e+00> : vector<2x8x8xf32>
    %141 = tpu.matmul %140, %129, %cst_72 {dimension_numbers = #tpu.dot_dimension_numbers<[2], [1], [1], [2], [0, 0, 0, 1, 1, 2], [0], [0]>} : vector<2x8x8xf32>, vector<2x8x8xf32>, vector<2x8x8xf32> -> vector<2x8x8xf32>
    "tpu.trace_stop"() : () -> ()
    %142 = vector.shape_cast %141 : vector<2x8x8xf32> to vector<16x8xf32>
    %143 = vector.extract_strided_slice %62 {offsets = [8, 0], sizes = [8, 32], strides = [1, 1]} : vector<32x32xf32> to vector<8x32xf32>
    %cst_73 = arith.constant dense<0.000000e+00> : vector<16x32xf32>
    %144 = tpu.matmul %142, %143, %cst_73 {dimension_numbers = #tpu.dot_dimension_numbers<[1], [0], [0], [1], [0, 0, 1, 1], [], []>} : vector<16x8xf32>, vector<8x32xf32>, vector<16x32xf32> -> vector<16x32xf32>
    %145 = arith.addf %124, %144 : vector<16x32xf32>
    %146 = vector.extract_strided_slice %102 {offsets = [0, 0, 16], sizes = [2, 8, 8], strides = [1, 1, 1]} : vector<2x8x96xf32> to vector<2x8x8xf32>
    %cst_74 = arith.constant 0.353553385 : f32
    %147 = vector.broadcast %cst_74 : f32 to vector<2x8x8xf32>
    %148 = arith.mulf %146, %147 : vector<2x8x8xf32>
    %149 = vector.extract_strided_slice %102 {offsets = [0, 0, 48], sizes = [2, 8, 8], strides = [1, 1, 1]} : vector<2x8x96xf32> to vector<2x8x8xf32>
    %150 = vector.extract_strided_slice %102 {offsets = [0, 0, 80], sizes = [2, 8, 8], strides = [1, 1, 1]} : vector<2x8x96xf32> to vector<2x8x8xf32>
    "tpu.trace_start"() <{level = 10 : i32, message = "bld,bmd->blm"}> : () -> ()
    %cst_75 = arith.constant dense<0.000000e+00> : vector<2x8x8xf32>
    %151 = tpu.matmul %148, %149, %cst_75 {dimension_numbers = #tpu.dot_dimension_numbers<[2], [2], [1], [1], [0, 0, 0, 1, 1, 1], [0], [0]>} : vector<2x8x8xf32>, vector<2x8x8xf32>, vector<2x8x8xf32> -> vector<2x8x8xf32>
    "tpu.trace_stop"() : () -> ()
    %152 = arith.addf %151, %56 : vector<2x8x8xf32>
    %cst_76 = arith.constant dense<0xFF800000> : vector<2x8xf32>
    %153 = vector.multi_reduction <maximumf>, %152, %cst_76 [2] : vector<2x8x8xf32> to vector<2x8xf32>
    %154 = vector.shape_cast %153 : vector<2x8xf32> to vector<2x8x1xf32>
    %155 = vector.broadcast %154 : vector<2x8x1xf32> to vector<2x8x8xf32>
    %156 = arith.subf %152, %155 : vector<2x8x8xf32>
    %157 = math.exp %156 : vector<2x8x8xf32>
    %cst_77 = arith.constant dense<0.000000e+00> : vector<2x8xf32>
    %158 = vector.multi_reduction <add>, %157, %cst_77 [2] : vector<2x8x8xf32> to vector<2x8xf32>
    %159 = vector.shape_cast %158 : vector<2x8xf32> to vector<2x8x1xf32>
    %160 = vector.broadcast %159 : vector<2x8x1xf32> to vector<2x8x8xf32>
    %161 = arith.divf %157, %160 : vector<2x8x8xf32>
    "tpu.trace_start"() <{level = 10 : i32, message = "blm,bmd->bld"}> : () -> ()
    %cst_78 = arith.constant dense<0.000000e+00> : vector<2x8x8xf32>
    %162 = tpu.matmul %161, %150, %cst_78 {dimension_numbers = #tpu.dot_dimension_numbers<[2], [1], [1], [2], [0, 0, 0, 1, 1, 2], [0], [0]>} : vector<2x8x8xf32>, vector<2x8x8xf32>, vector<2x8x8xf32> -> vector<2x8x8xf32>
    "tpu.trace_stop"() : () -> ()
    %163 = vector.shape_cast %162 : vector<2x8x8xf32> to vector<16x8xf32>
    %164 = vector.extract_strided_slice %62 {offsets = [16, 0], sizes = [8, 32], strides = [1, 1]} : vector<32x32xf32> to vector<8x32xf32>
    %cst_79 = arith.constant dense<0.000000e+00> : vector<16x32xf32>
    %165 = tpu.matmul %163, %164, %cst_79 {dimension_numbers = #tpu.dot_dimension_numbers<[1], [0], [0], [1], [0, 0, 1, 1], [], []>} : vector<16x8xf32>, vector<8x32xf32>, vector<16x32xf32> -> vector<16x32xf32>
    %166 = arith.addf %145, %165 : vector<16x32xf32>
    %167 = vector.extract_strided_slice %102 {offsets = [0, 0, 24], sizes = [2, 8, 8], strides = [1, 1, 1]} : vector<2x8x96xf32> to vector<2x8x8xf32>
    %cst_80 = arith.constant 0.353553385 : f32
    %168 = vector.broadcast %cst_80 : f32 to vector<2x8x8xf32>
    %169 = arith.mulf %167, %168 : vector<2x8x8xf32>
    %170 = vector.extract_strided_slice %102 {offsets = [0, 0, 56], sizes = [2, 8, 8], strides = [1, 1, 1]} : vector<2x8x96xf32> to vector<2x8x8xf32>
    %171 = vector.extract_strided_slice %102 {offsets = [0, 0, 88], sizes = [2, 8, 8], strides = [1, 1, 1]} : vector<2x8x96xf32> to vector<2x8x8xf32>
    "tpu.trace_start"() <{level = 10 : i32, message = "bld,bmd->blm"}> : () -> ()
    %cst_81 = arith.constant dense<0.000000e+00> : vector<2x8x8xf32>
    %172 = tpu.matmul %169, %170, %cst_81 {dimension_numbers = #tpu.dot_dimension_numbers<[2], [2], [1], [1], [0, 0, 0, 1, 1, 1], [0], [0]>} : vector<2x8x8xf32>, vector<2x8x8xf32>, vector<2x8x8xf32> -> vector<2x8x8xf32>
    "tpu.trace_stop"() : () -> ()
    %173 = arith.addf %172, %56 : vector<2x8x8xf32>
    %cst_82 = arith.constant dense<0xFF800000> : vector<2x8xf32>
    %174 = vector.multi_reduction <maximumf>, %173, %cst_82 [2] : vector<2x8x8xf32> to vector<2x8xf32>
    %175 = vector.shape_cast %174 : vector<2x8xf32> to vector<2x8x1xf32>
    %176 = vector.broadcast %175 : vector<2x8x1xf32> to vector<2x8x8xf32>
    %177 = arith.subf %173, %176 : vector<2x8x8xf32>
    %178 = math.exp %177 : vector<2x8x8xf32>
    %cst_83 = arith.constant dense<0.000000e+00> : vector<2x8xf32>
    %179 = vector.multi_reduction <add>, %178, %cst_83 [2] : vector<2x8x8xf32> to vector<2x8xf32>
    %180 = vector.shape_cast %179 : vector<2x8xf32> to vector<2x8x1xf32>
    %181 = vector.broadcast %180 : vector<2x8x1xf32> to vector<2x8x8xf32>
    %182 = arith.divf %178, %181 : vector<2x8x8xf32>
    "tpu.trace_start"() <{level = 10 : i32, message = "blm,bmd->bld"}> : () -> ()
    %cst_84 = arith.constant dense<0.000000e+00> : vector<2x8x8xf32>
    %183 = tpu.matmul %182, %171, %cst_84 {dimension_numbers = #tpu.dot_dimension_numbers<[2], [1], [1], [2], [0, 0, 0, 1, 1, 2], [0], [0]>} : vector<2x8x8xf32>, vector<2x8x8xf32>, vector<2x8x8xf32> -> vector<2x8x8xf32>
    "tpu.trace_stop"() : () -> ()
    %184 = vector.shape_cast %183 : vector<2x8x8xf32> to vector<16x8xf32>
    %185 = vector.extract_strided_slice %62 {offsets = [24, 0], sizes = [8, 32], strides = [1, 1]} : vector<32x32xf32> to vector<8x32xf32>
    %cst_85 = arith.constant dense<0.000000e+00> : vector<16x32xf32>
    %186 = tpu.matmul %184, %185, %cst_85 {dimension_numbers = #tpu.dot_dimension_numbers<[1], [0], [0], [1], [0, 0, 1, 1], [], []>} : vector<16x8xf32>, vector<8x32xf32>, vector<16x32xf32> -> vector<16x32xf32>
    %187 = arith.addf %166, %186 : vector<16x32xf32>
    %188 = arith.addf %53, %187 : vector<16x32xf32>
    %189 = vector.broadcast %64 : vector<1x32xf32> to vector<16x32xf32>
    %190 = arith.addf %188, %189 : vector<16x32xf32>
    %c0_86 = arith.constant 0 : index
    %c0_87 = arith.constant 0 : index
    %c0_88 = arith.constant 0 : index
    %191 = vector.load %arg16[%c0_86, %c0_87, %c0_88] : memref<2x1x32xf32, #tpu.memory_space<vmem>>, vector<1x1x32xf32>
    %192 = vector.shape_cast %191 : vector<1x1x32xf32> to vector<1x32xf32>
    %c0_89 = arith.constant 0 : index
    %c0_90 = arith.constant 0 : index
    %c0_91 = arith.constant 0 : index
    %193 = vector.load %arg17[%c0_89, %c0_90, %c0_91] : memref<2x1x32xf32, #tpu.memory_space<vmem>>, vector<1x1x32xf32>
    %194 = vector.shape_cast %193 : vector<1x1x32xf32> to vector<1x32xf32>
    %cst_92 = arith.constant dense<0.000000e+00> : vector<16xf32>
    %195 = vector.multi_reduction <add>, %190, %cst_92 [1] : vector<16x32xf32> to vector<16xf32>
    %196 = vector.shape_cast %195 : vector<16xf32> to vector<16x1xf32>
    %cst_93 = arith.constant 3.200000e+01 : f32
    %197 = vector.broadcast %cst_93 : f32 to vector<16x1xf32>
    %198 = arith.divf %196, %197 : vector<16x1xf32>
    %199 = vector.broadcast %198 : vector<16x1xf32> to vector<16x32xf32>
    %200 = arith.subf %190, %199 : vector<16x32xf32>
    %201 = arith.mulf %200, %200 : vector<16x32xf32>
    %cst_94 = arith.constant dense<0.000000e+00> : vector<16xf32>
    %202 = vector.multi_reduction <add>, %201, %cst_94 [1] : vector<16x32xf32> to vector<16xf32>
    %203 = vector.shape_cast %202 : vector<16xf32> to vector<16x1xf32>
    %cst_95 = arith.constant 3.200000e+01 : f32
    %204 = vector.broadcast %cst_95 : f32 to vector<16x1xf32>
    %205 = arith.divf %203, %204 : vector<16x1xf32>
    %206 = vector.broadcast %198 : vector<16x1xf32> to vector<16x32xf32>
    %207 = arith.subf %190, %206 : vector<16x32xf32>
    %cst_96 = arith.constant 9.99999974E-6 : f32
    %208 = vector.broadcast %cst_96 : f32 to vector<16x1xf32>
    %209 = arith.addf %205, %208 : vector<16x1xf32>
    %210 = math.rsqrt %209 : vector<16x1xf32>
    %211 = vector.broadcast %210 : vector<16x1xf32> to vector<16x32xf32>
    %212 = arith.mulf %207, %211 : vector<16x32xf32>
    %213 = vector.broadcast %192 : vector<1x32xf32> to vector<16x32xf32>
    %214 = arith.mulf %212, %213 : vector<16x32xf32>
    %215 = vector.broadcast %194 : vector<1x32xf32> to vector<16x32xf32>
    %216 = arith.addf %214, %215 : vector<16x32xf32>
    %cst_97 = arith.constant dense<0.000000e+00> : vector<16x128xf32>
    %217 = tpu.matmul %216, %66, %cst_97 {dimension_numbers = #tpu.dot_dimension_numbers<[1], [0], [0], [1], [0, 0, 1, 1], [], []>} : vector<16x32xf32>, vector<32x128xf32>, vector<16x128xf32> -> vector<16x128xf32>
    %218 = vector.broadcast %68 : vector<1x128xf32> to vector<16x128xf32>
    %219 = arith.addf %217, %218 : vector<16x128xf32>
    %cst_98 = arith.constant 1.702000e+00 : f32
    %220 = vector.broadcast %cst_98 : f32 to vector<16x128xf32>
    %221 = arith.mulf %220, %219 : vector<16x128xf32>
    %222 = arith.negf %221 : vector<16x128xf32>
    %223 = math.exp %222 : vector<16x128xf32>
    %cst_99 = arith.constant 1.000000e+00 : f32
    %224 = vector.broadcast %cst_99 : f32 to vector<16x128xf32>
    %225 = arith.addf %224, %223 : vector<16x128xf32>
    %226 = arith.divf %224, %225 : vector<16x128xf32>
    %227 = arith.mulf %219, %226 : vector<16x128xf32>
    %cst_100 = arith.constant dense<0.000000e+00> : vector<16x32xf32>
    %228 = tpu.matmul %227, %70, %cst_100 {dimension_numbers = #tpu.dot_dimension_numbers<[1], [0], [0], [1], [0, 0, 1, 1], [], []>} : vector<16x128xf32>, vector<128x32xf32>, vector<16x32xf32> -> vector<16x32xf32>
    %229 = arith.addf %190, %228 : vector<16x32xf32>
    %230 = vector.broadcast %72 : vector<1x32xf32> to vector<16x32xf32>
    %231 = arith.addf %229, %230 : vector<16x32xf32>
    %c1 = arith.constant 1 : index
    %c0_101 = arith.constant 0 : index
    %c0_102 = arith.constant 0 : index
    %232 = vector.load %arg12[%c1, %c0_101, %c0_102] : memref<2x32x96xf32, #tpu.memory_space<vmem>>, vector<1x32x96xf32>
    %233 = vector.shape_cast %232 : vector<1x32x96xf32> to vector<32x96xf32>
    %c1_103 = arith.constant 1 : index
    %c0_104 = arith.constant 0 : index
    %c0_105 = arith.constant 0 : index
    %234 = vector.load %arg13[%c1_103, %c0_104, %c0_105] : memref<2x1x96xf32, #tpu.memory_space<vmem>>, vector<1x1x96xf32>
    %235 = vector.shape_cast %234 : vector<1x1x96xf32> to vector<1x96xf32>
    %c1_106 = arith.constant 1 : index
    %c0_107 = arith.constant 0 : index
    %c0_108 = arith.constant 0 : index
    %236 = vector.load %arg14[%c1_106, %c0_107, %c0_108] : memref<2x32x32xf32, #tpu.memory_space<vmem>>, vector<1x32x32xf32>
    %237 = vector.shape_cast %236 : vector<1x32x32xf32> to vector<32x32xf32>
    %c1_109 = arith.constant 1 : index
    %c0_110 = arith.constant 0 : index
    %c0_111 = arith.constant 0 : index
    %238 = vector.load %arg15[%c1_109, %c0_110, %c0_111] : memref<2x1x32xf32, #tpu.memory_space<vmem>>, vector<1x1x32xf32>
    %239 = vector.shape_cast %238 : vector<1x1x32xf32> to vector<1x32xf32>
    %c1_112 = arith.constant 1 : index
    %c0_113 = arith.constant 0 : index
    %c0_114 = arith.constant 0 : index
    %240 = vector.load %arg18[%c1_112, %c0_113, %c0_114] : memref<2x32x128xf32, #tpu.memory_space<vmem>>, vector<1x32x128xf32>
    %241 = vector.shape_cast %240 : vector<1x32x128xf32> to vector<32x128xf32>
    %c1_115 = arith.constant 1 : index
    %c0_116 = arith.constant 0 : index
    %c0_117 = arith.constant 0 : index
    %242 = vector.load %arg19[%c1_115, %c0_116, %c0_117] : memref<2x1x128xf32, #tpu.memory_space<vmem>>, vector<1x1x128xf32>
    %243 = vector.shape_cast %242 : vector<1x1x128xf32> to vector<1x128xf32>
    %c1_118 = arith.constant 1 : index
    %c0_119 = arith.constant 0 : index
    %c0_120 = arith.constant 0 : index
    %244 = vector.load %arg20[%c1_118, %c0_119, %c0_120] : memref<2x128x32xf32, #tpu.memory_space<vmem>>, vector<1x128x32xf32>
    %245 = vector.shape_cast %244 : vector<1x128x32xf32> to vector<128x32xf32>
    %c1_121 = arith.constant 1 : index
    %c0_122 = arith.constant 0 : index
    %c0_123 = arith.constant 0 : index
    %246 = vector.load %arg21[%c1_121, %c0_122, %c0_123] : memref<2x1x32xf32, #tpu.memory_space<vmem>>, vector<1x1x32xf32>
    %247 = vector.shape_cast %246 : vector<1x1x32xf32> to vector<1x32xf32>
    %c1_124 = arith.constant 1 : index
    %c0_125 = arith.constant 0 : index
    %c0_126 = arith.constant 0 : index
    %248 = vector.load %arg10[%c1_124, %c0_125, %c0_126] : memref<2x1x32xf32, #tpu.memory_space<vmem>>, vector<1x1x32xf32>
    %249 = vector.shape_cast %248 : vector<1x1x32xf32> to vector<1x32xf32>
    %c1_127 = arith.constant 1 : index
    %c0_128 = arith.constant 0 : index
    %c0_129 = arith.constant 0 : index
    %250 = vector.load %arg11[%c1_127, %c0_128, %c0_129] : memref<2x1x32xf32, #tpu.memory_space<vmem>>, vector<1x1x32xf32>
    %251 = vector.shape_cast %250 : vector<1x1x32xf32> to vector<1x32xf32>
    %cst_130 = arith.constant dense<0.000000e+00> : vector<16xf32>
    %252 = vector.multi_reduction <add>, %231, %cst_130 [1] : vector<16x32xf32> to vector<16xf32>
    %253 = vector.shape_cast %252 : vector<16xf32> to vector<16x1xf32>
    %cst_131 = arith.constant 3.200000e+01 : f32
    %254 = vector.broadcast %cst_131 : f32 to vector<16x1xf32>
    %255 = arith.divf %253, %254 : vector<16x1xf32>
    %256 = vector.broadcast %255 : vector<16x1xf32> to vector<16x32xf32>
    %257 = arith.subf %231, %256 : vector<16x32xf32>
    %258 = arith.mulf %257, %257 : vector<16x32xf32>
    %cst_132 = arith.constant dense<0.000000e+00> : vector<16xf32>
    %259 = vector.multi_reduction <add>, %258, %cst_132 [1] : vector<16x32xf32> to vector<16xf32>
    %260 = vector.shape_cast %259 : vector<16xf32> to vector<16x1xf32>
    %cst_133 = arith.constant 3.200000e+01 : f32
    %261 = vector.broadcast %cst_133 : f32 to vector<16x1xf32>
    %262 = arith.divf %260, %261 : vector<16x1xf32>
    %263 = vector.broadcast %255 : vector<16x1xf32> to vector<16x32xf32>
    %264 = arith.subf %231, %263 : vector<16x32xf32>
    %cst_134 = arith.constant 9.99999974E-6 : f32
    %265 = vector.broadcast %cst_134 : f32 to vector<16x1xf32>
    %266 = arith.addf %262, %265 : vector<16x1xf32>
    %267 = math.rsqrt %266 : vector<16x1xf32>
    %268 = vector.broadcast %267 : vector<16x1xf32> to vector<16x32xf32>
    %269 = arith.mulf %264, %268 : vector<16x32xf32>
    %270 = vector.broadcast %249 : vector<1x32xf32> to vector<16x32xf32>
    %271 = arith.mulf %269, %270 : vector<16x32xf32>
    %272 = vector.broadcast %251 : vector<1x32xf32> to vector<16x32xf32>
    %273 = arith.addf %271, %272 : vector<16x32xf32>
    %cst_135 = arith.constant dense<0.000000e+00> : vector<16x96xf32>
    %274 = tpu.matmul %273, %233, %cst_135 {dimension_numbers = #tpu.dot_dimension_numbers<[1], [0], [0], [1], [0, 0, 1, 1], [], []>} : vector<16x32xf32>, vector<32x96xf32>, vector<16x96xf32> -> vector<16x96xf32>
    %275 = vector.broadcast %235 : vector<1x96xf32> to vector<16x96xf32>
    %276 = arith.addf %274, %275 : vector<16x96xf32>
    %277 = vector.shape_cast %276 : vector<16x96xf32> to vector<2x8x96xf32>
    %cst_136 = arith.constant 0.000000e+00 : f32
    %278 = vector.broadcast %cst_136 : f32 to vector<16x32xf32>
    %279 = vector.extract_strided_slice %277 {offsets = [0, 0, 0], sizes = [2, 8, 8], strides = [1, 1, 1]} : vector<2x8x96xf32> to vector<2x8x8xf32>
    %cst_137 = arith.constant 0.353553385 : f32
    %280 = vector.broadcast %cst_137 : f32 to vector<2x8x8xf32>
    %281 = arith.mulf %279, %280 : vector<2x8x8xf32>
    %282 = vector.extract_strided_slice %277 {offsets = [0, 0, 32], sizes = [2, 8, 8], strides = [1, 1, 1]} : vector<2x8x96xf32> to vector<2x8x8xf32>
    %283 = vector.extract_strided_slice %277 {offsets = [0, 0, 64], sizes = [2, 8, 8], strides = [1, 1, 1]} : vector<2x8x96xf32> to vector<2x8x8xf32>
    "tpu.trace_start"() <{level = 10 : i32, message = "bld,bmd->blm"}> : () -> ()
    %cst_138 = arith.constant dense<0.000000e+00> : vector<2x8x8xf32>
    %284 = tpu.matmul %281, %282, %cst_138 {dimension_numbers = #tpu.dot_dimension_numbers<[2], [2], [1], [1], [0, 0, 0, 1, 1, 1], [0], [0]>} : vector<2x8x8xf32>, vector<2x8x8xf32>, vector<2x8x8xf32> -> vector<2x8x8xf32>
    "tpu.trace_stop"() : () -> ()
    %285 = arith.addf %284, %56 : vector<2x8x8xf32>
    %cst_139 = arith.constant dense<0xFF800000> : vector<2x8xf32>
    %286 = vector.multi_reduction <maximumf>, %285, %cst_139 [2] : vector<2x8x8xf32> to vector<2x8xf32>
    %287 = vector.shape_cast %286 : vector<2x8xf32> to vector<2x8x1xf32>
    %288 = vector.broadcast %287 : vector<2x8x1xf32> to vector<2x8x8xf32>
    %289 = arith.subf %285, %288 : vector<2x8x8xf32>
    %290 = math.exp %289 : vector<2x8x8xf32>
    %cst_140 = arith.constant dense<0.000000e+00> : vector<2x8xf32>
    %291 = vector.multi_reduction <add>, %290, %cst_140 [2] : vector<2x8x8xf32> to vector<2x8xf32>
    %292 = vector.shape_cast %291 : vector<2x8xf32> to vector<2x8x1xf32>
    %293 = vector.broadcast %292 : vector<2x8x1xf32> to vector<2x8x8xf32>
    %294 = arith.divf %290, %293 : vector<2x8x8xf32>
    "tpu.trace_start"() <{level = 10 : i32, message = "blm,bmd->bld"}> : () -> ()
    %cst_141 = arith.constant dense<0.000000e+00> : vector<2x8x8xf32>
    %295 = tpu.matmul %294, %283, %cst_141 {dimension_numbers = #tpu.dot_dimension_numbers<[2], [1], [1], [2], [0, 0, 0, 1, 1, 2], [0], [0]>} : vector<2x8x8xf32>, vector<2x8x8xf32>, vector<2x8x8xf32> -> vector<2x8x8xf32>
    "tpu.trace_stop"() : () -> ()
    %296 = vector.shape_cast %295 : vector<2x8x8xf32> to vector<16x8xf32>
    %297 = vector.extract_strided_slice %237 {offsets = [0, 0], sizes = [8, 32], strides = [1, 1]} : vector<32x32xf32> to vector<8x32xf32>
    %cst_142 = arith.constant dense<0.000000e+00> : vector<16x32xf32>
    %298 = tpu.matmul %296, %297, %cst_142 {dimension_numbers = #tpu.dot_dimension_numbers<[1], [0], [0], [1], [0, 0, 1, 1], [], []>} : vector<16x8xf32>, vector<8x32xf32>, vector<16x32xf32> -> vector<16x32xf32>
    %299 = arith.addf %278, %298 : vector<16x32xf32>
    %300 = vector.extract_strided_slice %277 {offsets = [0, 0, 8], sizes = [2, 8, 8], strides = [1, 1, 1]} : vector<2x8x96xf32> to vector<2x8x8xf32>
    %cst_143 = arith.constant 0.353553385 : f32
    %301 = vector.broadcast %cst_143 : f32 to vector<2x8x8xf32>
    %302 = arith.mulf %300, %301 : vector<2x8x8xf32>
    %303 = vector.extract_strided_slice %277 {offsets = [0, 0, 40], sizes = [2, 8, 8], strides = [1, 1, 1]} : vector<2x8x96xf32> to vector<2x8x8xf32>
    %304 = vector.extract_strided_slice %277 {offsets = [0, 0, 72], sizes = [2, 8, 8], strides = [1, 1, 1]} : vector<2x8x96xf32> to vector<2x8x8xf32>
    "tpu.trace_start"() <{level = 10 : i32, message = "bld,bmd->blm"}> : () -> ()
    %cst_144 = arith.constant dense<0.000000e+00> : vector<2x8x8xf32>
    %305 = tpu.matmul %302, %303, %cst_144 {dimension_numbers = #tpu.dot_dimension_numbers<[2], [2], [1], [1], [0, 0, 0, 1, 1, 1], [0], [0]>} : vector<2x8x8xf32>, vector<2x8x8xf32>, vector<2x8x8xf32> -> vector<2x8x8xf32>
    "tpu.trace_stop"() : () -> ()
    %306 = arith.addf %305, %56 : vector<2x8x8xf32>
    %cst_145 = arith.constant dense<0xFF800000> : vector<2x8xf32>
    %307 = vector.multi_reduction <maximumf>, %306, %cst_145 [2] : vector<2x8x8xf32> to vector<2x8xf32>
    %308 = vector.shape_cast %307 : vector<2x8xf32> to vector<2x8x1xf32>
    %309 = vector.broadcast %308 : vector<2x8x1xf32> to vector<2x8x8xf32>
    %310 = arith.subf %306, %309 : vector<2x8x8xf32>
    %311 = math.exp %310 : vector<2x8x8xf32>
    %cst_146 = arith.constant dense<0.000000e+00> : vector<2x8xf32>
    %312 = vector.multi_reduction <add>, %311, %cst_146 [2] : vector<2x8x8xf32> to vector<2x8xf32>
    %313 = vector.shape_cast %312 : vector<2x8xf32> to vector<2x8x1xf32>
    %314 = vector.broadcast %313 : vector<2x8x1xf32> to vector<2x8x8xf32>
    %315 = arith.divf %311, %314 : vector<2x8x8xf32>
    "tpu.trace_start"() <{level = 10 : i32, message = "blm,bmd->bld"}> : () -> ()
    %cst_147 = arith.constant dense<0.000000e+00> : vector<2x8x8xf32>
    %316 = tpu.matmul %315, %304, %cst_147 {dimension_numbers = #tpu.dot_dimension_numbers<[2], [1], [1], [2], [0, 0, 0, 1, 1, 2], [0], [0]>} : vector<2x8x8xf32>, vector<2x8x8xf32>, vector<2x8x8xf32> -> vector<2x8x8xf32>
    "tpu.trace_stop"() : () -> ()
    %317 = vector.shape_cast %316 : vector<2x8x8xf32> to vector<16x8xf32>
    %318 = vector.extract_strided_slice %237 {offsets = [8, 0], sizes = [8, 32], strides = [1, 1]} : vector<32x32xf32> to vector<8x32xf32>
    %cst_148 = arith.constant dense<0.000000e+00> : vector<16x32xf32>
    %319 = tpu.matmul %317, %318, %cst_148 {dimension_numbers = #tpu.dot_dimension_numbers<[1], [0], [0], [1], [0, 0, 1, 1], [], []>} : vector<16x8xf32>, vector<8x32xf32>, vector<16x32xf32> -> vector<16x32xf32>
    %320 = arith.addf %299, %319 : vector<16x32xf32>
    %321 = vector.extract_strided_slice %277 {offsets = [0, 0, 16], sizes = [2, 8, 8], strides = [1, 1, 1]} : vector<2x8x96xf32> to vector<2x8x8xf32>
    %cst_149 = arith.constant 0.353553385 : f32
    %322 = vector.broadcast %cst_149 : f32 to vector<2x8x8xf32>
    %323 = arith.mulf %321, %322 : vector<2x8x8xf32>
    %324 = vector.extract_strided_slice %277 {offsets = [0, 0, 48], sizes = [2, 8, 8], strides = [1, 1, 1]} : vector<2x8x96xf32> to vector<2x8x8xf32>
    %325 = vector.extract_strided_slice %277 {offsets = [0, 0, 80], sizes = [2, 8, 8], strides = [1, 1, 1]} : vector<2x8x96xf32> to vector<2x8x8xf32>
    "tpu.trace_start"() <{level = 10 : i32, message = "bld,bmd->blm"}> : () -> ()
    %cst_150 = arith.constant dense<0.000000e+00> : vector<2x8x8xf32>
    %326 = tpu.matmul %323, %324, %cst_150 {dimension_numbers = #tpu.dot_dimension_numbers<[2], [2], [1], [1], [0, 0, 0, 1, 1, 1], [0], [0]>} : vector<2x8x8xf32>, vector<2x8x8xf32>, vector<2x8x8xf32> -> vector<2x8x8xf32>
    "tpu.trace_stop"() : () -> ()
    %327 = arith.addf %326, %56 : vector<2x8x8xf32>
    %cst_151 = arith.constant dense<0xFF800000> : vector<2x8xf32>
    %328 = vector.multi_reduction <maximumf>, %327, %cst_151 [2] : vector<2x8x8xf32> to vector<2x8xf32>
    %329 = vector.shape_cast %328 : vector<2x8xf32> to vector<2x8x1xf32>
    %330 = vector.broadcast %329 : vector<2x8x1xf32> to vector<2x8x8xf32>
    %331 = arith.subf %327, %330 : vector<2x8x8xf32>
    %332 = math.exp %331 : vector<2x8x8xf32>
    %cst_152 = arith.constant dense<0.000000e+00> : vector<2x8xf32>
    %333 = vector.multi_reduction <add>, %332, %cst_152 [2] : vector<2x8x8xf32> to vector<2x8xf32>
    %334 = vector.shape_cast %333 : vector<2x8xf32> to vector<2x8x1xf32>
    %335 = vector.broadcast %334 : vector<2x8x1xf32> to vector<2x8x8xf32>
    %336 = arith.divf %332, %335 : vector<2x8x8xf32>
    "tpu.trace_start"() <{level = 10 : i32, message = "blm,bmd->bld"}> : () -> ()
    %cst_153 = arith.constant dense<0.000000e+00> : vector<2x8x8xf32>
    %337 = tpu.matmul %336, %325, %cst_153 {dimension_numbers = #tpu.dot_dimension_numbers<[2], [1], [1], [2], [0, 0, 0, 1, 1, 2], [0], [0]>} : vector<2x8x8xf32>, vector<2x8x8xf32>, vector<2x8x8xf32> -> vector<2x8x8xf32>
    "tpu.trace_stop"() : () -> ()
    %338 = vector.shape_cast %337 : vector<2x8x8xf32> to vector<16x8xf32>
    %339 = vector.extract_strided_slice %237 {offsets = [16, 0], sizes = [8, 32], strides = [1, 1]} : vector<32x32xf32> to vector<8x32xf32>
    %cst_154 = arith.constant dense<0.000000e+00> : vector<16x32xf32>
    %340 = tpu.matmul %338, %339, %cst_154 {dimension_numbers = #tpu.dot_dimension_numbers<[1], [0], [0], [1], [0, 0, 1, 1], [], []>} : vector<16x8xf32>, vector<8x32xf32>, vector<16x32xf32> -> vector<16x32xf32>
    %341 = arith.addf %320, %340 : vector<16x32xf32>
    %342 = vector.extract_strided_slice %277 {offsets = [0, 0, 24], sizes = [2, 8, 8], strides = [1, 1, 1]} : vector<2x8x96xf32> to vector<2x8x8xf32>
    %cst_155 = arith.constant 0.353553385 : f32
    %343 = vector.broadcast %cst_155 : f32 to vector<2x8x8xf32>
    %344 = arith.mulf %342, %343 : vector<2x8x8xf32>
    %345 = vector.extract_strided_slice %277 {offsets = [0, 0, 56], sizes = [2, 8, 8], strides = [1, 1, 1]} : vector<2x8x96xf32> to vector<2x8x8xf32>
    %346 = vector.extract_strided_slice %277 {offsets = [0, 0, 88], sizes = [2, 8, 8], strides = [1, 1, 1]} : vector<2x8x96xf32> to vector<2x8x8xf32>
    "tpu.trace_start"() <{level = 10 : i32, message = "bld,bmd->blm"}> : () -> ()
    %cst_156 = arith.constant dense<0.000000e+00> : vector<2x8x8xf32>
    %347 = tpu.matmul %344, %345, %cst_156 {dimension_numbers = #tpu.dot_dimension_numbers<[2], [2], [1], [1], [0, 0, 0, 1, 1, 1], [0], [0]>} : vector<2x8x8xf32>, vector<2x8x8xf32>, vector<2x8x8xf32> -> vector<2x8x8xf32>
    "tpu.trace_stop"() : () -> ()
    %348 = arith.addf %347, %56 : vector<2x8x8xf32>
    %cst_157 = arith.constant dense<0xFF800000> : vector<2x8xf32>
    %349 = vector.multi_reduction <maximumf>, %348, %cst_157 [2] : vector<2x8x8xf32> to vector<2x8xf32>
    %350 = vector.shape_cast %349 : vector<2x8xf32> to vector<2x8x1xf32>
    %351 = vector.broadcast %350 : vector<2x8x1xf32> to vector<2x8x8xf32>
    %352 = arith.subf %348, %351 : vector<2x8x8xf32>
    %353 = math.exp %352 : vector<2x8x8xf32>
    %cst_158 = arith.constant dense<0.000000e+00> : vector<2x8xf32>
    %354 = vector.multi_reduction <add>, %353, %cst_158 [2] : vector<2x8x8xf32> to vector<2x8xf32>
    %355 = vector.shape_cast %354 : vector<2x8xf32> to vector<2x8x1xf32>
    %356 = vector.broadcast %355 : vector<2x8x1xf32> to vector<2x8x8xf32>
    %357 = arith.divf %353, %356 : vector<2x8x8xf32>
    "tpu.trace_start"() <{level = 10 : i32, message = "blm,bmd->bld"}> : () -> ()
    %cst_159 = arith.constant dense<0.000000e+00> : vector<2x8x8xf32>
    %358 = tpu.matmul %357, %346, %cst_159 {dimension_numbers = #tpu.dot_dimension_numbers<[2], [1], [1], [2], [0, 0, 0, 1, 1, 2], [0], [0]>} : vector<2x8x8xf32>, vector<2x8x8xf32>, vector<2x8x8xf32> -> vector<2x8x8xf32>
    "tpu.trace_stop"() : () -> ()
    %359 = vector.shape_cast %358 : vector<2x8x8xf32> to vector<16x8xf32>
    %360 = vector.extract_strided_slice %237 {offsets = [24, 0], sizes = [8, 32], strides = [1, 1]} : vector<32x32xf32> to vector<8x32xf32>
    %cst_160 = arith.constant dense<0.000000e+00> : vector<16x32xf32>
    %361 = tpu.matmul %359, %360, %cst_160 {dimension_numbers = #tpu.dot_dimension_numbers<[1], [0], [0], [1], [0, 0, 1, 1], [], []>} : vector<16x8xf32>, vector<8x32xf32>, vector<16x32xf32> -> vector<16x32xf32>
    %362 = arith.addf %341, %361 : vector<16x32xf32>
    %363 = arith.addf %231, %362 : vector<16x32xf32>
    %364 = vector.broadcast %239 : vector<1x32xf32> to vector<16x32xf32>
    %365 = arith.addf %363, %364 : vector<16x32xf32>
    %c1_161 = arith.constant 1 : index
    %c0_162 = arith.constant 0 : index
    %c0_163 = arith.constant 0 : index
    %366 = vector.load %arg16[%c1_161, %c0_162, %c0_163] : memref<2x1x32xf32, #tpu.memory_space<vmem>>, vector<1x1x32xf32>
    %367 = vector.shape_cast %366 : vector<1x1x32xf32> to vector<1x32xf32>
    %c1_164 = arith.constant 1 : index
    %c0_165 = arith.constant 0 : index
    %c0_166 = arith.constant 0 : index
    %368 = vector.load %arg17[%c1_164, %c0_165, %c0_166] : memref<2x1x32xf32, #tpu.memory_space<vmem>>, vector<1x1x32xf32>
    %369 = vector.shape_cast %368 : vector<1x1x32xf32> to vector<1x32xf32>
    %cst_167 = arith.constant dense<0.000000e+00> : vector<16xf32>
    %370 = vector.multi_reduction <add>, %365, %cst_167 [1] : vector<16x32xf32> to vector<16xf32>
    %371 = vector.shape_cast %370 : vector<16xf32> to vector<16x1xf32>
    %cst_168 = arith.constant 3.200000e+01 : f32
    %372 = vector.broadcast %cst_168 : f32 to vector<16x1xf32>
    %373 = arith.divf %371, %372 : vector<16x1xf32>
    %374 = vector.broadcast %373 : vector<16x1xf32> to vector<16x32xf32>
    %375 = arith.subf %365, %374 : vector<16x32xf32>
    %376 = arith.mulf %375, %375 : vector<16x32xf32>
    %cst_169 = arith.constant dense<0.000000e+00> : vector<16xf32>
    %377 = vector.multi_reduction <add>, %376, %cst_169 [1] : vector<16x32xf32> to vector<16xf32>
    %378 = vector.shape_cast %377 : vector<16xf32> to vector<16x1xf32>
    %cst_170 = arith.constant 3.200000e+01 : f32
    %379 = vector.broadcast %cst_170 : f32 to vector<16x1xf32>
    %380 = arith.divf %378, %379 : vector<16x1xf32>
    %381 = vector.broadcast %373 : vector<16x1xf32> to vector<16x32xf32>
    %382 = arith.subf %365, %381 : vector<16x32xf32>
    %cst_171 = arith.constant 9.99999974E-6 : f32
    %383 = vector.broadcast %cst_171 : f32 to vector<16x1xf32>
    %384 = arith.addf %380, %383 : vector<16x1xf32>
    %385 = math.rsqrt %384 : vector<16x1xf32>
    %386 = vector.broadcast %385 : vector<16x1xf32> to vector<16x32xf32>
    %387 = arith.mulf %382, %386 : vector<16x32xf32>
    %388 = vector.broadcast %367 : vector<1x32xf32> to vector<16x32xf32>
    %389 = arith.mulf %387, %388 : vector<16x32xf32>
    %390 = vector.broadcast %369 : vector<1x32xf32> to vector<16x32xf32>
    %391 = arith.addf %389, %390 : vector<16x32xf32>
    %cst_172 = arith.constant dense<0.000000e+00> : vector<16x128xf32>
    %392 = tpu.matmul %391, %241, %cst_172 {dimension_numbers = #tpu.dot_dimension_numbers<[1], [0], [0], [1], [0, 0, 1, 1], [], []>} : vector<16x32xf32>, vector<32x128xf32>, vector<16x128xf32> -> vector<16x128xf32>
    %393 = vector.broadcast %243 : vector<1x128xf32> to vector<16x128xf32>
    %394 = arith.addf %392, %393 : vector<16x128xf32>
    %cst_173 = arith.constant 1.702000e+00 : f32
    %395 = vector.broadcast %cst_173 : f32 to vector<16x128xf32>
    %396 = arith.mulf %395, %394 : vector<16x128xf32>
    %397 = arith.negf %396 : vector<16x128xf32>
    %398 = math.exp %397 : vector<16x128xf32>
    %cst_174 = arith.constant 1.000000e+00 : f32
    %399 = vector.broadcast %cst_174 : f32 to vector<16x128xf32>
    %400 = arith.addf %399, %398 : vector<16x128xf32>
    %401 = arith.divf %399, %400 : vector<16x128xf32>
    %402 = arith.mulf %394, %401 : vector<16x128xf32>
    %cst_175 = arith.constant dense<0.000000e+00> : vector<16x32xf32>
    %403 = tpu.matmul %402, %245, %cst_175 {dimension_numbers = #tpu.dot_dimension_numbers<[1], [0], [0], [1], [0, 0, 1, 1], [], []>} : vector<16x128xf32>, vector<128x32xf32>, vector<16x32xf32> -> vector<16x32xf32>
    %404 = arith.addf %365, %403 : vector<16x32xf32>
    %405 = vector.broadcast %247 : vector<1x32xf32> to vector<16x32xf32>
    %406 = arith.addf %404, %405 : vector<16x32xf32>
    %407 = vector.shape_cast %406 : vector<16x32xf32> to vector<2x8x32xf32>
    %c0_176 = arith.constant 0 : index
    %c0_177 = arith.constant 0 : index
    %c0_178 = arith.constant 0 : index
    %408 = vector.load %arg27[%c0_176, %c0_177, %c0_178] : memref<2x8x32xf32, #tpu.memory_space<vmem>>, vector<2x8x32xf32>
    tpu.vector_store %arg27[%c0_176, %c0_177, %c0_178], %407 {strides = array<i32>} : memref<2x8x32xf32, #tpu.memory_space<vmem>>, vector<2x8x32xf32>,
    %c0_179 = arith.constant 0 : index
    %409 = memref.load %arg0[%c0_179] : memref<2xi32, #tpu.memory_space<smem>>
    %c0_180 = arith.constant 0 : index
    %410 = arith.index_cast %409 : i32 to index
    %c0_181 = arith.constant 0 : index
    %411 = vector.load %arg27[%c0_180, %410, %c0_181] : memref<2x8x32xf32, #tpu.memory_space<vmem>>, vector<1x1x32xf32>
    %412 = vector.shape_cast %411 : vector<1x1x32xf32> to vector<1x32xf32>
    %c1_182 = arith.constant 1 : index
    %413 = memref.load %arg0[%c1_182] : memref<2xi32, #tpu.memory_space<smem>>
    %c1_183 = arith.constant 1 : index
    %414 = arith.index_cast %413 : i32 to index
    %c0_184 = arith.constant 0 : index
    %415 = vector.load %arg27[%c1_183, %414, %c0_184] : memref<2x8x32xf32, #tpu.memory_space<vmem>>, vector<1x1x32xf32>
    %416 = vector.shape_cast %415 : vector<1x1x32xf32> to vector<1x32xf32>
    %417 = tpu.concatenate %412, %416 in 0 : vector<1x32xf32>, vector<1x32xf32> -> vector<2x32xf32>
    %c0_185 = arith.constant 0 : index
    %c0_186 = arith.constant 0 : index
    %418 = vector.load %arg22[%c0_185, %c0_186] : memref<1x32xf32, #tpu.memory_space<vmem>>, vector<1x32xf32>
    %c0_187 = arith.constant 0 : index
    %c0_188 = arith.constant 0 : index
    %419 = vector.load %arg23[%c0_187, %c0_188] : memref<1x32xf32, #tpu.memory_space<vmem>>, vector<1x32xf32>
    %cst_189 = arith.constant dense<0.000000e+00> : vector<2xf32>
    %420 = vector.multi_reduction <add>, %417, %cst_189 [1] : vector<2x32xf32> to vector<2xf32>
    %421 = vector.shape_cast %420 : vector<2xf32> to vector<2x1xf32>
    %cst_190 = arith.constant 3.200000e+01 : f32
    %422 = vector.broadcast %cst_190 : f32 to vector<2x1xf32>
    %423 = arith.divf %421, %422 : vector<2x1xf32>
    %424 = vector.broadcast %423 : vector<2x1xf32> to vector<2x32xf32>
    %425 = arith.subf %417, %424 : vector<2x32xf32>
    %426 = arith.mulf %425, %425 : vector<2x32xf32>
    %cst_191 = arith.constant dense<0.000000e+00> : vector<2xf32>
    %427 = vector.multi_reduction <add>, %426, %cst_191 [1] : vector<2x32xf32> to vector<2xf32>
    %428 = vector.shape_cast %427 : vector<2xf32> to vector<2x1xf32>
    %cst_192 = arith.constant 3.200000e+01 : f32
    %429 = vector.broadcast %cst_192 : f32 to vector<2x1xf32>
    %430 = arith.divf %428, %429 : vector<2x1xf32>
    %431 = vector.broadcast %423 : vector<2x1xf32> to vector<2x32xf32>
    %432 = arith.subf %417, %431 : vector<2x32xf32>
    %cst_193 = arith.constant 9.99999974E-6 : f32
    %433 = vector.broadcast %cst_193 : f32 to vector<2x1xf32>
    %434 = arith.addf %430, %433 : vector<2x1xf32>
    %435 = math.rsqrt %434 : vector<2x1xf32>
    %436 = vector.broadcast %435 : vector<2x1xf32> to vector<2x32xf32>
    %437 = arith.mulf %432, %436 : vector<2x32xf32>
    %438 = vector.broadcast %418 : vector<1x32xf32> to vector<2x32xf32>
    %439 = arith.mulf %437, %438 : vector<2x32xf32>
    %440 = vector.broadcast %419 : vector<1x32xf32> to vector<2x32xf32>
    %441 = arith.addf %439, %440 : vector<2x32xf32>
    %c0_194 = arith.constant 0 : index
    %c0_195 = arith.constant 0 : index
    %442 = vector.load %arg24[%c0_194, %c0_195] : memref<32x32xf32, #tpu.memory_space<vmem>>, vector<32x32xf32>
    %cst_196 = arith.constant dense<0.000000e+00> : vector<2x32xf32>
    %443 = tpu.matmul %441, %442, %cst_196 {dimension_numbers = #tpu.dot_dimension_numbers<[1], [0], [0], [1], [0, 0, 1, 1], [], []>} : vector<2x32xf32>, vector<32x32xf32>, vector<2x32xf32> -> vector<2x32xf32>
    %444 = arith.mulf %51, %51 : vector<2x32xf32>
    %cst_197 = arith.constant dense<0.000000e+00> : vector<2xf32>
    %445 = vector.multi_reduction <add>, %444, %cst_197 [1] : vector<2x32xf32> to vector<2xf32>
    %446 = vector.shape_cast %445 : vector<2xf32> to vector<2x1xf32>
    %cst_198 = arith.constant 9.99999996E-13 : f32
    %447 = vector.broadcast %cst_198 : f32 to vector<2x1xf32>
    %448 = arith.addf %446, %447 : vector<2x1xf32>
    %449 = math.rsqrt %448 : vector<2x1xf32>
    %450 = vector.broadcast %449 : vector<2x1xf32> to vector<2x32xf32>
    %451 = arith.mulf %51, %450 : vector<2x32xf32>
    %452 = arith.mulf %443, %443 : vector<2x32xf32>
    %cst_199 = arith.constant dense<0.000000e+00> : vector<2xf32>
    %453 = vector.multi_reduction <add>, %452, %cst_199 [1] : vector<2x32xf32> to vector<2xf32>
    %454 = vector.shape_cast %453 : vector<2xf32> to vector<2x1xf32>
    %cst_200 = arith.constant 9.99999996E-13 : f32
    %455 = vector.broadcast %cst_200 : f32 to vector<2x1xf32>
    %456 = arith.addf %454, %455 : vector<2x1xf32>
    %457 = math.rsqrt %456 : vector<2x1xf32>
    %458 = vector.broadcast %457 : vector<2x1xf32> to vector<2x32xf32>
    %459 = arith.mulf %443, %458 : vector<2x32xf32>
    %cst_201 = arith.constant 0.000000e+00 : f32
    %460 = vector.broadcast %cst_201 : f32 to vector<126x32xf32>
    %461 = tpu.concatenate %451, %460 in 0 : vector<2x32xf32>, vector<126x32xf32> -> vector<128x32xf32>
    %462 = tpu.concatenate %459, %460 in 0 : vector<2x32xf32>, vector<126x32xf32> -> vector<128x32xf32>
    %c0_202 = arith.constant 0 : index
    %463 = memref.load %arg1[%c0_202] : memref<1xf32, #tpu.memory_space<smem>>
    %464 = math.exp %463 : f32
    %465 = vector.extract_strided_slice %461 {offsets = [0, 0], sizes = [8, 32], strides = [1, 1]} : vector<128x32xf32> to vector<8x32xf32>
    "tpu.trace_start"() <{level = 10 : i32, message = "ne,me->nm"}> : () -> ()
    %cst_203 = arith.constant dense<0.000000e+00> : vector<8x128xf32>
    %466 = tpu.matmul %465, %462, %cst_203 {dimension_numbers = #tpu.dot_dimension_numbers<[1], [1], [0], [0], [0, 0, 1, 0], [], []>} : vector<8x32xf32>, vector<128x32xf32>, vector<8x128xf32> -> vector<8x128xf32>
    "tpu.trace_stop"() : () -> ()
    %467 = vector.broadcast %464 : f32 to vector<8x128xf32>
    %468 = arith.mulf %467, %466 : vector<8x128xf32>
    %c0_204 = arith.constant 0 : index
    %c0_205 = arith.constant 0 : index
    %469 = vector.load %arg25[%c0_204, %c0_205] : memref<8x128xf32, #tpu.memory_space<vmem>>, vector<8x128xf32>
    tpu.vector_store %arg25[%c0_204, %c0_205], %468 {strides = array<i32>} : memref<8x128xf32, #tpu.memory_space<vmem>>, vector<8x128xf32>,
    %470 = vector.extract_strided_slice %462 {offsets = [0, 0], sizes = [8, 32], strides = [1, 1]} : vector<128x32xf32> to vector<8x32xf32>
    "tpu.trace_start"() <{level = 10 : i32, message = "ne,me->nm"}> : () -> ()
    %cst_206 = arith.constant dense<0.000000e+00> : vector<8x128xf32>
    %471 = tpu.matmul %470, %461, %cst_206 {dimension_numbers = #tpu.dot_dimension_numbers<[1], [1], [0], [0], [0, 0, 1, 0], [], []>} : vector<8x32xf32>, vector<128x32xf32>, vector<8x128xf32> -> vector<8x128xf32>
    "tpu.trace_stop"() : () -> ()
    %472 = vector.broadcast %464 : f32 to vector<8x128xf32>
    %473 = arith.mulf %472, %471 : vector<8x128xf32>
    %c0_207 = arith.constant 0 : index
    %c0_208 = arith.constant 0 : index
    %474 = vector.load %arg26[%c0_207, %c0_208] : memref<8x128xf32, #tpu.memory_space<vmem>>, vector<8x128xf32>
    tpu.vector_store %arg26[%c0_207, %c0_208], %473 {strides = array<i32>} : memref<8x128xf32, #tpu.memory_space<vmem>>, vector<8x128xf32>,
    return
  }
}

</mosaic_0001>

<llo_original>
// kernel: ulip_forward.1
$region0: #{ulip_forward.1}
  #allocation0 [shape = 'u32[]', space=smem, size = 0x4, offset = 0x4, fixed_abs, tag = 'smem constant byte address 0x4 - core index']
  #allocation1 [shape = 'u32[144,128]{1,0:T(1,128)}', space=vmem, size = 0x12000, scoped, tag = 'internal scratch']
  #allocation2 [shape = 'f32[2,8,32]{2,1,0:T(8,128)}', space=vmem, size = 0x2000, scoped, tag = 'scratch operand']
  #allocation3 [shape = 'f32[1]{0:T(128)S(6)}', space=smem, size = 0x200, scoped, tag = 'scoped memory for ulip_forward.1']
  %s0 = inlined_call_operand.vmem [shape: s32[2], index: 0, kind: input, shape index: {}]
  %s1 = inlined_call_operand.<no memory space> [shape: f32[1], index: 1, kind: input, shape index: {}]
  %s2 = inlined_call_operand.vmem [shape: f32[2,16,3], index: 2, kind: input, shape index: {}]
  %s3 = inlined_call_operand.vmem [shape: f32[2,8,32], index: 3, kind: input, shape index: {}]
  %s4 = inlined_call_operand.vmem [shape: f32[8,8], index: 4, kind: input, shape index: {}]
  %s5 = inlined_call_operand.vmem [shape: f32[3,16], index: 5, kind: input, shape index: {}]
  %s6 = inlined_call_operand.vmem [shape: f32[1,16], index: 6, kind: input, shape index: {}]
  %s7 = inlined_call_operand.vmem [shape: f32[16,16], index: 7, kind: input, shape index: {}]
  %s8 = inlined_call_operand.vmem [shape: f32[1,16], index: 8, kind: input, shape index: {}]
  %s9 = inlined_call_operand.vmem [shape: f32[32,32], index: 9, kind: input, shape index: {}]
  %s10 = inlined_call_operand.vmem [shape: f32[2,1,32], index: 10, kind: input, shape index: {}]
  %s11 = inlined_call_operand.vmem [shape: f32[2,1,32], index: 11, kind: input, shape index: {}]
  %s12 = inlined_call_operand.vmem [shape: f32[2,32,96], index: 12, kind: input, shape index: {}]
  %s13 = inlined_call_operand.vmem [shape: f32[2,1,96], index: 13, kind: input, shape index: {}]
  %s14 = inlined_call_operand.vmem [shape: f32[2,32,32], index: 14, kind: input, shape index: {}]
  %s15 = inlined_call_operand.vmem [shape: f32[2,1,32], index: 15, kind: input, shape index: {}]
  %s16 = inlined_call_operand.vmem [shape: f32[2,1,32], index: 16, kind: input, shape index: {}]
  %s17 = inlined_call_operand.vmem [shape: f32[2,1,32], index: 17, kind: input, shape index: {}]
  %s18 = inlined_call_operand.vmem [shape: f32[2,32,128], index: 18, kind: input, shape index: {}]
  %s19 = inlined_call_operand.vmem [shape: f32[2,1,128], index: 19, kind: input, shape index: {}]
  %s20 = inlined_call_operand.vmem [shape: f32[2,128,32], index: 20, kind: input, shape index: {}]
  %s21 = inlined_call_operand.vmem [shape: f32[2,1,32], index: 21, kind: input, shape index: {}]
  %s22 = inlined_call_operand.vmem [shape: f32[1,32], index: 22, kind: input, shape index: {}]
  %s23 = inlined_call_operand.vmem [shape: f32[1,32], index: 23, kind: input, shape index: {}]
  %s24 = inlined_call_operand.vmem [shape: f32[32,32], index: 24, kind: input, shape index: {}]
  %s25 = inlined_call_operand.vmem [shape: f32[8,128], index: 25, kind: output, shape index: {0}]
  %s26 = inlined_call_operand.vmem [shape: f32[8,128], index: 26, kind: output, shape index: {1}]
  %27 = xla_tuple %s25, %s26
  %s28 = sld [smem:[#allocation0]]
  $region122: #{ulip_forward.1} parent=0
    _
  %s30 = ssub.s32 1, %s28
  %s31 = scalar_select 0, %s30, %s28
  %32 = sst [smem:[#allocation3]] %s1
  $region1: #{ulip_forward.1} parent=0
    #allocation4 [shape = 'u8[512]{0}', space=smem, size = 0x200, scoped, tag = 'input window, operand 0, single buffered']
    #allocation5 [shape = 's32[1]{0}', space=sflag, size = 0x4, scoped, tag = 'scoped memory for ulip_forward.1']
    %33 = vsyncpa [#allocation5], 0
    // Predicated region
    $region2: #{ulip_forward.1} parent=1 // pred_check
      _
    $region3: #{ulip_forward.1} parent=1 // pred_check_branch
      %35 = sbr.rel (0) target = $region5
    $region4: #{ulip_forward.1} parent=1 // pred_region
      %s37 = ssub.s32 16, 16
      %38 = vsyncadd [#allocation5], %s37
      %s40 = sshll.u32 %s0, 4
      %s41 = int_to_ptr.vmem [resolvable:$true] %s40
      %43 = dma.vmem_to_smem %s41, 16, [#allocation4], [#allocation5]
    $region5: #{ulip_forward.1} parent=1 // pred_fallthru
      _
    // Predicated region
    $region6: #{ulip_forward.1} parent=1 // pred_check
      _
    $region7: #{ulip_forward.1} parent=1 // pred_check_branch
      %45 = sbr.rel (0) target = $region9
    $region8: #{ulip_forward.1} parent=1 // pred_region
      _
    $region9: #{ulip_forward.1} parent=1 // pred_fallthru
      _
    // Predicated region
    $region10: #{ulip_forward.1} parent=1 // pred_check
      _
    $region11: #{ulip_forward.1} parent=1 // pred_check_branch
      %47 = sbr.rel (0) target = $region13
    $region12: #{ulip_forward.1} parent=1 // pred_region
      _
    $region13: #{ulip_forward.1} parent=1 // pred_fallthru
      _
    // Predicated region
    $region14: #{ulip_forward.1} parent=1 // pred_check
      _
    $region15: #{ulip_forward.1} parent=1 // pred_check_branch
      %49 = sbr.rel (0) target = $region17
    $region16: #{ulip_forward.1} parent=1 // pred_region
      _
    $region17: #{ulip_forward.1} parent=1 // pred_fallthru
      _
    // Predicated region
    $region18: #{ulip_forward.1} parent=1 // pred_check
      _
    $region19: #{ulip_forward.1} parent=1 // pred_check_branch
      %51 = sbr.rel (0) target = $region21
    $region20: #{ulip_forward.1} parent=1 // pred_region
      _
    $region21: #{ulip_forward.1} parent=1 // pred_fallthru
      _
    // Predicated region
    $region22: #{ulip_forward.1} parent=1 // pred_check
      _
    $region23: #{ulip_forward.1} parent=1 // pred_check_branch
      %53 = sbr.rel (0) target = $region25
    $region24: #{ulip_forward.1} parent=1 // pred_region
      _
    $region25: #{ulip_forward.1} parent=1 // pred_fallthru
      _
    // Predicated region
    $region26: #{ulip_forward.1} parent=1 // pred_check
      _
    $region27: #{ulip_forward.1} parent=1 // pred_check_branch
      %55 = sbr.rel (0) target = $region29
    $region28: #{ulip_forward.1} parent=1 // pred_region
      _
    $region29: #{ulip_forward.1} parent=1 // pred_fallthru
      _
    // Predicated region
    $region30: #{ulip_forward.1} parent=1 // pred_check
      _
    $region31: #{ulip_forward.1} parent=1 // pred_check_branch
      %57 = sbr.rel (0) target = $region33
    $region32: #{ulip_forward.1} parent=1 // pred_region
      _
    $region33: #{ulip_forward.1} parent=1 // pred_fallthru
      _
    // Predicated region
    $region34: #{ulip_forward.1} parent=1 // pred_check
      _
    $region35: #{ulip_forward.1} parent=1 // pred_check_branch
      %59 = sbr.rel (0) target = $region37
    $region36: #{ulip_forward.1} parent=1 // pred_region
      _
    $region37: #{ulip_forward.1} parent=1 // pred_fallthru
      _
    // Predicated region
    $region38: #{ulip_forward.1} parent=1 // pred_check
      _
    $region39: #{ulip_forward.1} parent=1 // pred_check_branch
      %61 = sbr.rel (0) target = $region41
    $region40: #{ulip_forward.1} parent=1 // pred_region
      _
    $region41: #{ulip_forward.1} parent=1 // pred_fallthru
      _
    // Predicated region
    $region42: #{ulip_forward.1} parent=1 // pred_check
      _
    $region43: #{ulip_forward.1} parent=1 // pred_check_branch
      %63 = sbr.rel (0) target = $region45
    $region44: #{ulip_forward.1} parent=1 // pred_region
      _
    $region45: #{ulip_forward.1} parent=1 // pred_fallthru
      _
    // Predicated region
    $region46: #{ulip_forward.1} parent=1 // pred_check
      _
    $region47: #{ulip_forward.1} parent=1 // pred_check_branch
      %65 = sbr.rel (0) target = $region49
    $region48: #{ulip_forward.1} parent=1 // pred_region
      _
    $region49: #{ulip_forward.1} parent=1 // pred_fallthru
      _
    // Predicated region
    $region50: #{ulip_forward.1} parent=1 // pred_check
      _
    $region51: #{ulip_forward.1} parent=1 // pred_check_branch
      %67 = sbr.rel (0) target = $region53
    $region52: #{ulip_forward.1} parent=1 // pred_region
      _
    $region53: #{ulip_forward.1} parent=1 // pred_fallthru
      _
    // Predicated region
    $region54: #{ulip_forward.1} parent=1 // pred_check
      _
    $region55: #{ulip_forward.1} parent=1 // pred_check_branch
      %69 = sbr.rel (0) target = $region57
    $region56: #{ulip_forward.1} parent=1 // pred_region
      _
    $region57: #{ulip_forward.1} parent=1 // pred_fallthru
      _
    // Predicated region
    $region58: #{ulip_forward.1} parent=1 // pred_check
      _
    $region59: #{ulip_forward.1} parent=1 // pred_check_branch
      %71 = sbr.rel (0) target = $region61
    $region60: #{ulip_forward.1} parent=1 // pred_region
      _
    $region61: #{ulip_forward.1} parent=1 // pred_fallthru
      _
    // Predicated region
    $region62: #{ulip_forward.1} parent=1 // pred_check
      _
    $region63: #{ulip_forward.1} parent=1 // pred_check_branch
      %73 = sbr.rel (0) target = $region65
    $region64: #{ulip_forward.1} parent=1 // pred_region
      _
    $region65: #{ulip_forward.1} parent=1 // pred_fallthru
      _
    // Predicated region
    $region66: #{ulip_forward.1} parent=1 // pred_check
      _
    $region67: #{ulip_forward.1} parent=1 // pred_check_branch
      %75 = sbr.rel (0) target = $region69
    $region68: #{ulip_forward.1} parent=1 // pred_region
      _
    $region69: #{ulip_forward.1} parent=1 // pred_fallthru
      _
    // Predicated region
    $region70: #{ulip_forward.1} parent=1 // pred_check
      _
    $region71: #{ulip_forward.1} parent=1 // pred_check_branch
      %77 = sbr.rel (0) target = $region73
    $region72: #{ulip_forward.1} parent=1 // pred_region
      _
    $region73: #{ulip_forward.1} parent=1 // pred_fallthru
      _
    // Predicated region
    $region74: #{ulip_forward.1} parent=1 // pred_check
      _
    $region75: #{ulip_forward.1} parent=1 // pred_check_branch
      %79 = sbr.rel (0) target = $region77
    $region76: #{ulip_forward.1} parent=1 // pred_region
      _
    $region77: #{ulip_forward.1} parent=1 // pred_fallthru
      _
    // Predicated region
    $region78: #{ulip_forward.1} parent=1 // pred_check
      _
    $region79: #{ulip_forward.1} parent=1 // pred_check_branch
      %81 = sbr.rel (0) target = $region81
    $region80: #{ulip_forward.1} parent=1 // pred_region
      _
    $region81: #{ulip_forward.1} parent=1 // pred_fallthru
      _
    // Predicated region
    $region82: #{ulip_forward.1} parent=1 // pred_check
      _
    $region83: #{ulip_forward.1} parent=1 // pred_check_branch
      %83 = sbr.rel (0) target = $region85
    $region84: #{ulip_forward.1} parent=1 // pred_region
      _
    $region85: #{ulip_forward.1} parent=1 // pred_fallthru
      _
    // Predicated region
    $region86: #{ulip_forward.1} parent=1 // pred_check
      _
    $region87: #{ulip_forward.1} parent=1 // pred_check_branch
      %85 = sbr.rel (0) target = $region89
    $region88: #{ulip_forward.1} parent=1 // pred_region
      _
    $region89: #{ulip_forward.1} parent=1 // pred_fallthru
      _
    // Predicated region
    $region90: #{ulip_forward.1} parent=1 // pred_check
      _
    $region91: #{ulip_forward.1} parent=1 // pred_check_branch
      %87 = sbr.rel (0) target = $region93
    $region92: #{ulip_forward.1} parent=1 // pred_region
      _
    $region93: #{ulip_forward.1} parent=1 // pred_fallthru
      _
    // Predicated region
    $region94: #{ulip_forward.1} parent=1 // pred_check
      _
    $region95: #{ulip_forward.1} parent=1 // pred_check_branch
      %89 = sbr.rel (0) target = $region97
    $region96: #{ulip_forward.1} parent=1 // pred_region
      _
    $region97: #{ulip_forward.1} parent=1 // pred_fallthru
      _
    // Predicated region
    $region98: #{ulip_forward.1} parent=1 // pred_check
      _
    $region99: #{ulip_forward.1} parent=1 // pred_check_branch
      %91 = sbr.rel (0) target = $region101
    $region100: #{ulip_forward.1} parent=1 // pred_region
      _
    $region101: #{ulip_forward.1} parent=1 // pred_fallthru
      _
    // Predicated region
    $region102: #{ulip_forward.1} parent=1 // pred_check
      _
    $region103: #{ulip_forward.1} parent=1 // pred_check_branch
      %93 = sbr.rel (0) target = $region105
    $region104: #{ulip_forward.1} parent=1 // pred_region
      %94 = dma.done [#allocation5], 16
    $region105: #{ulip_forward.1} parent=1 // pred_fallthru
      _
    %95 = sfence
    %v96 = vld [vmem:[%s2] sm:$0xff]
    %v97 = vld [vmem:[%s2 + $0x8] sm:$0xff]
    %v98 = vld [vmem:[%s2 + $0x10] sm:$0xff]
    %v99 = vld [vmem:[%s2 + $0x18] sm:$0xff]
    %v100 = vld [vmem:[%s5] sm:$0x7]
    %102 = vset.pattern.permute.xlu0 0
    %103 = vperm.xlu0 %102, %v96
    %v104 = vpop.permute.xlu0 %103
    %107 = vset.pattern.permute.xlu0 0
    %108 = vperm.xlu0 %107, %v97
    %v109 = vpop.permute.xlu0 %108
    %112 = vset.pattern.permute.xlu0 0
    %113 = vperm.xlu0 %112, %v98
    %v114 = vpop.permute.xlu0 %113
    %117 = vset.pattern.permute.xlu0 0
    %118 = vperm.xlu0 %117, %v99
    %v119 = vpop.permute.xlu0 %118
    %v121 = vlaneseq
    %v122 = vshrl.u32 %v121, 7
    %v123 = vsub.s32 0, %v122
    %v124 = vrot.slane %v100, %v123
    %v125 = vmul.f32 %v104, %v124
    %v126 = vmul.f32 %v109, %v124
    %v127 = vmul.f32 %v114, %v124
    %v128 = vmul.f32 %v119, %v124
    %129 = vset.pattern.permute.xlu0 1
    %130 = vperm.xlu0 %129, %v96
    %v131 = vpop.permute.xlu0 %130
    %133 = vset.pattern.permute.xlu0 1
    %134 = vperm.xlu0 %133, %v97
    %v135 = vpop.permute.xlu0 %134
    %137 = vset.pattern.permute.xlu0 1
    %138 = vperm.xlu0 %137, %v98
    %v139 = vpop.permute.xlu0 %138
    %141 = vset.pattern.permute.xlu0 1
    %142 = vperm.xlu0 %141, %v99
    %v143 = vpop.permute.xlu0 %142
    %v145 = vlaneseq
    %v146 = vshrl.u32 %v145, 7
    %v147 = vsub.s32 1, %v146
    %v148 = vrot.slane %v100, %v147
    %v149 = vmul.f32 %v131, %v148
    %v150 = vmul.f32 %v135, %v148
    %v151 = vmul.f32 %v139, %v148
    %v152 = vmul.f32 %v143, %v148
    %v153 = vadd.f32 %v125, %v149
    %v154 = vadd.f32 %v126, %v150
    %v155 = vadd.f32 %v127, %v151
    %v156 = vadd.f32 %v128, %v152
    %157 = vset.pattern.permute.xlu0 2
    %158 = vperm.xlu0 %157, %v96
    %v159 = vpop.permute.xlu0 %158
    %161 = vset.pattern.permute.xlu0 2
    %162 = vperm.xlu0 %161, %v97
    %v163 = vpop.permute.xlu0 %162
    %165 = vset.pattern.permute.xlu0 2
    %166 = vperm.xlu0 %165, %v98
    %v167 = vpop.permute.xlu0 %166
    %169 = vset.pattern.permute.xlu0 2
    %170 = vperm.xlu0 %169, %v99
    %v171 = vpop.permute.xlu0 %170
    %v173 = vlaneseq
    %v174 = vshrl.u32 %v173, 7
    %v175 = vsub.s32 2, %v174
    %v176 = vrot.slane %v100, %v175
    %v177 = vmul.f32 %v159, %v176
    %v178 = vmul.f32 %v163, %v176
    %v179 = vmul.f32 %v167, %v176
    %v180 = vmul.f32 %v171, %v176
    %v181 = vadd.f32 %v153, %v177
    %v182 = vadd.f32 %v154, %v178
    %v183 = vadd.f32 %v155, %v179
    %v184 = vadd.f32 %v156, %v180
    %v185 = vld [vmem:[%s6] sm:$0x1]
    %v187 = vlaneseq
    %v188 = vshrl.u32 %v187, 7
    %v189 = vsub.s32 0, %v188
    %v190 = vrot.slane %v185, %v189
    %v192 = vadd.f32 %v181, %v190
    %v193 = vadd.f32 %v182, %v190
    %v194 = vadd.f32 %v183, %v190
    %v195 = vadd.f32 %v184, %v190
    %v196 = vmul.f32 %v192, %v192
    %v197 = vmul.f32 %v193, %v193
    %v198 = vmul.f32 %v194, %v194
    %v199 = vmul.f32 %v195, %v195
    %v200 = vmul.f32 %v192, %v196
    %v201 = vmul.f32 %v193, %v197
    %v202 = vmul.f32 %v194, %v198
    %v203 = vmul.f32 %v195, %v199
    %v204 = vmul.f32 %v200, 0.044715
    %v205 = vmul.f32 %v201, 0.044715
    %v206 = vmul.f32 %v202, 0.044715
    %v207 = vmul.f32 %v203, 0.044715
    %v208 = vadd.f32 %v192, %v204
    %v209 = vadd.f32 %v193, %v205
    %v210 = vadd.f32 %v194, %v206
    %v211 = vadd.f32 %v195, %v207
    %v212 = vmul.f32 %v208, 0.7978846
    %v213 = vmul.f32 %v209, 0.7978846
    %v214 = vmul.f32 %v210, 0.7978846
    %v215 = vmul.f32 %v211, 0.7978846
    %v216 = vtanh.pop %v212
    %v217 = vtanh.pop %v213
    %v218 = vtanh.pop %v214
    %v219 = vtanh.pop %v215
    %v220 = vadd.f32 %v216, 1.0
    %v221 = vadd.f32 %v217, 1.0
    %v222 = vadd.f32 %v218, 1.0
    %v223 = vadd.f32 %v219, 1.0
    %v224 = vmul.f32 %v220, 0.5
    %v225 = vmul.f32 %v221, 0.5
    %v226 = vmul.f32 %v222, 0.5
    %v227 = vmul.f32 %v223, 0.5
    %v228 = vmul.f32 %v192, %v224
    %v229 = vmul.f32 %v193, %v225
    %v230 = vmul.f32 %v194, %v226
    %v231 = vmul.f32 %v195, %v227
    %v232 = vld [vmem:[%s7] sm:$0xff]
    %v233 = vld [vmem:[%s7 + $0x8] sm:$0xff]
    %v234 = vld [vmem:[%s8] sm:$0x1]
    %v236 = vlaneseq
    %v237 = vshrl.u32 %v236, 7
    %v238 = vsub.s32 0, %v237
    %v239 = vrot.slane %v234, %v238
    %vm241 = vcmask 130048
    %v243 = vsel %vm241, %v228, 0
    %v246 = vsel %vm241, %v229, 0
    %v249 = vsel %vm241, %v230, 0
    %v252 = vsel %vm241, %v231, 0
    %254 = vmatprep.subr.mxu0 0.0
    %255 = vmatpush1.msra.mxu0 %v232
    %256 = vmatprep.subr.mxu0 0.0
    %257 = vmatpush1.msra.mxu0 %v233
    %258 = vmatprep.subr.mxu0 0.0
    %259 = vmatpush1.msra.mxu0 0.0
    %260 = vmatprep.subr.mxu0 0.0
    %261 = vmatpush1.msra.mxu0 0.0
    %262 = vmatprep.subr.mxu0 0.0
    %263 = vmatpush1.msra.mxu0 0.0
    %264 = vmatprep.subr.mxu0 0.0
    %265 = vmatpush1.msra.mxu0 0.0
    %266 = vmatprep.subr.mxu0 0.0
    %267 = vmatpush1.msra.mxu0 0.0
    %268 = vmatprep.subr.mxu0 0.0
    %269 = vmatpush1.msra.mxu0 0.0
    %270 = vmatprep.subr.mxu0 0.0
    %271 = vmatpush1.msra.mxu0 0.0
    %272 = vmatprep.subr.mxu0 0.0
    %273 = vmatpush1.msra.mxu0 0.0
    %274 = vmatprep.subr.mxu0 0.0
    %275 = vmatpush1.msra.mxu0 0.0
    %276 = vmatprep.subr.mxu0 0.0
    %277 = vmatpush1.msra.mxu0 0.0
    %278 = vmatprep.subr.mxu0 0.0
    %279 = vmatpush1.msra.mxu0 0.0
    %280 = vmatprep.subr.mxu0 0.0
    %281 = vmatpush1.msra.mxu0 0.0
    %282 = vmatprep.subr.mxu0 0.0
    %283 = vmatpush1.msra.mxu0 0.0
    %284 = vmatprep.subr.mxu0 0.0
    %285 = vmatpush1.msra.mxu0 0.0
    %286 = vmatprep.subr.mxu0 0.0
    %287 = vmatpush1.msra.mxu0 0.0
    %288 = vmatprep.subr.mxu0 0.0
    %289 = vmatpush1.msra.mxu0 0.0
    %290 = vmatprep.subr.mxu0 0.0
    %291 = vmatpush1.msra.mxu0 0.0
    %292 = vmatprep.subr.mxu0 0.0
    %293 = vmatpush1.msra.mxu0 0.0
    %294 = vmatprep.subr.mxu0 0.0
    %295 = vmatpush1.msra.mxu0 0.0
    %296 = vmatprep.subr.mxu0 0.0
    %297 = vmatpush1.msra.mxu0 0.0
    %298 = vmatprep.subr.mxu0 0.0
    %299 = vmatpush1.msra.mxu0 0.0
    %300 = vmatprep.subr.mxu0 0.0
    %301 = vmatpush1.msra.mxu0 0.0
    %302 = vmatprep.subr.mxu0 0.0
    %303 = vmatpush1.msra.mxu0 0.0
    %304 = vmatprep.subr.mxu0 0.0
    %305 = vmatpush1.msra.mxu0 0.0
    %306 = vmatprep.subr.mxu0 0.0
    %307 = vmatpush1.msra.mxu0 0.0
    %308 = vmatprep.subr.mxu0 0.0
    %309 = vmatpush1.msra.mxu0 0.0
    %310 = vmatprep.subr.mxu0 0.0
    %311 = vmatpush1.msra.mxu0 0.0
    %312 = vmatprep.subr.mxu0 0.0
    %313 = vmatpush1.msra.mxu0 0.0
    %314 = vmatprep.subr.mxu0 0.0
    %315 = vmatpush1.msra.mxu0 0.0
    %316 = vmatprep.subr.mxu0 0.0
    %317 = vmatpush1.msra.mxu0 0.0
    %318 = vmatprep.mubr.f32.mxu0 0.0
    %319 = vmatmul.mubr.f32.gmra.mrb[0].mxu0 %v243
    %v320 = vpop.f32.mrb[0].mxu0
    %v321 = vadd.f32 %v239, %v320
    %v322 = vpop.f32.mrb[0].mxu0
    %323 = vmatprep.mubr.f32.mxu0 0.0
    %324 = vmatmul.mubr.f32.gmra.mrb[0].mxu0 %v246
    %v325 = vpop.f32.mrb[0].mxu0
    %v326 = vadd.f32 %v239, %v325
    %v327 = vpop.f32.mrb[0].mxu0
    %328 = vmatprep.mubr.f32.mxu0 0.0
    %329 = vmatmul.mubr.f32.gmra.mrb[0].mxu0 %v249
    %v330 = vpop.f32.mrb[0].mxu0
    %v331 = vadd.f32 %v239, %v330
    %v332 = vpop.f32.mrb[0].mxu0
    %333 = vmatprep.mubr.f32.mxu0 0.0
    %334 = vmatmul.mubr.f32.gmra.mrb[0].mxu0 %v252
    %v335 = vpop.f32.mrb[0].mxu0
    %v336 = vadd.f32 %v239, %v335
    %v337 = vpop.f32.mrb[0].mxu0
    %338 = vdwg.mxu0
    %v339 = vsel %vm241, %v321, -inf
    %v340 = vsel %vm241, %v326, -inf
    %v341 = vmax.f32 %v339, %v340
    %v342 = vrot.slane %v341, 4
    %v343 = vmax.f32 %v341, %v342
    %v344 = vrot.slane %v343, 2
    %v345 = vmax.f32 %v343, %v344
    %v346 = vrot.slane %v345, 1
    %v347 = vmax.f32 %v345, %v346
    %v348 = vsel %vm241, %v331, -inf
    %v349 = vsel %vm241, %v336, -inf
    %v350 = vmax.f32 %v348, %v349
    %v351 = vrot.slane %v350, 4
    %v352 = vmax.f32 %v350, %v351
    %v353 = vrot.slane %v352, 2
    %v354 = vmax.f32 %v352, %v353
    %v355 = vrot.slane %v354, 1
    %v356 = vmax.f32 %v354, %v355
    %v357 = vsel %vm241, %v321, 0.0
    %v358 = vsel %vm241, %v326, 0.0
    %v359 = vadd.f32 %v357, %v358
    %v360 = vrot.slane %v359, 4
    %v361 = vadd.f32 %v359, %v360
    %v362 = vrot.slane %v361, 2
    %v363 = vadd.f32 %v361, %v362
    %v364 = vrot.slane %v363, 1
    %v365 = vadd.f32 %v363, %v364
    %v366 = vsel %vm241, %v331, 0.0
    %v367 = vsel %vm241, %v336, 0.0
    %v368 = vadd.f32 %v366, %v367
    %v369 = vrot.slane %v368, 4
    %v370 = vadd.f32 %v368, %v369
    %v371 = vrot.slane %v370, 2
    %v372 = vadd.f32 %v370, %v371
    %v373 = vrot.slane %v372, 1
    %v374 = vadd.f32 %v372, %v373
    %v375 = vrcp.pop 16.0
    %v376 = vmul.f32 %v365, %v375
    %v377 = vmul.f32 %v374, %v375
    %vm380 = vcmask 1041409
    %v381 = vsel %vm380, %v356, %v347
    %v385 = vsel %vm380, %v377, %v376
    %386 = vrot.lane.b32.xlu0 %v385, 16
    %v387 = vpop.permute.xlu0 %386
    %v389 = vsel %vm241, %v381, %v387
    %v390 = vld [vmem:[%s9] sm:$0xff]
    %v391 = vld [vmem:[%s9 + $0x8] sm:$0xff]
    %v392 = vld [vmem:[%s9 + $0x10] sm:$0xff]
    %v393 = vld [vmem:[%s9 + $0x18] sm:$0xff]
    %vm394 = vcmask 261120
    %v396 = vsel %vm394, %v389, 0
    %398 = vmatprep.subr.mxu0 0.0
    %399 = vmatpush1.msra.mxu0 %v390
    %400 = vmatprep.subr.mxu0 0.0
    %401 = vmatpush1.msra.mxu0 %v391
    %402 = vmatprep.subr.mxu0 0.0
    %403 = vmatpush1.msra.mxu0 %v392
    %404 = vmatprep.subr.mxu0 0.0
    %405 = vmatpush1.msra.mxu0 %v393
    %406 = vmatprep.subr.mxu0 0.0
    %407 = vmatpush1.msra.mxu0 0.0
    %408 = vmatprep.subr.mxu0 0.0
    %409 = vmatpush1.msra.mxu0 0.0
    %410 = vmatprep.subr.mxu0 0.0
    %411 = vmatpush1.msra.mxu0 0.0
    %412 = vmatprep.subr.mxu0 0.0
    %413 = vmatpush1.msra.mxu0 0.0
    %414 = vmatprep.subr.mxu0 0.0
    %415 = vmatpush1.msra.mxu0 0.0
    %416 = vmatprep.subr.mxu0 0.0
    %417 = vmatpush1.msra.mxu0 0.0
    %418 = vmatprep.subr.mxu0 0.0
    %419 = vmatpush1.msra.mxu0 0.0
    %420 = vmatprep.subr.mxu0 0.0
    %421 = vmatpush1.msra.mxu0 0.0
    %422 = vmatprep.subr.mxu0 0.0
    %423 = vmatpush1.msra.mxu0 0.0
    %424 = vmatprep.subr.mxu0 0.0
    %425 = vmatpush1.msra.mxu0 0.0
    %426 = vmatprep.subr.mxu0 0.0
    %427 = vmatpush1.msra.mxu0 0.0
    %428 = vmatprep.subr.mxu0 0.0
    %429 = vmatpush1.msra.mxu0 0.0
    %430 = vmatprep.subr.mxu0 0.0
    %431 = vmatpush1.msra.mxu0 0.0
    %432 = vmatprep.subr.mxu0 0.0
    %433 = vmatpush1.msra.mxu0 0.0
    %434 = vmatprep.subr.mxu0 0.0
    %435 = vmatpush1.msra.mxu0 0.0
    %436 = vmatprep.subr.mxu0 0.0
    %437 = vmatpush1.msra.mxu0 0.0
    %438 = vmatprep.subr.mxu0 0.0
    %439 = vmatpush1.msra.mxu0 0.0
    %440 = vmatprep.subr.mxu0 0.0
    %441 = vmatpush1.msra.mxu0 0.0
    %442 = vmatprep.subr.mxu0 0.0
    %443 = vmatpush1.msra.mxu0 0.0
    %444 = vmatprep.subr.mxu0 0.0
    %445 = vmatpush1.msra.mxu0 0.0
    %446 = vmatprep.subr.mxu0 0.0
    %447 = vmatpush1.msra.mxu0 0.0
    %448 = vmatprep.subr.mxu0 0.0
    %449 = vmatpush1.msra.mxu0 0.0
    %450 = vmatprep.subr.mxu0 0.0
    %451 = vmatpush1.msra.mxu0 0.0
    %452 = vmatprep.subr.mxu0 0.0
    %453 = vmatpush1.msra.mxu0 0.0
    %454 = vmatprep.subr.mxu0 0.0
    %455 = vmatpush1.msra.mxu0 0.0
    %456 = vmatprep.subr.mxu0 0.0
    %457 = vmatpush1.msra.mxu0 0.0
    %458 = vmatprep.subr.mxu0 0.0
    %459 = vmatpush1.msra.mxu0 0.0
    %460 = vmatprep.subr.mxu0 0.0
    %461 = vmatpush1.msra.mxu0 0.0
    %462 = vmatprep.mubr.f32.mxu0 0.0
    %463 = vmatmul.mubr.f32.gmra.mrb[0].mxu0 %v396
    %v464 = vpop.f32.mrb[0].mxu0
    %v465 = vadd.f32 0.0, %v464
    %v466 = vpop.f32.mrb[0].mxu0
    %467 = vdwg.mxu0
    %v468 = vld [vmem:[%s3] sm:$0xff]
    %v469 = vld [vmem:[%s3 + $0x8] sm:$0xff]
    %v470 = vld [vmem:[%s4] sm:$0xff]
    %v471 = vld [vmem:[%s12] sm:$0xff]
    %v472 = vld [vmem:[%s12 + $0x8] sm:$0xff]
    %v473 = vld [vmem:[%s12 + $0x10] sm:$0xff]
    %v474 = vld [vmem:[%s12 + $0x18] sm:$0xff]
    %v475 = vld [vmem:[%s13] sm:$0x1]
    %v476 = vld [vmem:[%s14] sm:$0xff]
    %v477 = vld [vmem:[%s14 + $0x8] sm:$0xff]
    %v478 = vld [vmem:[%s14 + $0x10] sm:$0xff]
    %v479 = vld [vmem:[%s14 + $0x18] sm:$0xff]
    %v480 = vld [vmem:[%s15] sm:$0x1]
    %v481 = vld [vmem:[%s18] sm:$0xff]
    %v482 = vld [vmem:[%s18 + $0x8] sm:$0xff]
    %v483 = vld [vmem:[%s18 + $0x10] sm:$0xff]
    %v484 = vld [vmem:[%s18 + $0x18] sm:$0xff]
    %v485 = vld [vmem:[%s19] sm:$0x1]
    %v486 = vld [vmem:[%s20] sm:$0xff]
    %v487 = vld [vmem:[%s20 + $0x8] sm:$0xff]
    %v488 = vld [vmem:[%s20 + $0x10] sm:$0xff]
    %v489 = vld [vmem:[%s20 + $0x18] sm:$0xff]
    %v490 = vld [vmem:[%s20 + $0x20] sm:$0xff]
    %v491 = vld [vmem:[%s20 + $0x28] sm:$0xff]
    %v492 = vld [vmem:[%s20 + $0x30] sm:$0xff]
    %v493 = vld [vmem:[%s20 + $0x38] sm:$0xff]
    %v494 = vld [vmem:[%s20 + $0x40] sm:$0xff]
    %v495 = vld [vmem:[%s20 + $0x48] sm:$0xff]
    %v496 = vld [vmem:[%s20 + $0x50] sm:$0xff]
    %v497 = vld [vmem:[%s20 + $0x58] sm:$0xff]
    %v498 = vld [vmem:[%s20 + $0x60] sm:$0xff]
    %v499 = vld [vmem:[%s20 + $0x68] sm:$0xff]
    %v500 = vld [vmem:[%s20 + $0x70] sm:$0xff]
    %v501 = vld [vmem:[%s20 + $0x78] sm:$0xff]
    %v502 = vld [vmem:[%s21] sm:$0x1]
    %v503 = vld [vmem:[%s10] sm:$0x1]
    %v504 = vld [vmem:[%s11] sm:$0x1]
    %v505 = vsel %vm394, %v468, 0.0
    %506 = vadd.xlane.f32.xlu0 %v505
    %v507 = vpop.xlane.xlu0 %506
    %v508 = vsel %vm394, %v469, 0.0
    %509 = vadd.xlane.f32.xlu0 %v508
    %v510 = vpop.xlane.xlu0 %509
    %v511 = vrcp.pop 32.0
    %v512 = vmul.f32 %v507, %v511
    %v513 = vmul.f32 %v510, %v511
    %v514 = vsub.f32 %v468, %v512
    %v515 = vsub.f32 %v469, %v513
    %v516 = vmul.f32 %v514, %v514
    %v517 = vmul.f32 %v515, %v515
    %v518 = vsel %vm394, %v516, 0.0
    %519 = vadd.xlane.f32.xlu0 %v518
    %v520 = vpop.xlane.xlu0 %519
    %v521 = vsel %vm394, %v517, 0.0
    %522 = vadd.xlane.f32.xlu0 %v521
    %v523 = vpop.xlane.xlu0 %522
    %v524 = vmul.f32 %v520, %v511
    %v525 = vmul.f32 %v523, %v511
    %v526 = vadd.f32 %v524, 1e-05
    %v527 = vadd.f32 %v525, 1e-05
    %v528 = vrsqrt.pop %v526
    %v529 = vrsqrt.pop %v527
    %v530 = vmul.f32 %v514, %v528
    %v531 = vmul.f32 %v515, %v529
    %v533 = vlaneseq
    %v534 = vshrl.u32 %v533, 7
    %v535 = vsub.s32 0, %v534
    %v536 = vrot.slane %v503, %v535
    %v538 = vmul.f32 %v530, %v536
    %v539 = vmul.f32 %v531, %v536
    %v541 = vlaneseq
    %v542 = vshrl.u32 %v541, 7
    %v543 = vsub.s32 0, %v542
    %v544 = vrot.slane %v504, %v543
    %v546 = vadd.f32 %v538, %v544
    %v547 = vadd.f32 %v539, %v544
    %v549 = vlaneseq
    %v550 = vshrl.u32 %v549, 7
    %v551 = vsub.s32 0, %v550
    %v552 = vrot.slane %v475, %v551
    %v555 = vsel %vm394, %v546, 0
    %v558 = vsel %vm394, %v547, 0
    %560 = vmatprep.subr.mxu0 0.0
    %561 = vmatpush1.msra.mxu0 %v471
    %562 = vmatprep.subr.mxu0 0.0
    %563 = vmatpush1.msra.mxu0 %v472
    %564 = vmatprep.subr.mxu0 0.0
    %565 = vmatpush1.msra.mxu0 %v473
    %566 = vmatprep.subr.mxu0 0.0
    %567 = vmatpush1.msra.mxu0 %v474
    %568 = vmatprep.subr.mxu0 0.0
    %569 = vmatpush1.msra.mxu0 0.0
    %570 = vmatprep.subr.mxu0 0.0
    %571 = vmatpush1.msra.mxu0 0.0
    %572 = vmatprep.subr.mxu0 0.0
    %573 = vmatpush1.msra.mxu0 0.0
    %574 = vmatprep.subr.mxu0 0.0
    %575 = vmatpush1.msra.mxu0 0.0
    %576 = vmatprep.subr.mxu0 0.0
    %577 = vmatpush1.msra.mxu0 0.0
    %578 = vmatprep.subr.mxu0 0.0
    %579 = vmatpush1.msra.mxu0 0.0
    %580 = vmatprep.subr.mxu0 0.0
    %581 = vmatpush1.msra.mxu0 0.0
    %582 = vmatprep.subr.mxu0 0.0
    %583 = vmatpush1.msra.mxu0 0.0
    %584 = vmatprep.subr.mxu0 0.0
    %585 = vmatpush1.msra.mxu0 0.0
    %586 = vmatprep.subr.mxu0 0.0
    %587 = vmatpush1.msra.mxu0 0.0
    %588 = vmatprep.subr.mxu0 0.0
    %589 = vmatpush1.msra.mxu0 0.0
    %590 = vmatprep.subr.mxu0 0.0
    %591 = vmatpush1.msra.mxu0 0.0
    %592 = vmatprep.subr.mxu0 0.0
    %593 = vmatpush1.msra.mxu0 0.0
    %594 = vmatprep.subr.mxu0 0.0
    %595 = vmatpush1.msra.mxu0 0.0
    %596 = vmatprep.subr.mxu0 0.0
    %597 = vmatpush1.msra.mxu0 0.0
    %598 = vmatprep.subr.mxu0 0.0
    %599 = vmatpush1.msra.mxu0 0.0
    %600 = vmatprep.subr.mxu0 0.0
    %601 = vmatpush1.msra.mxu0 0.0
    %602 = vmatprep.subr.mxu0 0.0
    %603 = vmatpush1.msra.mxu0 0.0
    %604 = vmatprep.subr.mxu0 0.0
    %605 = vmatpush1.msra.mxu0 0.0
    %606 = vmatprep.subr.mxu0 0.0
    %607 = vmatpush1.msra.mxu0 0.0
    %608 = vmatprep.subr.mxu0 0.0
    %609 = vmatpush1.msra.mxu0 0.0
    %610 = vmatprep.subr.mxu0 0.0
    %611 = vmatpush1.msra.mxu0 0.0
    %612 = vmatprep.subr.mxu0 0.0
    %613 = vmatpush1.msra.mxu0 0.0
    %614 = vmatprep.subr.mxu0 0.0
    %615 = vmatpush1.msra.mxu0 0.0
    %616 = vmatprep.subr.mxu0 0.0
    %617 = vmatpush1.msra.mxu0 0.0
    %618 = vmatprep.subr.mxu0 0.0
    %619 = vmatpush1.msra.mxu0 0.0
    %620 = vmatprep.subr.mxu0 0.0
    %621 = vmatpush1.msra.mxu0 0.0
    %622 = vmatprep.subr.mxu0 0.0
    %623 = vmatpush1.msra.mxu0 0.0
    %624 = vmatprep.mubr.f32.mxu0 0.0
    %625 = vmatmul.mubr.f32.gmra.mrb[0].mxu0 %v555
    %v626 = vpop.f32.mrb[0].mxu0
    %v627 = vadd.f32 %v552, %v626
    %v628 = vpop.f32.mrb[0].mxu0
    %629 = vmatprep.mubr.f32.mxu0 0.0
    %630 = vmatmul.mubr.f32.gmra.mrb[0].mxu0 %v558
    %v631 = vpop.f32.mrb[0].mxu0
    %v632 = vadd.f32 %v552, %v631
    %v633 = vpop.f32.mrb[0].mxu0
    %634 = vdwg.mxu0
    %v635 = vmul.f32 %v627, 0.35355338
    %v636 = vmul.f32 %v632, 0.35355338
    %638 = vrot.lane.b32.xlu0 %v627, 96
    %v639 = vpop.permute.xlu0 %638
    %vm640 = vcmask 64512
    %v642 = vsel %vm640, %v635, 0
    %v644 = vsel %vm640, %v639, 0
    %646 = vmatprep.subr.mxu0 0.0
    %647 = vmatpush1.xpose.msra.mxu0 %v644
    %648 = vmatprep.subr.mxu0 0.0
    %649 = vmatpush1.xpose.msra.mxu0 0.0
    %650 = vmatprep.subr.mxu0 0.0
    %651 = vmatpush1.xpose.msra.mxu0 0.0
    %652 = vmatprep.subr.mxu0 0.0
    %653 = vmatpush1.xpose.msra.mxu0 0.0
    %654 = vmatprep.subr.mxu0 0.0
    %655 = vmatpush1.xpose.msra.mxu0 0.0
    %656 = vmatprep.subr.mxu0 0.0
    %657 = vmatpush1.xpose.msra.mxu0 0.0
    %658 = vmatprep.subr.mxu0 0.0
    %659 = vmatpush1.xpose.msra.mxu0 0.0
    %660 = vmatprep.subr.mxu0 0.0
    %661 = vmatpush1.xpose.msra.mxu0 0.0
    %662 = vmatprep.subr.mxu0 0.0
    %663 = vmatpush1.xpose.msra.mxu0 0.0
    %664 = vmatprep.subr.mxu0 0.0
    %665 = vmatpush1.xpose.msra.mxu0 0.0
    %666 = vmatprep.subr.mxu0 0.0
    %667 = vmatpush1.xpose.msra.mxu0 0.0
    %668 = vmatprep.subr.mxu0 0.0
    %669 = vmatpush1.xpose.msra.mxu0 0.0
    %670 = vmatprep.subr.mxu0 0.0
    %671 = vmatpush1.xpose.msra.mxu0 0.0
    %672 = vmatprep.subr.mxu0 0.0
    %673 = vmatpush1.xpose.msra.mxu0 0.0
    %674 = vmatprep.subr.mxu0 0.0
    %675 = vmatpush1.xpose.msra.mxu0 0.0
    %676 = vmatprep.subr.mxu0 0.0
    %677 = vmatpush1.xpose.msra.mxu0 0.0
    %678 = vmatprep.subr.mxu0 0.0
    %679 = vmatpush1.xpose.msra.mxu0 0.0
    %680 = vmatprep.subr.mxu0 0.0
    %681 = vmatpush1.xpose.msra.mxu0 0.0
    %682 = vmatprep.subr.mxu0 0.0
    %683 = vmatpush1.xpose.msra.mxu0 0.0
    %684 = vmatprep.subr.mxu0 0.0
    %685 = vmatpush1.xpose.msra.mxu0 0.0
    %686 = vmatprep.subr.mxu0 0.0
    %687 = vmatpush1.xpose.msra.mxu0 0.0
    %688 = vmatprep.subr.mxu0 0.0
    %689 = vmatpush1.xpose.msra.mxu0 0.0
    %690 = vmatprep.subr.mxu0 0.0
    %691 = vmatpush1.xpose.msra.mxu0 0.0
    %692 = vmatprep.subr.mxu0 0.0
    %693 = vmatpush1.xpose.msra.mxu0 0.0
    %694 = vmatprep.subr.mxu0 0.0
    %695 = vmatpush1.xpose.msra.mxu0 0.0
    %696 = vmatprep.subr.mxu0 0.0
    %697 = vmatpush1.xpose.msra.mxu0 0.0
    %698 = vmatprep.subr.mxu0 0.0
    %699 = vmatpush1.xpose.msra.mxu0 0.0
    %700 = vmatprep.subr.mxu0 0.0
    %701 = vmatpush1.xpose.msra.mxu0 0.0
    %702 = vmatprep.subr.mxu0 0.0
    %703 = vmatpush1.xpose.msra.mxu0 0.0
    %704 = vmatprep.subr.mxu0 0.0
    %705 = vmatpush1.xpose.msra.mxu0 0.0
    %706 = vmatprep.subr.mxu0 0.0
    %707 = vmatpush1.xpose.msra.mxu0 0.0
    %708 = vmatprep.subr.mxu0 0.0
    %709 = vmatpush1.xpose.msra.mxu0 0.0
    %710 = vmatprep.mubr.f32.mxu0 0.0
    %711 = vmatmul.mubr.f32.gmra.mrb[0].mxu0 %v642
    %v712 = vpop.f32.mrb[0].mxu0
    %v713 = vadd.f32 %v470, %v712
    %v714 = vpop.f32.mrb[0].mxu0
    %715 = vdwg.mxu0
    %717 = vrot.lane.b32.xlu0 %v632, 96
    %v718 = vpop.permute.xlu0 %717
    %v720 = vsel %vm640, %v636, 0
    %v722 = vsel %vm640, %v718, 0
    %724 = vmatprep.subr.mxu0 0.0
    %725 = vmatpush1.xpose.msra.mxu0 %v722
    %726 = vmatprep.subr.mxu0 0.0
    %727 = vmatpush1.xpose.msra.mxu0 0.0
    %728 = vmatprep.subr.mxu0 0.0
    %729 = vmatpush1.xpose.msra.mxu0 0.0
    %730 = vmatprep.subr.mxu0 0.0
    %731 = vmatpush1.xpose.msra.mxu0 0.0
    %732 = vmatprep.subr.mxu0 0.0
    %733 = vmatpush1.xpose.msra.mxu0 0.0
    %734 = vmatprep.subr.mxu0 0.0
    %735 = vmatpush1.xpose.msra.mxu0 0.0
    %736 = vmatprep.subr.mxu0 0.0
    %737 = vmatpush1.xpose.msra.mxu0 0.0
    %738 = vmatprep.subr.mxu0 0.0
    %739 = vmatpush1.xpose.msra.mxu0 0.0
    %740 = vmatprep.subr.mxu0 0.0
    %741 = vmatpush1.xpose.msra.mxu0 0.0
    %742 = vmatprep.subr.mxu0 0.0
    %743 = vmatpush1.xpose.msra.mxu0 0.0
    %744 = vmatprep.subr.mxu0 0.0
    %745 = vmatpush1.xpose.msra.mxu0 0.0
    %746 = vmatprep.subr.mxu0 0.0
    %747 = vmatpush1.xpose.msra.mxu0 0.0
    %748 = vmatprep.subr.mxu0 0.0
    %749 = vmatpush1.xpose.msra.mxu0 0.0
    %750 = vmatprep.subr.mxu0 0.0
    %751 = vmatpush1.xpose.msra.mxu0 0.0
    %752 = vmatprep.subr.mxu0 0.0
    %753 = vmatpush1.xpose.msra.mxu0 0.0
    %754 = vmatprep.subr.mxu0 0.0
    %755 = vmatpush1.xpose.msra.mxu0 0.0
    %756 = vmatprep.subr.mxu0 0.0
    %757 = vmatpush1.xpose.msra.mxu0 0.0
    %758 = vmatprep.subr.mxu0 0.0
    %759 = vmatpush1.xpose.msra.mxu0 0.0
    %760 = vmatprep.subr.mxu0 0.0
    %761 = vmatpush1.xpose.msra.mxu0 0.0
    %762 = vmatprep.subr.mxu0 0.0
    %763 = vmatpush1.xpose.msra.mxu0 0.0
    %764 = vmatprep.subr.mxu0 0.0
    %765 = vmatpush1.xpose.msra.mxu0 0.0
    %766 = vmatprep.subr.mxu0 0.0
    %767 = vmatpush1.xpose.msra.mxu0 0.0
    %768 = vmatprep.subr.mxu0 0.0
    %769 = vmatpush1.xpose.msra.mxu0 0.0
    %770 = vmatprep.subr.mxu0 0.0
    %771 = vmatpush1.xpose.msra.mxu0 0.0
    %772 = vmatprep.subr.mxu0 0.0
    %773 = vmatpush1.xpose.msra.mxu0 0.0
    %774 = vmatprep.subr.mxu0 0.0
    %775 = vmatpush1.xpose.msra.mxu0 0.0
    %776 = vmatprep.subr.mxu0 0.0
    %777 = vmatpush1.xpose.msra.mxu0 0.0
    %778 = vmatprep.subr.mxu0 0.0
    %779 = vmatpush1.xpose.msra.mxu0 0.0
    %780 = vmatprep.subr.mxu0 0.0
    %781 = vmatpush1.xpose.msra.mxu0 0.0
    %782 = vmatprep.subr.mxu0 0.0
    %783 = vmatpush1.xpose.msra.mxu0 0.0
    %784 = vmatprep.subr.mxu0 0.0
    %785 = vmatpush1.xpose.msra.mxu0 0.0
    %786 = vmatprep.subr.mxu0 0.0
    %787 = vmatpush1.xpose.msra.mxu0 0.0
    %788 = vmatprep.mubr.f32.mxu0 0.0
    %789 = vmatmul.mubr.f32.gmra.mrb[0].mxu0 %v720
    %v790 = vpop.f32.mrb[0].mxu0
    %v791 = vadd.f32 %v470, %v790
    %v792 = vpop.f32.mrb[0].mxu0
    %793 = vdwg.mxu0
    %v794 = vsel %vm640, %v713, -inf
    %795 = vmax.xlane.f32.xlu0 %v794
    %v796 = vpop.xlane.xlu0 %795
    %v797 = vsel %vm640, %v791, -inf
    %798 = vmax.xlane.f32.xlu0 %v797
    %v799 = vpop.xlane.xlu0 %798
    %v800 = vsub.f32 %v713, %v796
    %v801 = vsub.f32 %v791, %v799
    %v802 = vmul.f32 %v800, 1.442695
    %v803 = vpow.pop %v802
    %v804 = vmul.f32 %v801, 1.442695
    %v805 = vpow.pop %v804
    %v806 = vsel %vm640, %v803, 0.0
    %807 = vadd.xlane.f32.xlu0 %v806
    %v808 = vpop.xlane.xlu0 %807
    %v809 = vsel %vm640, %v805, 0.0
    %810 = vadd.xlane.f32.xlu0 %v809
    %v811 = vpop.xlane.xlu0 %810
    %v812 = vrcp.pop %v808
    %v813 = vmul.f32 %v803, %v812
    %v814 = vrcp.pop %v811
    %v815 = vmul.f32 %v805, %v814
    %816 = vrot.lane.b32.xlu0 %v627, 64
    %v817 = vpop.permute.xlu0 %816
    %v820 = vsel %vm640, %v813, 0
    %822 = vmatprep.subr.mxu0 0.0
    %823 = vmatpush1.msra.mxu0 %v817
    %824 = vmatprep.subr.mxu0 0.0
    %825 = vmatpush1.msra.mxu0 0.0
    %826 = vmatprep.subr.mxu0 0.0
    %827 = vmatpush1.msra.mxu0 0.0
    %828 = vmatprep.subr.mxu0 0.0
    %829 = vmatpush1.msra.mxu0 0.0
    %830 = vmatprep.subr.mxu0 0.0
    %831 = vmatpush1.msra.mxu0 0.0
    %832 = vmatprep.subr.mxu0 0.0
    %833 = vmatpush1.msra.mxu0 0.0
    %834 = vmatprep.subr.mxu0 0.0
    %835 = vmatpush1.msra.mxu0 0.0
    %836 = vmatprep.subr.mxu0 0.0
    %837 = vmatpush1.msra.mxu0 0.0
    %838 = vmatprep.subr.mxu0 0.0
    %839 = vmatpush1.msra.mxu0 0.0
    %840 = vmatprep.subr.mxu0 0.0
    %841 = vmatpush1.msra.mxu0 0.0
    %842 = vmatprep.subr.mxu0 0.0
    %843 = vmatpush1.msra.mxu0 0.0
    %844 = vmatprep.subr.mxu0 0.0
    %845 = vmatpush1.msra.mxu0 0.0
    %846 = vmatprep.subr.mxu0 0.0
    %847 = vmatpush1.msra.mxu0 0.0
    %848 = vmatprep.subr.mxu0 0.0
    %849 = vmatpush1.msra.mxu0 0.0
    %850 = vmatprep.subr.mxu0 0.0
    %851 = vmatpush1.msra.mxu0 0.0
    %852 = vmatprep.subr.mxu0 0.0
    %853 = vmatpush1.msra.mxu0 0.0
    %854 = vmatprep.subr.mxu0 0.0
    %855 = vmatpush1.msra.mxu0 0.0
    %856 = vmatprep.subr.mxu0 0.0
    %857 = vmatpush1.msra.mxu0 0.0
    %858 = vmatprep.subr.mxu0 0.0
    %859 = vmatpush1.msra.mxu0 0.0
    %860 = vmatprep.subr.mxu0 0.0
    %861 = vmatpush1.msra.mxu0 0.0
    %862 = vmatprep.subr.mxu0 0.0
    %863 = vmatpush1.msra.mxu0 0.0
    %864 = vmatprep.subr.mxu0 0.0
    %865 = vmatpush1.msra.mxu0 0.0
    %866 = vmatprep.subr.mxu0 0.0
    %867 = vmatpush1.msra.mxu0 0.0
    %868 = vmatprep.subr.mxu0 0.0
    %869 = vmatpush1.msra.mxu0 0.0
    %870 = vmatprep.subr.mxu0 0.0
    %871 = vmatpush1.msra.mxu0 0.0
    %872 = vmatprep.subr.mxu0 0.0
    %873 = vmatpush1.msra.mxu0 0.0
    %874 = vmatprep.subr.mxu0 0.0
    %875 = vmatpush1.msra.mxu0 0.0
    %876 = vmatprep.subr.mxu0 0.0
    %877 = vmatpush1.msra.mxu0 0.0
    %878 = vmatprep.subr.mxu0 0.0
    %879 = vmatpush1.msra.mxu0 0.0
    %880 = vmatprep.subr.mxu0 0.0
    %881 = vmatpush1.msra.mxu0 0.0
    %882 = vmatprep.subr.mxu0 0.0
    %883 = vmatpush1.msra.mxu0 0.0
    %884 = vmatprep.subr.mxu0 0.0
    %885 = vmatpush1.msra.mxu0 0.0
    %886 = vmatprep.mubr.f32.mxu0 0.0
    %887 = vmatmul.mubr.f32.gmra.mrb[0].mxu0 %v820
    %v888 = vpop.f32.mrb[0].mxu0
    %v889 = vadd.f32 0.0, %v888
    %v890 = vpop.f32.mrb[0].mxu0
    %891 = vdwg.mxu0
    %892 = vrot.lane.b32.xlu0 %v632, 64
    %v893 = vpop.permute.xlu0 %892
    %v896 = vsel %vm640, %v815, 0
    %898 = vmatprep.subr.mxu0 0.0
    %899 = vmatpush1.msra.mxu0 %v893
    %900 = vmatprep.subr.mxu0 0.0
    %901 = vmatpush1.msra.mxu0 0.0
    %902 = vmatprep.subr.mxu0 0.0
    %903 = vmatpush1.msra.mxu0 0.0
    %904 = vmatprep.subr.mxu0 0.0
    %905 = vmatpush1.msra.mxu0 0.0
    %906 = vmatprep.subr.mxu0 0.0
    %907 = vmatpush1.msra.mxu0 0.0
    %908 = vmatprep.subr.mxu0 0.0
    %909 = vmatpush1.msra.mxu0 0.0
    %910 = vmatprep.subr.mxu0 0.0
    %911 = vmatpush1.msra.mxu0 0.0
    %912 = vmatprep.subr.mxu0 0.0
    %913 = vmatpush1.msra.mxu0 0.0
    %914 = vmatprep.subr.mxu0 0.0
    %915 = vmatpush1.msra.mxu0 0.0
    %916 = vmatprep.subr.mxu0 0.0
    %917 = vmatpush1.msra.mxu0 0.0
    %918 = vmatprep.subr.mxu0 0.0
    %919 = vmatpush1.msra.mxu0 0.0
    %920 = vmatprep.subr.mxu0 0.0
    %921 = vmatpush1.msra.mxu0 0.0
    %922 = vmatprep.subr.mxu0 0.0
    %923 = vmatpush1.msra.mxu0 0.0
    %924 = vmatprep.subr.mxu0 0.0
    %925 = vmatpush1.msra.mxu0 0.0
    %926 = vmatprep.subr.mxu0 0.0
    %927 = vmatpush1.msra.mxu0 0.0
    %928 = vmatprep.subr.mxu0 0.0
    %929 = vmatpush1.msra.mxu0 0.0
    %930 = vmatprep.subr.mxu0 0.0
    %931 = vmatpush1.msra.mxu0 0.0
    %932 = vmatprep.subr.mxu0 0.0
    %933 = vmatpush1.msra.mxu0 0.0
    %934 = vmatprep.subr.mxu0 0.0
    %935 = vmatpush1.msra.mxu0 0.0
    %936 = vmatprep.subr.mxu0 0.0
    %937 = vmatpush1.msra.mxu0 0.0
    %938 = vmatprep.subr.mxu0 0.0
    %939 = vmatpush1.msra.mxu0 0.0
    %940 = vmatprep.subr.mxu0 0.0
    %941 = vmatpush1.msra.mxu0 0.0
    %942 = vmatprep.subr.mxu0 0.0
    %943 = vmatpush1.msra.mxu0 0.0
    %944 = vmatprep.subr.mxu0 0.0
    %945 = vmatpush1.msra.mxu0 0.0
    %946 = vmatprep.subr.mxu0 0.0
    %947 = vmatpush1.msra.mxu0 0.0
    %948 = vmatprep.subr.mxu0 0.0
    %949 = vmatpush1.msra.mxu0 0.0
    %950 = vmatprep.subr.mxu0 0.0
    %951 = vmatpush1.msra.mxu0 0.0
    %952 = vmatprep.subr.mxu0 0.0
    %953 = vmatpush1.msra.mxu0 0.0
    %954 = vmatprep.subr.mxu0 0.0
    %955 = vmatpush1.msra.mxu0 0.0
    %956 = vmatprep.subr.mxu0 0.0
    %957 = vmatpush1.msra.mxu0 0.0
    %958 = vmatprep.subr.mxu0 0.0
    %959 = vmatpush1.msra.mxu0 0.0
    %960 = vmatprep.subr.mxu0 0.0
    %961 = vmatpush1.msra.mxu0 0.0
    %962 = vmatprep.mubr.f32.mxu0 0.0
    %963 = vmatmul.mubr.f32.gmra.mrb[0].mxu0 %v896
    %v964 = vpop.f32.mrb[0].mxu0
    %v965 = vadd.f32 0.0, %v964
    %v966 = vpop.f32.mrb[0].mxu0
    %967 = vdwg.mxu0
    %968 = vrot.lane.b32.xlu0 %v635, 120
    %v969 = vpop.permute.xlu0 %968
    %970 = vrot.lane.b32.xlu0 %v627, 88
    %v971 = vpop.permute.xlu0 %970
    %v972 = vsel %vm640, %v969, 0
    %v974 = vsel %vm640, %v971, 0
    %976 = vmatprep.subr.mxu0 0.0
    %977 = vmatpush1.xpose.msra.mxu0 %v974
    %978 = vmatprep.subr.mxu0 0.0
    %979 = vmatpush1.xpose.msra.mxu0 0.0
    %980 = vmatprep.subr.mxu0 0.0
    %981 = vmatpush1.xpose.msra.mxu0 0.0
    %982 = vmatprep.subr.mxu0 0.0
    %983 = vmatpush1.xpose.msra.mxu0 0.0
    %984 = vmatprep.subr.mxu0 0.0
    %985 = vmatpush1.xpose.msra.mxu0 0.0
    %986 = vmatprep.subr.mxu0 0.0
    %987 = vmatpush1.xpose.msra.mxu0 0.0
    %988 = vmatprep.subr.mxu0 0.0
    %989 = vmatpush1.xpose.msra.mxu0 0.0
    %990 = vmatprep.subr.mxu0 0.0
    %991 = vmatpush1.xpose.msra.mxu0 0.0
    %992 = vmatprep.subr.mxu0 0.0
    %993 = vmatpush1.xpose.msra.mxu0 0.0
    %994 = vmatprep.subr.mxu0 0.0
    %995 = vmatpush1.xpose.msra.mxu0 0.0
    %996 = vmatprep.subr.mxu0 0.0
    %997 = vmatpush1.xpose.msra.mxu0 0.0
    %998 = vmatprep.subr.mxu0 0.0
    %999 = vmatpush1.xpose.msra.mxu0 0.0
    %1000 = vmatprep.subr.mxu0 0.0
    %1001 = vmatpush1.xpose.msra.mxu0 0.0
    %1002 = vmatprep.subr.mxu0 0.0
    %1003 = vmatpush1.xpose.msra.mxu0 0.0
    %1004 = vmatprep.subr.mxu0 0.0
    %1005 = vmatpush1.xpose.msra.mxu0 0.0
    %1006 = vmatprep.subr.mxu0 0.0
    %1007 = vmatpush1.xpose.msra.mxu0 0.0
    %1008 = vmatprep.subr.mxu0 0.0
    %1009 = vmatpush1.xpose.msra.mxu0 0.0
    %1010 = vmatprep.subr.mxu0 0.0
    %1011 = vmatpush1.xpose.msra.mxu0 0.0
    %1012 = vmatprep.subr.mxu0 0.0
    %1013 = vmatpush1.xpose.msra.mxu0 0.0
    %1014 = vmatprep.subr.mxu0 0.0
    %1015 = vmatpush1.xpose.msra.mxu0 0.0
    %1016 = vmatprep.subr.mxu0 0.0
    %1017 = vmatpush1.xpose.msra.mxu0 0.0
    %1018 = vmatprep.subr.mxu0 0.0
    %1019 = vmatpush1.xpose.msra.mxu0 0.0
    %1020 = vmatprep.subr.mxu0 0.0
    %1021 = vmatpush1.xpose.msra.mxu0 0.0
    %1022 = vmatprep.subr.mxu0 0.0
    %1023 = vmatpush1.xpose.msra.mxu0 0.0
    %1024 = vmatprep.subr.mxu0 0.0
    %1025 = vmatpush1.xpose.msra.mxu0 0.0
    %1026 = vmatprep.subr.mxu0 0.0
    %1027 = vmatpush1.xpose.msra.mxu0 0.0
    %1028 = vmatprep.subr.mxu0 0.0
    %1029 = vmatpush1.xpose.msra.mxu0 0.0
    %1030 = vmatprep.subr.mxu0 0.0
    %1031 = vmatpush1.xpose.msra.mxu0 0.0
    %1032 = vmatprep.subr.mxu0 0.0
    %1033 = vmatpush1.xpose.msra.mxu0 0.0
    %1034 = vmatprep.subr.mxu0 0.0
    %1035 = vmatpush1.xpose.msra.mxu0 0.0
    %1036 = vmatprep.subr.mxu0 0.0
    %1037 = vmatpush1.xpose.msra.mxu0 0.0
    %1038 = vmatprep.subr.mxu0 0.0
    %1039 = vmatpush1.xpose.msra.mxu0 0.0
    %1040 = vmatprep.mubr.f32.mxu0 0.0
    %1041 = vmatmul.mubr.f32.gmra.mrb[0].mxu0 %v972
    %v1042 = vpop.f32.mrb[0].mxu0
    %v1043 = vadd.f32 %v470, %v1042
    %v1044 = vpop.f32.mrb[0].mxu0
    %1045 = vdwg.mxu0
    %1046 = vrot.lane.b32.xlu0 %v636, 120
    %v1047 = vpop.permute.xlu0 %1046
    %1048 = vrot.lane.b32.xlu0 %v632, 88
    %v1049 = vpop.permute.xlu0 %1048
    %v1050 = vsel %vm640, %v1047, 0
    %v1052 = vsel %vm640, %v1049, 0
    %1054 = vmatprep.subr.mxu0 0.0
    %1055 = vmatpush1.xpose.msra.mxu0 %v1052
    %1056 = vmatprep.subr.mxu0 0.0
    %1057 = vmatpush1.xpose.msra.mxu0 0.0
    %1058 = vmatprep.subr.mxu0 0.0
    %1059 = vmatpush1.xpose.msra.mxu0 0.0
    %1060 = vmatprep.subr.mxu0 0.0
    %1061 = vmatpush1.xpose.msra.mxu0 0.0
    %1062 = vmatprep.subr.mxu0 0.0
    %1063 = vmatpush1.xpose.msra.mxu0 0.0
    %1064 = vmatprep.subr.mxu0 0.0
    %1065 = vmatpush1.xpose.msra.mxu0 0.0
    %1066 = vmatprep.subr.mxu0 0.0
    %1067 = vmatpush1.xpose.msra.mxu0 0.0
    %1068 = vmatprep.subr.mxu0 0.0
    %1069 = vmatpush1.xpose.msra.mxu0 0.0
    %1070 = vmatprep.subr.mxu0 0.0
    %1071 = vmatpush1.xpose.msra.mxu0 0.0
    %1072 = vmatprep.subr.mxu0 0.0
    %1073 = vmatpush1.xpose.msra.mxu0 0.0
    %1074 = vmatprep.subr.mxu0 0.0
    %1075 = vmatpush1.xpose.msra.mxu0 0.0
    %1076 = vmatprep.subr.mxu0 0.0
    %1077 = vmatpush1.xpose.msra.mxu0 0.0
    %1078 = vmatprep.subr.mxu0 0.0
    %1079 = vmatpush1.xpose.msra.mxu0 0.0
    %1080 = vmatprep.subr.mxu0 0.0
    %1081 = vmatpush1.xpose.msra.mxu0 0.0
    %1082 = vmatprep.subr.mxu0 0.0
    %1083 = vmatpush1.xpose.msra.mxu0 0.0
    %1084 = vmatprep.subr.mxu0 0.0
    %1085 = vmatpush1.xpose.msra.mxu0 0.0
    %1086 = vmatprep.subr.mxu0 0.0
    %1087 = vmatpush1.xpose.msra.mxu0 0.0
    %1088 = vmatprep.subr.mxu0 0.0
    %1089 = vmatpush1.xpose.msra.mxu0 0.0
    %1090 = vmatprep.subr.mxu0 0.0
    %1091 = vmatpush1.xpose.msra.mxu0 0.0
    %1092 = vmatprep.subr.mxu0 0.0
    %1093 = vmatpush1.xpose.msra.mxu0 0.0
    %1094 = vmatprep.subr.mxu0 0.0
    %1095 = vmatpush1.xpose.msra.mxu0 0.0
    %1096 = vmatprep.subr.mxu0 0.0
    %1097 = vmatpush1.xpose.msra.mxu0 0.0
    %1098 = vmatprep.subr.mxu0 0.0
    %1099 = vmatpush1.xpose.msra.mxu0 0.0
    %1100 = vmatprep.subr.mxu0 0.0
    %1101 = vmatpush1.xpose.msra.mxu0 0.0
    %1102 = vmatprep.subr.mxu0 0.0
    %1103 = vmatpush1.xpose.msra.mxu0 0.0
    %1104 = vmatprep.subr.mxu0 0.0
    %1105 = vmatpush1.xpose.msra.mxu0 0.0
    %1106 = vmatprep.subr.mxu0 0.0
    %1107 = vmatpush1.xpose.msra.mxu0 0.0
    %1108 = vmatprep.subr.mxu0 0.0
    %1109 = vmatpush1.xpose.msra.mxu0 0.0
    %1110 = vmatprep.subr.mxu0 0.0
    %1111 = vmatpush1.xpose.msra.mxu0 0.0
    %1112 = vmatprep.subr.mxu0 0.0
    %1113 = vmatpush1.xpose.msra.mxu0 0.0
    %1114 = vmatprep.subr.mxu0 0.0
    %1115 = vmatpush1.xpose.msra.mxu0 0.0
    %1116 = vmatprep.subr.mxu0 0.0
    %1117 = vmatpush1.xpose.msra.mxu0 0.0
    %1118 = vmatprep.mubr.f32.mxu0 0.0
    %1119 = vmatmul.mubr.f32.gmra.mrb[0].mxu0 %v1050
    %v1120 = vpop.f32.mrb[0].mxu0
    %v1121 = vadd.f32 %v470, %v1120
    %v1122 = vpop.f32.mrb[0].mxu0
    %1123 = vdwg.mxu0
    %v1124 = vsel %vm640, %v1043, -inf
    %1125 = vmax.xlane.f32.xlu0 %v1124
    %v1126 = vpop.xlane.xlu0 %1125
    %v1127 = vsel %vm640, %v1121, -inf
    %1128 = vmax.xlane.f32.xlu0 %v1127
    %v1129 = vpop.xlane.xlu0 %1128
    %v1130 = vsub.f32 %v1043, %v1126
    %v1131 = vsub.f32 %v1121, %v1129
    %v1132 = vmul.f32 %v1130, 1.442695
    %v1133 = vpow.pop %v1132
    %v1134 = vmul.f32 %v1131, 1.442695
    %v1135 = vpow.pop %v1134
    %v1136 = vsel %vm640, %v1133, 0.0
    %1137 = vadd.xlane.f32.xlu0 %v1136
    %v1138 = vpop.xlane.xlu0 %1137
    %v1139 = vsel %vm640, %v1135, 0.0
    %1140 = vadd.xlane.f32.xlu0 %v1139
    %v1141 = vpop.xlane.xlu0 %1140
    %v1142 = vrcp.pop %v1138
    %v1143 = vmul.f32 %v1133, %v1142
    %v1144 = vrcp.pop %v1141
    %v1145 = vmul.f32 %v1135, %v1144
    %1146 = vrot.lane.b32.xlu0 %v627, 56
    %v1147 = vpop.permute.xlu0 %1146
    %v1150 = vsel %vm640, %v1143, 0
    %1152 = vmatprep.subr.mxu0 0.0
    %1153 = vmatpush1.msra.mxu0 %v1147
    %1154 = vmatprep.subr.mxu0 0.0
    %1155 = vmatpush1.msra.mxu0 0.0
    %1156 = vmatprep.subr.mxu0 0.0
    %1157 = vmatpush1.msra.mxu0 0.0
    %1158 = vmatprep.subr.mxu0 0.0
    %1159 = vmatpush1.msra.mxu0 0.0
    %1160 = vmatprep.subr.mxu0 0.0
    %1161 = vmatpush1.msra.mxu0 0.0
    %1162 = vmatprep.subr.mxu0 0.0
    %1163 = vmatpush1.msra.mxu0 0.0
    %1164 = vmatprep.subr.mxu0 0.0
    %1165 = vmatpush1.msra.mxu0 0.0
    %1166 = vmatprep.subr.mxu0 0.0
    %1167 = vmatpush1.msra.mxu0 0.0
    %1168 = vmatprep.subr.mxu0 0.0
    %1169 = vmatpush1.msra.mxu0 0.0
    %1170 = vmatprep.subr.mxu0 0.0
    %1171 = vmatpush1.msra.mxu0 0.0
    %1172 = vmatprep.subr.mxu0 0.0
    %1173 = vmatpush1.msra.mxu0 0.0
    %1174 = vmatprep.subr.mxu0 0.0
    %1175 = vmatpush1.msra.mxu0 0.0
    %1176 = vmatprep.subr.mxu0 0.0
    %1177 = vmatpush1.msra.mxu0 0.0
    %1178 = vmatprep.subr.mxu0 0.0
    %1179 = vmatpush1.msra.mxu0 0.0
    %1180 = vmatprep.subr.mxu0 0.0
    %1181 = vmatpush1.msra.mxu0 0.0
    %1182 = vmatprep.subr.mxu0 0.0
    %1183 = vmatpush1.msra.mxu0 0.0
    %1184 = vmatprep.subr.mxu0 0.0
    %1185 = vmatpush1.msra.mxu0 0.0
    %1186 = vmatprep.subr.mxu0 0.0
    %1187 = vmatpush1.msra.mxu0 0.0
    %1188 = vmatprep.subr.mxu0 0.0
    %1189 = vmatpush1.msra.mxu0 0.0
    %1190 = vmatprep.subr.mxu0 0.0
    %1191 = vmatpush1.msra.mxu0 0.0
    %1192 = vmatprep.subr.mxu0 0.0
    %1193 = vmatpush1.msra.mxu0 0.0
    %1194 = vmatprep.subr.mxu0 0.0
    %1195 = vmatpush1.msra.mxu0 0.0
    %1196 = vmatprep.subr.mxu0 0.0
    %1197 = vmatpush1.msra.mxu0 0.0
    %1198 = vmatprep.subr.mxu0 0.0
    %1199 = vmatpush1.msra.mxu0 0.0
    %1200 = vmatprep.subr.mxu0 0.0
    %1201 = vmatpush1.msra.mxu0 0.0
    %1202 = vmatprep.subr.mxu0 0.0
    %1203 = vmatpush1.msra.mxu0 0.0
    %1204 = vmatprep.subr.mxu0 0.0
    %1205 = vmatpush1.msra.mxu0 0.0
    %1206 = vmatprep.subr.mxu0 0.0
    %1207 = vmatpush1.msra.mxu0 0.0
    %1208 = vmatprep.subr.mxu0 0.0
    %1209 = vmatpush1.msra.mxu0 0.0
    %1210 = vmatprep.subr.mxu0 0.0
    %1211 = vmatpush1.msra.mxu0 0.0
    %1212 = vmatprep.subr.mxu0 0.0
    %1213 = vmatpush1.msra.mxu0 0.0
    %1214 = vmatprep.subr.mxu0 0.0
    %1215 = vmatpush1.msra.mxu0 0.0
    %1216 = vmatprep.mubr.f32.mxu0 0.0
    %1217 = vmatmul.mubr.f32.gmra.mrb[0].mxu0 %v1150
    %v1218 = vpop.f32.mrb[0].mxu0
    %v1219 = vadd.f32 0.0, %v1218
    %v1220 = vpop.f32.mrb[0].mxu0
    %1221 = vdwg.mxu0
    %1222 = vrot.lane.b32.xlu0 %v632, 56
    %v1223 = vpop.permute.xlu0 %1222
    %v1226 = vsel %vm640, %v1145, 0
    %1228 = vmatprep.subr.mxu0 0.0
    %1229 = vmatpush1.msra.mxu0 %v1223
    %1230 = vmatprep.subr.mxu0 0.0
    %1231 = vmatpush1.msra.mxu0 0.0
    %1232 = vmatprep.subr.mxu0 0.0
    %1233 = vmatpush1.msra.mxu0 0.0
    %1234 = vmatprep.subr.mxu0 0.0
    %1235 = vmatpush1.msra.mxu0 0.0
    %1236 = vmatprep.subr.mxu0 0.0
    %1237 = vmatpush1.msra.mxu0 0.0
    %1238 = vmatprep.subr.mxu0 0.0
    %1239 = vmatpush1.msra.mxu0 0.0
    %1240 = vmatprep.subr.mxu0 0.0
    %1241 = vmatpush1.msra.mxu0 0.0
    %1242 = vmatprep.subr.mxu0 0.0
    %1243 = vmatpush1.msra.mxu0 0.0
    %1244 = vmatprep.subr.mxu0 0.0
    %1245 = vmatpush1.msra.mxu0 0.0
    %1246 = vmatprep.subr.mxu0 0.0
    %1247 = vmatpush1.msra.mxu0 0.0
    %1248 = vmatprep.subr.mxu0 0.0
    %1249 = vmatpush1.msra.mxu0 0.0
    %1250 = vmatprep.subr.mxu0 0.0
    %1251 = vmatpush1.msra.mxu0 0.0
    %1252 = vmatprep.subr.mxu0 0.0
    %1253 = vmatpush1.msra.mxu0 0.0
    %1254 = vmatprep.subr.mxu0 0.0
    %1255 = vmatpush1.msra.mxu0 0.0
    %1256 = vmatprep.subr.mxu0 0.0
    %1257 = vmatpush1.msra.mxu0 0.0
    %1258 = vmatprep.subr.mxu0 0.0
    %1259 = vmatpush1.msra.mxu0 0.0
    %1260 = vmatprep.subr.mxu0 0.0
    %1261 = vmatpush1.msra.mxu0 0.0
    %1262 = vmatprep.subr.mxu0 0.0
    %1263 = vmatpush1.msra.mxu0 0.0
    %1264 = vmatprep.subr.mxu0 0.0
    %1265 = vmatpush1.msra.mxu0 0.0
    %1266 = vmatprep.subr.mxu0 0.0
    %1267 = vmatpush1.msra.mxu0 0.0
    %1268 = vmatprep.subr.mxu0 0.0
    %1269 = vmatpush1.msra.mxu0 0.0
    %1270 = vmatprep.subr.mxu0 0.0
    %1271 = vmatpush1.msra.mxu0 0.0
    %1272 = vmatprep.subr.mxu0 0.0
    %1273 = vmatpush1.msra.mxu0 0.0
    %1274 = vmatprep.subr.mxu0 0.0
    %1275 = vmatpush1.msra.mxu0 0.0
    %1276 = vmatprep.subr.mxu0 0.0
    %1277 = vmatpush1.msra.mxu0 0.0
    %1278 = vmatprep.subr.mxu0 0.0
    %1279 = vmatpush1.msra.mxu0 0.0
    %1280 = vmatprep.subr.mxu0 0.0
    %1281 = vmatpush1.msra.mxu0 0.0
    %1282 = vmatprep.subr.mxu0 0.0
    %1283 = vmatpush1.msra.mxu0 0.0
    %1284 = vmatprep.subr.mxu0 0.0
    %1285 = vmatpush1.msra.mxu0 0.0
    %1286 = vmatprep.subr.mxu0 0.0
    %1287 = vmatpush1.msra.mxu0 0.0
    %1288 = vmatprep.subr.mxu0 0.0
    %1289 = vmatpush1.msra.mxu0 0.0
    %1290 = vmatprep.subr.mxu0 0.0
    %1291 = vmatpush1.msra.mxu0 0.0
    %1292 = vmatprep.mubr.f32.mxu0 0.0
    %1293 = vmatmul.mubr.f32.gmra.mrb[0].mxu0 %v1226
    %v1294 = vpop.f32.mrb[0].mxu0
    %v1295 = vadd.f32 0.0, %v1294
    %v1296 = vpop.f32.mrb[0].mxu0
    %1297 = vdwg.mxu0
    %v1299 = vsel %vm640, %v1219, 0
    %v1302 = vsel %vm640, %v1295, 0
    %1304 = vmatprep.subr.mxu0 0.0
    %1305 = vmatpush1.msra.mxu0 %v477
    %1306 = vmatprep.subr.mxu0 0.0
    %1307 = vmatpush1.msra.mxu0 0.0
    %1308 = vmatprep.subr.mxu0 0.0
    %1309 = vmatpush1.msra.mxu0 0.0
    %1310 = vmatprep.subr.mxu0 0.0
    %1311 = vmatpush1.msra.mxu0 0.0
    %1312 = vmatprep.subr.mxu0 0.0
    %1313 = vmatpush1.msra.mxu0 0.0
    %1314 = vmatprep.subr.mxu0 0.0
    %1315 = vmatpush1.msra.mxu0 0.0
    %1316 = vmatprep.subr.mxu0 0.0
    %1317 = vmatpush1.msra.mxu0 0.0
    %1318 = vmatprep.subr.mxu0 0.0
    %1319 = vmatpush1.msra.mxu0 0.0
    %1320 = vmatprep.subr.mxu0 0.0
    %1321 = vmatpush1.msra.mxu0 0.0
    %1322 = vmatprep.subr.mxu0 0.0
    %1323 = vmatpush1.msra.mxu0 0.0
    %1324 = vmatprep.subr.mxu0 0.0
    %1325 = vmatpush1.msra.mxu0 0.0
    %1326 = vmatprep.subr.mxu0 0.0
    %1327 = vmatpush1.msra.mxu0 0.0
    %1328 = vmatprep.subr.mxu0 0.0
    %1329 = vmatpush1.msra.mxu0 0.0
    %1330 = vmatprep.subr.mxu0 0.0
    %1331 = vmatpush1.msra.mxu0 0.0
    %1332 = vmatprep.subr.mxu0 0.0
    %1333 = vmatpush1.msra.mxu0 0.0
    %1334 = vmatprep.subr.mxu0 0.0
    %1335 = vmatpush1.msra.mxu0 0.0
    %1336 = vmatprep.subr.mxu0 0.0
    %1337 = vmatpush1.msra.mxu0 0.0
    %1338 = vmatprep.subr.mxu0 0.0
    %1339 = vmatpush1.msra.mxu0 0.0
    %1340 = vmatprep.subr.mxu0 0.0
    %1341 = vmatpush1.msra.mxu0 0.0
    %1342 = vmatprep.subr.mxu0 0.0
    %1343 = vmatpush1.msra.mxu0 0.0
    %1344 = vmatprep.subr.mxu0 0.0
    %1345 = vmatpush1.msra.mxu0 0.0
    %1346 = vmatprep.subr.mxu0 0.0
    %1347 = vmatpush1.msra.mxu0 0.0
    %1348 = vmatprep.subr.mxu0 0.0
    %1349 = vmatpush1.msra.mxu0 0.0
    %1350 = vmatprep.subr.mxu0 0.0
    %1351 = vmatpush1.msra.mxu0 0.0
    %1352 = vmatprep.subr.mxu0 0.0
    %1353 = vmatpush1.msra.mxu0 0.0
    %1354 = vmatprep.subr.mxu0 0.0
    %1355 = vmatpush1.msra.mxu0 0.0
    %1356 = vmatprep.subr.mxu0 0.0
    %1357 = vmatpush1.msra.mxu0 0.0
    %1358 = vmatprep.subr.mxu0 0.0
    %1359 = vmatpush1.msra.mxu0 0.0
    %1360 = vmatprep.subr.mxu0 0.0
    %1361 = vmatpush1.msra.mxu0 0.0
    %1362 = vmatprep.subr.mxu0 0.0
    %1363 = vmatpush1.msra.mxu0 0.0
    %1364 = vmatprep.subr.mxu0 0.0
    %1365 = vmatpush1.msra.mxu0 0.0
    %1366 = vmatprep.subr.mxu0 0.0
    %1367 = vmatpush1.msra.mxu0 0.0
    %1368 = vmatprep.mubr.f32.mxu0 0.0
    %1369 = vmatmul.mubr.f32.gmra.mrb[0].mxu0 %v1299
    %v1370 = vpop.f32.mrb[0].mxu0
    %v1371 = vadd.f32 0.0, %v1370
    %v1372 = vpop.f32.mrb[0].mxu0
    %1373 = vmatprep.mubr.f32.mxu0 0.0
    %1374 = vmatmul.mubr.f32.gmra.mrb[0].mxu0 %v1302
    %v1375 = vpop.f32.mrb[0].mxu0
    %v1376 = vadd.f32 0.0, %v1375
    %v1377 = vpop.f32.mrb[0].mxu0
    %1378 = vdwg.mxu0
    %v1380 = vsel %vm640, %v889, 0
    %v1383 = vsel %vm640, %v965, 0
    %1385 = vmatprep.subr.mxu0 0.0
    %1386 = vmatpush1.msra.mxu0 %v476
    %1387 = vmatprep.subr.mxu0 0.0
    %1388 = vmatpush1.msra.mxu0 0.0
    %1389 = vmatprep.subr.mxu0 0.0
    %1390 = vmatpush1.msra.mxu0 0.0
    %1391 = vmatprep.subr.mxu0 0.0
    %1392 = vmatpush1.msra.mxu0 0.0
    %1393 = vmatprep.subr.mxu0 0.0
    %1394 = vmatpush1.msra.mxu0 0.0
    %1395 = vmatprep.subr.mxu0 0.0
    %1396 = vmatpush1.msra.mxu0 0.0
    %1397 = vmatprep.subr.mxu0 0.0
    %1398 = vmatpush1.msra.mxu0 0.0
    %1399 = vmatprep.subr.mxu0 0.0
    %1400 = vmatpush1.msra.mxu0 0.0
    %1401 = vmatprep.subr.mxu0 0.0
    %1402 = vmatpush1.msra.mxu0 0.0
    %1403 = vmatprep.subr.mxu0 0.0
    %1404 = vmatpush1.msra.mxu0 0.0
    %1405 = vmatprep.subr.mxu0 0.0
    %1406 = vmatpush1.msra.mxu0 0.0
    %1407 = vmatprep.subr.mxu0 0.0
    %1408 = vmatpush1.msra.mxu0 0.0
    %1409 = vmatprep.subr.mxu0 0.0
    %1410 = vmatpush1.msra.mxu0 0.0
    %1411 = vmatprep.subr.mxu0 0.0
    %1412 = vmatpush1.msra.mxu0 0.0
    %1413 = vmatprep.subr.mxu0 0.0
    %1414 = vmatpush1.msra.mxu0 0.0
    %1415 = vmatprep.subr.mxu0 0.0
    %1416 = vmatpush1.msra.mxu0 0.0
    %1417 = vmatprep.subr.mxu0 0.0
    %1418 = vmatpush1.msra.mxu0 0.0
    %1419 = vmatprep.subr.mxu0 0.0
    %1420 = vmatpush1.msra.mxu0 0.0
    %1421 = vmatprep.subr.mxu0 0.0
    %1422 = vmatpush1.msra.mxu0 0.0
    %1423 = vmatprep.subr.mxu0 0.0
    %1424 = vmatpush1.msra.mxu0 0.0
    %1425 = vmatprep.subr.mxu0 0.0
    %1426 = vmatpush1.msra.mxu0 0.0
    %1427 = vmatprep.subr.mxu0 0.0
    %1428 = vmatpush1.msra.mxu0 0.0
    %1429 = vmatprep.subr.mxu0 0.0
    %1430 = vmatpush1.msra.mxu0 0.0
    %1431 = vmatprep.subr.mxu0 0.0
    %1432 = vmatpush1.msra.mxu0 0.0
    %1433 = vmatprep.subr.mxu0 0.0
    %1434 = vmatpush1.msra.mxu0 0.0
    %1435 = vmatprep.subr.mxu0 0.0
    %1436 = vmatpush1.msra.mxu0 0.0
    %1437 = vmatprep.subr.mxu0 0.0
    %1438 = vmatpush1.msra.mxu0 0.0
    %1439 = vmatprep.subr.mxu0 0.0
    %1440 = vmatpush1.msra.mxu0 0.0
    %1441 = vmatprep.subr.mxu0 0.0
    %1442 = vmatpush1.msra.mxu0 0.0
    %1443 = vmatprep.subr.mxu0 0.0
    %1444 = vmatpush1.msra.mxu0 0.0
    %1445 = vmatprep.subr.mxu0 0.0
    %1446 = vmatpush1.msra.mxu0 0.0
    %1447 = vmatprep.subr.mxu0 0.0
    %1448 = vmatpush1.msra.mxu0 0.0
    %1449 = vmatprep.mubr.f32.mxu0 0.0
    %1450 = vmatmul.mubr.f32.gmra.mrb[0].mxu0 %v1380
    %v1451 = vpop.f32.mrb[0].mxu0
    %v1452 = vadd.f32 %v1371, %v1451
    %v1453 = vpop.f32.mrb[0].mxu0
    %1454 = vmatprep.mubr.f32.mxu0 0.0
    %1455 = vmatmul.mubr.f32.gmra.mrb[0].mxu0 %v1383
    %v1456 = vpop.f32.mrb[0].mxu0
    %v1457 = vadd.f32 %v1376, %v1456
    %v1458 = vpop.f32.mrb[0].mxu0
    %1459 = vdwg.mxu0
    %1460 = vrot.lane.b32.xlu0 %v635, 112
    %v1461 = vpop.permute.xlu0 %1460
    %1462 = vrot.lane.b32.xlu0 %v627, 80
    %v1463 = vpop.permute.xlu0 %1462
    %v1464 = vsel %vm640, %v1461, 0
    %v1466 = vsel %vm640, %v1463, 0
    %1468 = vmatprep.subr.mxu0 0.0
    %1469 = vmatpush1.xpose.msra.mxu0 %v1466
    %1470 = vmatprep.subr.mxu0 0.0
    %1471 = vmatpush1.xpose.msra.mxu0 0.0
    %1472 = vmatprep.subr.mxu0 0.0
    %1473 = vmatpush1.xpose.msra.mxu0 0.0
    %1474 = vmatprep.subr.mxu0 0.0
    %1475 = vmatpush1.xpose.msra.mxu0 0.0
    %1476 = vmatprep.subr.mxu0 0.0
    %1477 = vmatpush1.xpose.msra.mxu0 0.0
    %1478 = vmatprep.subr.mxu0 0.0
    %1479 = vmatpush1.xpose.msra.mxu0 0.0
    %1480 = vmatprep.subr.mxu0 0.0
    %1481 = vmatpush1.xpose.msra.mxu0 0.0
    %1482 = vmatprep.subr.mxu0 0.0
    %1483 = vmatpush1.xpose.msra.mxu0 0.0
    %1484 = vmatprep.subr.mxu0 0.0
    %1485 = vmatpush1.xpose.msra.mxu0 0.0
    %1486 = vmatprep.subr.mxu0 0.0
    %1487 = vmatpush1.xpose.msra.mxu0 0.0
    %1488 = vmatprep.subr.mxu0 0.0
    %1489 = vmatpush1.xpose.msra.mxu0 0.0
    %1490 = vmatprep.subr.mxu0 0.0
    %1491 = vmatpush1.xpose.msra.mxu0 0.0
    %1492 = vmatprep.subr.mxu0 0.0
    %1493 = vmatpush1.xpose.msra.mxu0 0.0
    %1494 = vmatprep.subr.mxu0 0.0
    %1495 = vmatpush1.xpose.msra.mxu0 0.0
    %1496 = vmatprep.subr.mxu0 0.0
    %1497 = vmatpush1.xpose.msra.mxu0 0.0
    %1498 = vmatprep.subr.mxu0 0.0
    %1499 = vmatpush1.xpose.msra.mxu0 0.0
    %1500 = vmatprep.subr.mxu0 0.0
    %1501 = vmatpush1.xpose.msra.mxu0 0.0
    %1502 = vmatprep.subr.mxu0 0.0
    %1503 = vmatpush1.xpose.msra.mxu0 0.0
    %1504 = vmatprep.subr.mxu0 0.0
    %1505 = vmatpush1.xpose.msra.mxu0 0.0
    %1506 = vmatprep.subr.mxu0 0.0
    %1507 = vmatpush1.xpose.msra.mxu0 0.0
    %1508 = vmatprep.subr.mxu0 0.0
    %1509 = vmatpush1.xpose.msra.mxu0 0.0
    %1510 = vmatprep.subr.mxu0 0.0
    %1511 = vmatpush1.xpose.msra.mxu0 0.0
    %1512 = vmatprep.subr.mxu0 0.0
    %1513 = vmatpush1.xpose.msra.mxu0 0.0
    %1514 = vmatprep.subr.mxu0 0.0
    %1515 = vmatpush1.xpose.msra.mxu0 0.0
    %1516 = vmatprep.subr.mxu0 0.0
    %1517 = vmatpush1.xpose.msra.mxu0 0.0
    %1518 = vmatprep.subr.mxu0 0.0
    %1519 = vmatpush1.xpose.msra.mxu0 0.0
    %1520 = vmatprep.subr.mxu0 0.0
    %1521 = vmatpush1.xpose.msra.mxu0 0.0
    %1522 = vmatprep.subr.mxu0 0.0
    %1523 = vmatpush1.xpose.msra.mxu0 0.0
    %1524 = vmatprep.subr.mxu0 0.0
    %1525 = vmatpush1.xpose.msra.mxu0 0.0
    %1526 = vmatprep.subr.mxu0 0.0
    %1527 = vmatpush1.xpose.msra.mxu0 0.0
    %1528 = vmatprep.subr.mxu0 0.0
    %1529 = vmatpush1.xpose.msra.mxu0 0.0
    %1530 = vmatprep.subr.mxu0 0.0
    %1531 = vmatpush1.xpose.msra.mxu0 0.0
    %1532 = vmatprep.mubr.f32.mxu0 0.0
    %1533 = vmatmul.mubr.f32.gmra.mrb[0].mxu0 %v1464
    %v1534 = vpop.f32.mrb[0].mxu0
    %v1535 = vadd.f32 %v470, %v1534
    %v1536 = vpop.f32.mrb[0].mxu0
    %1537 = vdwg.mxu0
    %1538 = vrot.lane.b32.xlu0 %v636, 112
    %v1539 = vpop.permute.xlu0 %1538
    %1540 = vrot.lane.b32.xlu0 %v632, 80
    %v1541 = vpop.permute.xlu0 %1540
    %v1542 = vsel %vm640, %v1539, 0
    %v1544 = vsel %vm640, %v1541, 0
    %1546 = vmatprep.subr.mxu0 0.0
    %1547 = vmatpush1.xpose.msra.mxu0 %v1544
    %1548 = vmatprep.subr.mxu0 0.0
    %1549 = vmatpush1.xpose.msra.mxu0 0.0
    %1550 = vmatprep.subr.mxu0 0.0
    %1551 = vmatpush1.xpose.msra.mxu0 0.0
    %1552 = vmatprep.subr.mxu0 0.0
    %1553 = vmatpush1.xpose.msra.mxu0 0.0
    %1554 = vmatprep.subr.mxu0 0.0
    %1555 = vmatpush1.xpose.msra.mxu0 0.0
    %1556 = vmatprep.subr.mxu0 0.0
    %1557 = vmatpush1.xpose.msra.mxu0 0.0
    %1558 = vmatprep.subr.mxu0 0.0
    %1559 = vmatpush1.xpose.msra.mxu0 0.0
    %1560 = vmatprep.subr.mxu0 0.0
    %1561 = vmatpush1.xpose.msra.mxu0 0.0
    %1562 = vmatprep.subr.mxu0 0.0
    %1563 = vmatpush1.xpose.msra.mxu0 0.0
    %1564 = vmatprep.subr.mxu0 0.0
    %1565 = vmatpush1.xpose.msra.mxu0 0.0
    %1566 = vmatprep.subr.mxu0 0.0
    %1567 = vmatpush1.xpose.msra.mxu0 0.0
    %1568 = vmatprep.subr.mxu0 0.0
    %1569 = vmatpush1.xpose.msra.mxu0 0.0
    %1570 = vmatprep.subr.mxu0 0.0
    %1571 = vmatpush1.xpose.msra.mxu0 0.0
    %1572 = vmatprep.subr.mxu0 0.0
    %1573 = vmatpush1.xpose.msra.mxu0 0.0
    %1574 = vmatprep.subr.mxu0 0.0
    %1575 = vmatpush1.xpose.msra.mxu0 0.0
    %1576 = vmatprep.subr.mxu0 0.0
    %1577 = vmatpush1.xpose.msra.mxu0 0.0
    %1578 = vmatprep.subr.mxu0 0.0
    %1579 = vmatpush1.xpose.msra.mxu0 0.0
    %1580 = vmatprep.subr.mxu0 0.0
    %1581 = vmatpush1.xpose.msra.mxu0 0.0
    %1582 = vmatprep.subr.mxu0 0.0
    %1583 = vmatpush1.xpose.msra.mxu0 0.0
    %1584 = vmatprep.subr.mxu0 0.0
    %1585 = vmatpush1.xpose.msra.mxu0 0.0
    %1586 = vmatprep.subr.mxu0 0.0
    %1587 = vmatpush1.xpose.msra.mxu0 0.0
    %1588 = vmatprep.subr.mxu0 0.0
    %1589 = vmatpush1.xpose.msra.mxu0 0.0
    %1590 = vmatprep.subr.mxu0 0.0
    %1591 = vmatpush1.xpose.msra.mxu0 0.0
    %1592 = vmatprep.subr.mxu0 0.0
    %1593 = vmatpush1.xpose.msra.mxu0 0.0
    %1594 = vmatprep.subr.mxu0 0.0
    %1595 = vmatpush1.xpose.msra.mxu0 0.0
    %1596 = vmatprep.subr.mxu0 0.0
    %1597 = vmatpush1.xpose.msra.mxu0 0.0
    %1598 = vmatprep.subr.mxu0 0.0
    %1599 = vmatpush1.xpose.msra.mxu0 0.0
    %1600 = vmatprep.subr.mxu0 0.0
    %1601 = vmatpush1.xpose.msra.mxu0 0.0
    %1602 = vmatprep.subr.mxu0 0.0
    %1603 = vmatpush1.xpose.msra.mxu0 0.0
    %1604 = vmatprep.subr.mxu0 0.0
    %1605 = vmatpush1.xpose.msra.mxu0 0.0
    %1606 = vmatprep.subr.mxu0 0.0
    %1607 = vmatpush1.xpose.msra.mxu0 0.0
    %1608 = vmatprep.subr.mxu0 0.0
    %1609 = vmatpush1.xpose.msra.mxu0 0.0
    %1610 = vmatprep.mubr.f32.mxu0 0.0
    %1611 = vmatmul.mubr.f32.gmra.mrb[0].mxu0 %v1542
    %v1612 = vpop.f32.mrb[0].mxu0
    %v1613 = vadd.f32 %v470, %v1612
    %v1614 = vpop.f32.mrb[0].mxu0
    %1615 = vdwg.mxu0
    %v1616 = vsel %vm640, %v1535, -inf
    %1617 = vmax.xlane.f32.xlu0 %v1616
    %v1618 = vpop.xlane.xlu0 %1617
    %v1619 = vsel %vm640, %v1613, -inf
    %1620 = vmax.xlane.f32.xlu0 %v1619
    %v1621 = vpop.xlane.xlu0 %1620
    %v1622 = vsub.f32 %v1535, %v1618
    %v1623 = vsub.f32 %v1613, %v1621
    %v1624 = vmul.f32 %v1622, 1.442695
    %v1625 = vpow.pop %v1624
    %v1626 = vmul.f32 %v1623, 1.442695
    %v1627 = vpow.pop %v1626
    %v1628 = vsel %vm640, %v1625, 0.0
    %1629 = vadd.xlane.f32.xlu0 %v1628
    %v1630 = vpop.xlane.xlu0 %1629
    %v1631 = vsel %vm640, %v1627, 0.0
    %1632 = vadd.xlane.f32.xlu0 %v1631
    %v1633 = vpop.xlane.xlu0 %1632
    %v1634 = vrcp.pop %v1630
    %v1635 = vmul.f32 %v1625, %v1634
    %v1636 = vrcp.pop %v1633
    %v1637 = vmul.f32 %v1627, %v1636
    %1638 = vrot.lane.b32.xlu0 %v627, 48
    %v1639 = vpop.permute.xlu0 %1638
    %v1642 = vsel %vm640, %v1635, 0
    %1644 = vmatprep.subr.mxu0 0.0
    %1645 = vmatpush1.msra.mxu0 %v1639
    %1646 = vmatprep.subr.mxu0 0.0
    %1647 = vmatpush1.msra.mxu0 0.0
    %1648 = vmatprep.subr.mxu0 0.0
    %1649 = vmatpush1.msra.mxu0 0.0
    %1650 = vmatprep.subr.mxu0 0.0
    %1651 = vmatpush1.msra.mxu0 0.0
    %1652 = vmatprep.subr.mxu0 0.0
    %1653 = vmatpush1.msra.mxu0 0.0
    %1654 = vmatprep.subr.mxu0 0.0
    %1655 = vmatpush1.msra.mxu0 0.0
    %1656 = vmatprep.subr.mxu0 0.0
    %1657 = vmatpush1.msra.mxu0 0.0
    %1658 = vmatprep.subr.mxu0 0.0
    %1659 = vmatpush1.msra.mxu0 0.0
    %1660 = vmatprep.subr.mxu0 0.0
    %1661 = vmatpush1.msra.mxu0 0.0
    %1662 = vmatprep.subr.mxu0 0.0
    %1663 = vmatpush1.msra.mxu0 0.0
    %1664 = vmatprep.subr.mxu0 0.0
    %1665 = vmatpush1.msra.mxu0 0.0
    %1666 = vmatprep.subr.mxu0 0.0
    %1667 = vmatpush1.msra.mxu0 0.0
    %1668 = vmatprep.subr.mxu0 0.0
    %1669 = vmatpush1.msra.mxu0 0.0
    %1670 = vmatprep.subr.mxu0 0.0
    %1671 = vmatpush1.msra.mxu0 0.0
    %1672 = vmatprep.subr.mxu0 0.0
    %1673 = vmatpush1.msra.mxu0 0.0
    %1674 = vmatprep.subr.mxu0 0.0
    %1675 = vmatpush1.msra.mxu0 0.0
    %1676 = vmatprep.subr.mxu0 0.0
    %1677 = vmatpush1.msra.mxu0 0.0
    %1678 = vmatprep.subr.mxu0 0.0
    %1679 = vmatpush1.msra.mxu0 0.0
    %1680 = vmatprep.subr.mxu0 0.0
    %1681 = vmatpush1.msra.mxu0 0.0
    %1682 = vmatprep.subr.mxu0 0.0
    %1683 = vmatpush1.msra.mxu0 0.0
    %1684 = vmatprep.subr.mxu0 0.0
    %1685 = vmatpush1.msra.mxu0 0.0
    %1686 = vmatprep.subr.mxu0 0.0
    %1687 = vmatpush1.msra.mxu0 0.0
    %1688 = vmatprep.subr.mxu0 0.0
    %1689 = vmatpush1.msra.mxu0 0.0
    %1690 = vmatprep.subr.mxu0 0.0
    %1691 = vmatpush1.msra.mxu0 0.0
    %1692 = vmatprep.subr.mxu0 0.0
    %1693 = vmatpush1.msra.mxu0 0.0
    %1694 = vmatprep.subr.mxu0 0.0
    %1695 = vmatpush1.msra.mxu0 0.0
    %1696 = vmatprep.subr.mxu0 0.0
    %1697 = vmatpush1.msra.mxu0 0.0
    %1698 = vmatprep.subr.mxu0 0.0
    %1699 = vmatpush1.msra.mxu0 0.0
    %1700 = vmatprep.subr.mxu0 0.0
    %1701 = vmatpush1.msra.mxu0 0.0
    %1702 = vmatprep.subr.mxu0 0.0
    %1703 = vmatpush1.msra.mxu0 0.0
    %1704 = vmatprep.subr.mxu0 0.0
    %1705 = vmatpush1.msra.mxu0 0.0
    %1706 = vmatprep.subr.mxu0 0.0
    %1707 = vmatpush1.msra.mxu0 0.0
    %1708 = vmatprep.mubr.f32.mxu0 0.0
    %1709 = vmatmul.mubr.f32.gmra.mrb[0].mxu0 %v1642
    %v1710 = vpop.f32.mrb[0].mxu0
    %v1711 = vadd.f32 0.0, %v1710
    %v1712 = vpop.f32.mrb[0].mxu0
    %1713 = vdwg.mxu0
    %1714 = vrot.lane.b32.xlu0 %v632, 48
    %v1715 = vpop.permute.xlu0 %1714
    %v1718 = vsel %vm640, %v1637, 0
    %1720 = vmatprep.subr.mxu0 0.0
    %1721 = vmatpush1.msra.mxu0 %v1715
    %1722 = vmatprep.subr.mxu0 0.0
    %1723 = vmatpush1.msra.mxu0 0.0
    %1724 = vmatprep.subr.mxu0 0.0
    %1725 = vmatpush1.msra.mxu0 0.0
    %1726 = vmatprep.subr.mxu0 0.0
    %1727 = vmatpush1.msra.mxu0 0.0
    %1728 = vmatprep.subr.mxu0 0.0
    %1729 = vmatpush1.msra.mxu0 0.0
    %1730 = vmatprep.subr.mxu0 0.0
    %1731 = vmatpush1.msra.mxu0 0.0
    %1732 = vmatprep.subr.mxu0 0.0
    %1733 = vmatpush1.msra.mxu0 0.0
    %1734 = vmatprep.subr.mxu0 0.0
    %1735 = vmatpush1.msra.mxu0 0.0
    %1736 = vmatprep.subr.mxu0 0.0
    %1737 = vmatpush1.msra.mxu0 0.0
    %1738 = vmatprep.subr.mxu0 0.0
    %1739 = vmatpush1.msra.mxu0 0.0
    %1740 = vmatprep.subr.mxu0 0.0
    %1741 = vmatpush1.msra.mxu0 0.0
    %1742 = vmatprep.subr.mxu0 0.0
    %1743 = vmatpush1.msra.mxu0 0.0
    %1744 = vmatprep.subr.mxu0 0.0
    %1745 = vmatpush1.msra.mxu0 0.0
    %1746 = vmatprep.subr.mxu0 0.0
    %1747 = vmatpush1.msra.mxu0 0.0
    %1748 = vmatprep.subr.mxu0 0.0
    %1749 = vmatpush1.msra.mxu0 0.0
    %1750 = vmatprep.subr.mxu0 0.0
    %1751 = vmatpush1.msra.mxu0 0.0
    %1752 = vmatprep.subr.mxu0 0.0
    %1753 = vmatpush1.msra.mxu0 0.0
    %1754 = vmatprep.subr.mxu0 0.0
    %1755 = vmatpush1.msra.mxu0 0.0
    %1756 = vmatprep.subr.mxu0 0.0
    %1757 = vmatpush1.msra.mxu0 0.0
    %1758 = vmatprep.subr.mxu0 0.0
    %1759 = vmatpush1.msra.mxu0 0.0
    %1760 = vmatprep.subr.mxu0 0.0
    %1761 = vmatpush1.msra.mxu0 0.0
    %1762 = vmatprep.subr.mxu0 0.0
    %1763 = vmatpush1.msra.mxu0 0.0
    %1764 = vmatprep.subr.mxu0 0.0
    %1765 = vmatpush1.msra.mxu0 0.0
    %1766 = vmatprep.subr.mxu0 0.0
    %1767 = vmatpush1.msra.mxu0 0.0
    %1768 = vmatprep.subr.mxu0 0.0
    %1769 = vmatpush1.msra.mxu0 0.0
    %1770 = vmatprep.subr.mxu0 0.0
    %1771 = vmatpush1.msra.mxu0 0.0
    %1772 = vmatprep.subr.mxu0 0.0
    %1773 = vmatpush1.msra.mxu0 0.0
    %1774 = vmatprep.subr.mxu0 0.0
    %1775 = vmatpush1.msra.mxu0 0.0
    %1776 = vmatprep.subr.mxu0 0.0
    %1777 = vmatpush1.msra.mxu0 0.0
    %1778 = vmatprep.subr.mxu0 0.0
    %1779 = vmatpush1.msra.mxu0 0.0
    %1780 = vmatprep.subr.mxu0 0.0
    %1781 = vmatpush1.msra.mxu0 0.0
    %1782 = vmatprep.subr.mxu0 0.0
    %1783 = vmatpush1.msra.mxu0 0.0
    %1784 = vmatprep.mubr.f32.mxu0 0.0
    %1785 = vmatmul.mubr.f32.gmra.mrb[0].mxu0 %v1718
    %v1786 = vpop.f32.mrb[0].mxu0
    %v1787 = vadd.f32 0.0, %v1786
    %v1788 = vpop.f32.mrb[0].mxu0
    %1789 = vdwg.mxu0
    %v1791 = vsel %vm640, %v1711, 0
    %v1794 = vsel %vm640, %v1787, 0
    %1796 = vmatprep.subr.mxu0 0.0
    %1797 = vmatpush1.msra.mxu0 %v478
    %1798 = vmatprep.subr.mxu0 0.0
    %1799 = vmatpush1.msra.mxu0 0.0
    %1800 = vmatprep.subr.mxu0 0.0
    %1801 = vmatpush1.msra.mxu0 0.0
    %1802 = vmatprep.subr.mxu0 0.0
    %1803 = vmatpush1.msra.mxu0 0.0
    %1804 = vmatprep.subr.mxu0 0.0
    %1805 = vmatpush1.msra.mxu0 0.0
    %1806 = vmatprep.subr.mxu0 0.0
    %1807 = vmatpush1.msra.mxu0 0.0
    %1808 = vmatprep.subr.mxu0 0.0
    %1809 = vmatpush1.msra.mxu0 0.0
    %1810 = vmatprep.subr.mxu0 0.0
    %1811 = vmatpush1.msra.mxu0 0.0
    %1812 = vmatprep.subr.mxu0 0.0
    %1813 = vmatpush1.msra.mxu0 0.0
    %1814 = vmatprep.subr.mxu0 0.0
    %1815 = vmatpush1.msra.mxu0 0.0
    %1816 = vmatprep.subr.mxu0 0.0
    %1817 = vmatpush1.msra.mxu0 0.0
    %1818 = vmatprep.subr.mxu0 0.0
    %1819 = vmatpush1.msra.mxu0 0.0
    %1820 = vmatprep.subr.mxu0 0.0
    %1821 = vmatpush1.msra.mxu0 0.0
    %1822 = vmatprep.subr.mxu0 0.0
    %1823 = vmatpush1.msra.mxu0 0.0
    %1824 = vmatprep.subr.mxu0 0.0
    %1825 = vmatpush1.msra.mxu0 0.0
    %1826 = vmatprep.subr.mxu0 0.0
    %1827 = vmatpush1.msra.mxu0 0.0
    %1828 = vmatprep.subr.mxu0 0.0
    %1829 = vmatpush1.msra.mxu0 0.0
    %1830 = vmatprep.subr.mxu0 0.0
    %1831 = vmatpush1.msra.mxu0 0.0
    %1832 = vmatprep.subr.mxu0 0.0
    %1833 = vmatpush1.msra.mxu0 0.0
    %1834 = vmatprep.subr.mxu0 0.0
    %1835 = vmatpush1.msra.mxu0 0.0
    %1836 = vmatprep.subr.mxu0 0.0
    %1837 = vmatpush1.msra.mxu0 0.0
    %1838 = vmatprep.subr.mxu0 0.0
    %1839 = vmatpush1.msra.mxu0 0.0
    %1840 = vmatprep.subr.mxu0 0.0
    %1841 = vmatpush1.msra.mxu0 0.0
    %1842 = vmatprep.subr.mxu0 0.0
    %1843 = vmatpush1.msra.mxu0 0.0
    %1844 = vmatprep.subr.mxu0 0.0
    %1845 = vmatpush1.msra.mxu0 0.0
    %1846 = vmatprep.subr.mxu0 0.0
    %1847 = vmatpush1.msra.mxu0 0.0
    %1848 = vmatprep.subr.mxu0 0.0
    %1849 = vmatpush1.msra.mxu0 0.0
    %1850 = vmatprep.subr.mxu0 0.0
    %1851 = vmatpush1.msra.mxu0 0.0
    %1852 = vmatprep.subr.mxu0 0.0
    %1853 = vmatpush1.msra.mxu0 0.0
    %1854 = vmatprep.subr.mxu0 0.0
    %1855 = vmatpush1.msra.mxu0 0.0
    %1856 = vmatprep.subr.mxu0 0.0
    %1857 = vmatpush1.msra.mxu0 0.0
    %1858 = vmatprep.subr.mxu0 0.0
    %1859 = vmatpush1.msra.mxu0 0.0
    %1860 = vmatprep.mubr.f32.mxu0 0.0
    %1861 = vmatmul.mubr.f32.gmra.mrb[0].mxu0 %v1791
    %v1862 = vpop.f32.mrb[0].mxu0
    %v1863 = vadd.f32 0.0, %v1862
    %v1864 = vpop.f32.mrb[0].mxu0
    %1865 = vmatprep.mubr.f32.mxu0 0.0
    %1866 = vmatmul.mubr.f32.gmra.mrb[0].mxu0 %v1794
    %v1867 = vpop.f32.mrb[0].mxu0
    %v1868 = vadd.f32 0.0, %v1867
    %v1869 = vpop.f32.mrb[0].mxu0
    %1870 = vdwg.mxu0
    %v1871 = vadd.f32 %v1452, %v1863
    %v1872 = vadd.f32 %v1457, %v1868
    %1873 = vrot.lane.b32.xlu0 %v635, 104
    %v1874 = vpop.permute.xlu0 %1873
    %1875 = vrot.lane.b32.xlu0 %v627, 72
    %v1876 = vpop.permute.xlu0 %1875
    %v1877 = vsel %vm640, %v1874, 0
    %v1879 = vsel %vm640, %v1876, 0
    %1881 = vmatprep.subr.mxu0 0.0
    %1882 = vmatpush1.xpose.msra.mxu0 %v1879
    %1883 = vmatprep.subr.mxu0 0.0
    %1884 = vmatpush1.xpose.msra.mxu0 0.0
    %1885 = vmatprep.subr.mxu0 0.0
    %1886 = vmatpush1.xpose.msra.mxu0 0.0
    %1887 = vmatprep.subr.mxu0 0.0
    %1888 = vmatpush1.xpose.msra.mxu0 0.0
    %1889 = vmatprep.subr.mxu0 0.0
    %1890 = vmatpush1.xpose.msra.mxu0 0.0
    %1891 = vmatprep.subr.mxu0 0.0
    %1892 = vmatpush1.xpose.msra.mxu0 0.0
    %1893 = vmatprep.subr.mxu0 0.0
    %1894 = vmatpush1.xpose.msra.mxu0 0.0
    %1895 = vmatprep.subr.mxu0 0.0
    %1896 = vmatpush1.xpose.msra.mxu0 0.0
    %1897 = vmatprep.subr.mxu0 0.0
    %1898 = vmatpush1.xpose.msra.mxu0 0.0
    %1899 = vmatprep.subr.mxu0 0.0
    %1900 = vmatpush1.xpose.msra.mxu0 0.0
    %1901 = vmatprep.subr.mxu0 0.0
    %1902 = vmatpush1.xpose.msra.mxu0 0.0
    %1903 = vmatprep.subr.mxu0 0.0
    %1904 = vmatpush1.xpose.msra.mxu0 0.0
    %1905 = vmatprep.subr.mxu0 0.0
    %1906 = vmatpush1.xpose.msra.mxu0 0.0
    %1907 = vmatprep.subr.mxu0 0.0
    %1908 = vmatpush1.xpose.msra.mxu0 0.0
    %1909 = vmatprep.subr.mxu0 0.0
    %1910 = vmatpush1.xpose.msra.mxu0 0.0
    %1911 = vmatprep.subr.mxu0 0.0
    %1912 = vmatpush1.xpose.msra.mxu0 0.0
    %1913 = vmatprep.subr.mxu0 0.0
    %1914 = vmatpush1.xpose.msra.mxu0 0.0
    %1915 = vmatprep.subr.mxu0 0.0
    %1916 = vmatpush1.xpose.msra.mxu0 0.0
    %1917 = vmatprep.subr.mxu0 0.0
    %1918 = vmatpush1.xpose.msra.mxu0 0.0
    %1919 = vmatprep.subr.mxu0 0.0
    %1920 = vmatpush1.xpose.msra.mxu0 0.0
    %1921 = vmatprep.subr.mxu0 0.0
    %1922 = vmatpush1.xpose.msra.mxu0 0.0
    %1923 = vmatprep.subr.mxu0 0.0
    %1924 = vmatpush1.xpose.msra.mxu0 0.0
    %1925 = vmatprep.subr.mxu0 0.0
    %1926 = vmatpush1.xpose.msra.mxu0 0.0
    %1927 = vmatprep.subr.mxu0 0.0
    %1928 = vmatpush1.xpose.msra.mxu0 0.0
    %1929 = vmatprep.subr.mxu0 0.0
    %1930 = vmatpush1.xpose.msra.mxu0 0.0
    %1931 = vmatprep.subr.mxu0 0.0
    %1932 = vmatpush1.xpose.msra.mxu0 0.0
    %1933 = vmatprep.subr.mxu0 0.0
    %1934 = vmatpush1.xpose.msra.mxu0 0.0
    %1935 = vmatprep.subr.mxu0 0.0
    %1936 = vmatpush1.xpose.msra.mxu0 0.0
    %1937 = vmatprep.subr.mxu0 0.0
    %1938 = vmatpush1.xpose.msra.mxu0 0.0
    %1939 = vmatprep.subr.mxu0 0.0
    %1940 = vmatpush1.xpose.msra.mxu0 0.0
    %1941 = vmatprep.subr.mxu0 0.0
    %1942 = vmatpush1.xpose.msra.mxu0 0.0
    %1943 = vmatprep.subr.mxu0 0.0
    %1944 = vmatpush1.xpose.msra.mxu0 0.0
    %1945 = vmatprep.mubr.f32.mxu0 0.0
    %1946 = vmatmul.mubr.f32.gmra.mrb[0].mxu0 %v1877
    %v1947 = vpop.f32.mrb[0].mxu0
    %v1948 = vadd.f32 %v470, %v1947
    %v1949 = vpop.f32.mrb[0].mxu0
    %1950 = vdwg.mxu0
    %1951 = vrot.lane.b32.xlu0 %v636, 104
    %v1952 = vpop.permute.xlu0 %1951
    %1953 = vrot.lane.b32.xlu0 %v632, 72
    %v1954 = vpop.permute.xlu0 %1953
    %v1955 = vsel %vm640, %v1952, 0
    %v1957 = vsel %vm640, %v1954, 0
    %1959 = vmatprep.subr.mxu0 0.0
    %1960 = vmatpush1.xpose.msra.mxu0 %v1957
    %1961 = vmatprep.subr.mxu0 0.0
    %1962 = vmatpush1.xpose.msra.mxu0 0.0
    %1963 = vmatprep.subr.mxu0 0.0
    %1964 = vmatpush1.xpose.msra.mxu0 0.0
    %1965 = vmatprep.subr.mxu0 0.0
    %1966 = vmatpush1.xpose.msra.mxu0 0.0
    %1967 = vmatprep.subr.mxu0 0.0
    %1968 = vmatpush1.xpose.msra.mxu0 0.0
    %1969 = vmatprep.subr.mxu0 0.0
    %1970 = vmatpush1.xpose.msra.mxu0 0.0
    %1971 = vmatprep.subr.mxu0 0.0
    %1972 = vmatpush1.xpose.msra.mxu0 0.0
    %1973 = vmatprep.subr.mxu0 0.0
    %1974 = vmatpush1.xpose.msra.mxu0 0.0
    %1975 = vmatprep.subr.mxu0 0.0
    %1976 = vmatpush1.xpose.msra.mxu0 0.0
    %1977 = vmatprep.subr.mxu0 0.0
    %1978 = vmatpush1.xpose.msra.mxu0 0.0
    %1979 = vmatprep.subr.mxu0 0.0
    %1980 = vmatpush1.xpose.msra.mxu0 0.0
    %1981 = vmatprep.subr.mxu0 0.0
    %1982 = vmatpush1.xpose.msra.mxu0 0.0
    %1983 = vmatprep.subr.mxu0 0.0
    %1984 = vmatpush1.xpose.msra.mxu0 0.0
    %1985 = vmatprep.subr.mxu0 0.0
    %1986 = vmatpush1.xpose.msra.mxu0 0.0
    %1987 = vmatprep.subr.mxu0 0.0
    %1988 = vmatpush1.xpose.msra.mxu0 0.0
    %1989 = vmatprep.subr.mxu0 0.0
    %1990 = vmatpush1.xpose.msra.mxu0 0.0
    %1991 = vmatprep.subr.mxu0 0.0
    %1992 = vmatpush1.xpose.msra.mxu0 0.0
    %1993 = vmatprep.subr.mxu0 0.0
    %1994 = vmatpush1.xpose.msra.mxu0 0.0
    %1995 = vmatprep.subr.mxu0 0.0
    %1996 = vmatpush1.xpose.msra.mxu0 0.0
    %1997 = vmatprep.subr.mxu0 0.0
    %1998 = vmatpush1.xpose.msra.mxu0 0.0
    %1999 = vmatprep.subr.mxu0 0.0
    %2000 = vmatpush1.xpose.msra.mxu0 0.0
    %2001 = vmatprep.subr.mxu0 0.0
    %2002 = vmatpush1.xpose.msra.mxu0 0.0
    %2003 = vmatprep.subr.mxu0 0.0
    %2004 = vmatpush1.xpose.msra.mxu0 0.0
    %2005 = vmatprep.subr.mxu0 0.0
    %2006 = vmatpush1.xpose.msra.mxu0 0.0
    %2007 = vmatprep.subr.mxu0 0.0
    %2008 = vmatpush1.xpose.msra.mxu0 0.0
    %2009 = vmatprep.subr.mxu0 0.0
    %2010 = vmatpush1.xpose.msra.mxu0 0.0
    %2011 = vmatprep.subr.mxu0 0.0
    %2012 = vmatpush1.xpose.msra.mxu0 0.0
    %2013 = vmatprep.subr.mxu0 0.0
    %2014 = vmatpush1.xpose.msra.mxu0 0.0
    %2015 = vmatprep.subr.mxu0 0.0
    %2016 = vmatpush1.xpose.msra.mxu0 0.0
    %2017 = vmatprep.subr.mxu0 0.0
    %2018 = vmatpush1.xpose.msra.mxu0 0.0
    %2019 = vmatprep.subr.mxu0 0.0
    %2020 = vmatpush1.xpose.msra.mxu0 0.0
    %2021 = vmatprep.subr.mxu0 0.0
    %2022 = vmatpush1.xpose.msra.mxu0 0.0
    %2023 = vmatprep.mubr.f32.mxu0 0.0
    %2024 = vmatmul.mubr.f32.gmra.mrb[0].mxu0 %v1955
    %v2025 = vpop.f32.mrb[0].mxu0
    %v2026 = vadd.f32 %v470, %v2025
    %v2027 = vpop.f32.mrb[0].mxu0
    %2028 = vdwg.mxu0
    %v2029 = vsel %vm640, %v1948, -inf
    %2030 = vmax.xlane.f32.xlu0 %v2029
    %v2031 = vpop.xlane.xlu0 %2030
    %v2032 = vsel %vm640, %v2026, -inf
    %2033 = vmax.xlane.f32.xlu0 %v2032
    %v2034 = vpop.xlane.xlu0 %2033
    %v2035 = vsub.f32 %v1948, %v2031
    %v2036 = vsub.f32 %v2026, %v2034
    %v2037 = vmul.f32 %v2035, 1.442695
    %v2038 = vpow.pop %v2037
    %v2039 = vmul.f32 %v2036, 1.442695
    %v2040 = vpow.pop %v2039
    %v2041 = vsel %vm640, %v2038, 0.0
    %2042 = vadd.xlane.f32.xlu0 %v2041
    %v2043 = vpop.xlane.xlu0 %2042
    %v2044 = vsel %vm640, %v2040, 0.0
    %2045 = vadd.xlane.f32.xlu0 %v2044
    %v2046 = vpop.xlane.xlu0 %2045
    %v2047 = vrcp.pop %v2043
    %v2048 = vmul.f32 %v2038, %v2047
    %v2049 = vrcp.pop %v2046
    %v2050 = vmul.f32 %v2040, %v2049
    %2051 = vrot.lane.b32.xlu0 %v627, 40
    %v2052 = vpop.permute.xlu0 %2051
    %v2055 = vsel %vm640, %v2048, 0
    %2057 = vmatprep.subr.mxu0 0.0
    %2058 = vmatpush1.msra.mxu0 %v2052
    %2059 = vmatprep.subr.mxu0 0.0
    %2060 = vmatpush1.msra.mxu0 0.0
    %2061 = vmatprep.subr.mxu0 0.0
    %2062 = vmatpush1.msra.mxu0 0.0
    %2063 = vmatprep.subr.mxu0 0.0
    %2064 = vmatpush1.msra.mxu0 0.0
    %2065 = vmatprep.subr.mxu0 0.0
    %2066 = vmatpush1.msra.mxu0 0.0
    %2067 = vmatprep.subr.mxu0 0.0
    %2068 = vmatpush1.msra.mxu0 0.0
    %2069 = vmatprep.subr.mxu0 0.0
    %2070 = vmatpush1.msra.mxu0 0.0
    %2071 = vmatprep.subr.mxu0 0.0
    %2072 = vmatpush1.msra.mxu0 0.0
    %2073 = vmatprep.subr.mxu0 0.0
    %2074 = vmatpush1.msra.mxu0 0.0
    %2075 = vmatprep.subr.mxu0 0.0
    %2076 = vmatpush1.msra.mxu0 0.0
    %2077 = vmatprep.subr.mxu0 0.0
    %2078 = vmatpush1.msra.mxu0 0.0
    %2079 = vmatprep.subr.mxu0 0.0
    %2080 = vmatpush1.msra.mxu0 0.0
    %2081 = vmatprep.subr.mxu0 0.0
    %2082 = vmatpush1.msra.mxu0 0.0
    %2083 = vmatprep.subr.mxu0 0.0
    %2084 = vmatpush1.msra.mxu0 0.0
    %2085 = vmatprep.subr.mxu0 0.0
    %2086 = vmatpush1.msra.mxu0 0.0
    %2087 = vmatprep.subr.mxu0 0.0
    %2088 = vmatpush1.msra.mxu0 0.0
    %2089 = vmatprep.subr.mxu0 0.0
    %2090 = vmatpush1.msra.mxu0 0.0
    %2091 = vmatprep.subr.mxu0 0.0
    %2092 = vmatpush1.msra.mxu0 0.0
    %2093 = vmatprep.subr.mxu0 0.0
    %2094 = vmatpush1.msra.mxu0 0.0
    %2095 = vmatprep.subr.mxu0 0.0
    %2096 = vmatpush1.msra.mxu0 0.0
    %2097 = vmatprep.subr.mxu0 0.0
    %2098 = vmatpush1.msra.mxu0 0.0
    %2099 = vmatprep.subr.mxu0 0.0
    %2100 = vmatpush1.msra.mxu0 0.0
    %2101 = vmatprep.subr.mxu0 0.0
    %2102 = vmatpush1.msra.mxu0 0.0
    %2103 = vmatprep.subr.mxu0 0.0
    %2104 = vmatpush1.msra.mxu0 0.0
    %2105 = vmatprep.subr.mxu0 0.0
    %2106 = vmatpush1.msra.mxu0 0.0
    %2107 = vmatprep.subr.mxu0 0.0
    %2108 = vmatpush1.msra.mxu0 0.0
    %2109 = vmatprep.subr.mxu0 0.0
    %2110 = vmatpush1.msra.mxu0 0.0
    %2111 = vmatprep.subr.mxu0 0.0
    %2112 = vmatpush1.msra.mxu0 0.0
    %2113 = vmatprep.subr.mxu0 0.0
    %2114 = vmatpush1.msra.mxu0 0.0
    %2115 = vmatprep.subr.mxu0 0.0
    %2116 = vmatpush1.msra.mxu0 0.0
    %2117 = vmatprep.subr.mxu0 0.0
    %2118 = vmatpush1.msra.mxu0 0.0
    %2119 = vmatprep.subr.mxu0 0.0
    %2120 = vmatpush1.msra.mxu0 0.0
    %2121 = vmatprep.mubr.f32.mxu0 0.0
    %2122 = vmatmul.mubr.f32.gmra.mrb[0].mxu0 %v2055
    %v2123 = vpop.f32.mrb[0].mxu0
    %v2124 = vadd.f32 0.0, %v2123
    %v2125 = vpop.f32.mrb[0].mxu0
    %2126 = vdwg.mxu0
    %2127 = vrot.lane.b32.xlu0 %v632, 40
    %v2128 = vpop.permute.xlu0 %2127
    %v2131 = vsel %vm640, %v2050, 0
    %2133 = vmatprep.subr.mxu0 0.0
    %2134 = vmatpush1.msra.mxu0 %v2128
    %2135 = vmatprep.subr.mxu0 0.0
    %2136 = vmatpush1.msra.mxu0 0.0
    %2137 = vmatprep.subr.mxu0 0.0
    %2138 = vmatpush1.msra.mxu0 0.0
    %2139 = vmatprep.subr.mxu0 0.0
    %2140 = vmatpush1.msra.mxu0 0.0
    %2141 = vmatprep.subr.mxu0 0.0
    %2142 = vmatpush1.msra.mxu0 0.0
    %2143 = vmatprep.subr.mxu0 0.0
    %2144 = vmatpush1.msra.mxu0 0.0
    %2145 = vmatprep.subr.mxu0 0.0
    %2146 = vmatpush1.msra.mxu0 0.0
    %2147 = vmatprep.subr.mxu0 0.0
    %2148 = vmatpush1.msra.mxu0 0.0
    %2149 = vmatprep.subr.mxu0 0.0
    %2150 = vmatpush1.msra.mxu0 0.0
    %2151 = vmatprep.subr.mxu0 0.0
    %2152 = vmatpush1.msra.mxu0 0.0
    %2153 = vmatprep.subr.mxu0 0.0
    %2154 = vmatpush1.msra.mxu0 0.0
    %2155 = vmatprep.subr.mxu0 0.0
    %2156 = vmatpush1.msra.mxu0 0.0
    %2157 = vmatprep.subr.mxu0 0.0
    %2158 = vmatpush1.msra.mxu0 0.0
    %2159 = vmatprep.subr.mxu0 0.0
    %2160 = vmatpush1.msra.mxu0 0.0
    %2161 = vmatprep.subr.mxu0 0.0
    %2162 = vmatpush1.msra.mxu0 0.0
    %2163 = vmatprep.subr.mxu0 0.0
    %2164 = vmatpush1.msra.mxu0 0.0
    %2165 = vmatprep.subr.mxu0 0.0
    %2166 = vmatpush1.msra.mxu0 0.0
    %2167 = vmatprep.subr.mxu0 0.0
    %2168 = vmatpush1.msra.mxu0 0.0
    %2169 = vmatprep.subr.mxu0 0.0
    %2170 = vmatpush1.msra.mxu0 0.0
    %2171 = vmatprep.subr.mxu0 0.0
    %2172 = vmatpush1.msra.mxu0 0.0
    %2173 = vmatprep.subr.mxu0 0.0
    %2174 = vmatpush1.msra.mxu0 0.0
    %2175 = vmatprep.subr.mxu0 0.0
    %2176 = vmatpush1.msra.mxu0 0.0
    %2177 = vmatprep.subr.mxu0 0.0
    %2178 = vmatpush1.msra.mxu0 0.0
    %2179 = vmatprep.subr.mxu0 0.0
    %2180 = vmatpush1.msra.mxu0 0.0
    %2181 = vmatprep.subr.mxu0 0.0
    %2182 = vmatpush1.msra.mxu0 0.0
    %2183 = vmatprep.subr.mxu0 0.0
    %2184 = vmatpush1.msra.mxu0 0.0
    %2185 = vmatprep.subr.mxu0 0.0
    %2186 = vmatpush1.msra.mxu0 0.0
    %2187 = vmatprep.subr.mxu0 0.0
    %2188 = vmatpush1.msra.mxu0 0.0
    %2189 = vmatprep.subr.mxu0 0.0
    %2190 = vmatpush1.msra.mxu0 0.0
    %2191 = vmatprep.subr.mxu0 0.0
    %2192 = vmatpush1.msra.mxu0 0.0
    %2193 = vmatprep.subr.mxu0 0.0
    %2194 = vmatpush1.msra.mxu0 0.0
    %2195 = vmatprep.subr.mxu0 0.0
    %2196 = vmatpush1.msra.mxu0 0.0
    %2197 = vmatprep.mubr.f32.mxu0 0.0
    %2198 = vmatmul.mubr.f32.gmra.mrb[0].mxu0 %v2131
    %v2199 = vpop.f32.mrb[0].mxu0
    %v2200 = vadd.f32 0.0, %v2199
    %v2201 = vpop.f32.mrb[0].mxu0
    %2202 = vdwg.mxu0
    %v2204 = vsel %vm640, %v2124, 0
    %v2207 = vsel %vm640, %v2200, 0
    %2209 = vmatprep.subr.mxu0 0.0
    %2210 = vmatpush1.msra.mxu0 %v479
    %2211 = vmatprep.subr.mxu0 0.0
    %2212 = vmatpush1.msra.mxu0 0.0
    %2213 = vmatprep.subr.mxu0 0.0
    %2214 = vmatpush1.msra.mxu0 0.0
    %2215 = vmatprep.subr.mxu0 0.0
    %2216 = vmatpush1.msra.mxu0 0.0
    %2217 = vmatprep.subr.mxu0 0.0
    %2218 = vmatpush1.msra.mxu0 0.0
    %2219 = vmatprep.subr.mxu0 0.0
    %2220 = vmatpush1.msra.mxu0 0.0
    %2221 = vmatprep.subr.mxu0 0.0
    %2222 = vmatpush1.msra.mxu0 0.0
    %2223 = vmatprep.subr.mxu0 0.0
    %2224 = vmatpush1.msra.mxu0 0.0
    %2225 = vmatprep.subr.mxu0 0.0
    %2226 = vmatpush1.msra.mxu0 0.0
    %2227 = vmatprep.subr.mxu0 0.0
    %2228 = vmatpush1.msra.mxu0 0.0
    %2229 = vmatprep.subr.mxu0 0.0
    %2230 = vmatpush1.msra.mxu0 0.0
    %2231 = vmatprep.subr.mxu0 0.0
    %2232 = vmatpush1.msra.mxu0 0.0
    %2233 = vmatprep.subr.mxu0 0.0
    %2234 = vmatpush1.msra.mxu0 0.0
    %2235 = vmatprep.subr.mxu0 0.0
    %2236 = vmatpush1.msra.mxu0 0.0
    %2237 = vmatprep.subr.mxu0 0.0
    %2238 = vmatpush1.msra.mxu0 0.0
    %2239 = vmatprep.subr.mxu0 0.0
    %2240 = vmatpush1.msra.mxu0 0.0
    %2241 = vmatprep.subr.mxu0 0.0
    %2242 = vmatpush1.msra.mxu0 0.0
    %2243 = vmatprep.subr.mxu0 0.0
    %2244 = vmatpush1.msra.mxu0 0.0
    %2245 = vmatprep.subr.mxu0 0.0
    %2246 = vmatpush1.msra.mxu0 0.0
    %2247 = vmatprep.subr.mxu0 0.0
    %2248 = vmatpush1.msra.mxu0 0.0
    %2249 = vmatprep.subr.mxu0 0.0
    %2250 = vmatpush1.msra.mxu0 0.0
    %2251 = vmatprep.subr.mxu0 0.0
    %2252 = vmatpush1.msra.mxu0 0.0
    %2253 = vmatprep.subr.mxu0 0.0
    %2254 = vmatpush1.msra.mxu0 0.0
    %2255 = vmatprep.subr.mxu0 0.0
    %2256 = vmatpush1.msra.mxu0 0.0
    %2257 = vmatprep.subr.mxu0 0.0
    %2258 = vmatpush1.msra.mxu0 0.0
    %2259 = vmatprep.subr.mxu0 0.0
    %2260 = vmatpush1.msra.mxu0 0.0
    %2261 = vmatprep.subr.mxu0 0.0
    %2262 = vmatpush1.msra.mxu0 0.0
    %2263 = vmatprep.subr.mxu0 0.0
    %2264 = vmatpush1.msra.mxu0 0.0
    %2265 = vmatprep.subr.mxu0 0.0
    %2266 = vmatpush1.msra.mxu0 0.0
    %2267 = vmatprep.subr.mxu0 0.0
    %2268 = vmatpush1.msra.mxu0 0.0
    %2269 = vmatprep.subr.mxu0 0.0
    %2270 = vmatpush1.msra.mxu0 0.0
    %2271 = vmatprep.subr.mxu0 0.0
    %2272 = vmatpush1.msra.mxu0 0.0
    %2273 = vmatprep.mubr.f32.mxu0 0.0
    %2274 = vmatmul.mubr.f32.gmra.mrb[0].mxu0 %v2204
    %v2275 = vpop.f32.mrb[0].mxu0
    %v2276 = vadd.f32 0.0, %v2275
    %v2277 = vpop.f32.mrb[0].mxu0
    %2278 = vmatprep.mubr.f32.mxu0 0.0
    %2279 = vmatmul.mubr.f32.gmra.mrb[0].mxu0 %v2207
    %v2280 = vpop.f32.mrb[0].mxu0
    %v2281 = vadd.f32 0.0, %v2280
    %v2282 = vpop.f32.mrb[0].mxu0
    %2283 = vdwg.mxu0
    %v2284 = vadd.f32 %v1871, %v2276
    %v2285 = vadd.f32 %v1872, %v2281
    %v2286 = vadd.f32 %v468, %v2284
    %v2287 = vadd.f32 %v469, %v2285
    %v2289 = vlaneseq
    %v2290 = vshrl.u32 %v2289, 7
    %v2291 = vsub.s32 0, %v2290
    %v2292 = vrot.slane %v480, %v2291
    %v2294 = vadd.f32 %v2286, %v2292
    %v2295 = vadd.f32 %v2287, %v2292
    %v2296 = vld [vmem:[%s16] sm:$0x1]
    %v2297 = vld [vmem:[%s17] sm:$0x1]
    %v2298 = vsel %vm394, %v2294, 0.0
    %2299 = vadd.xlane.f32.xlu0 %v2298
    %v2300 = vpop.xlane.xlu0 %2299
    %v2301 = vsel %vm394, %v2295, 0.0
    %2302 = vadd.xlane.f32.xlu0 %v2301
    %v2303 = vpop.xlane.xlu0 %2302
    %v2304 = vmul.f32 %v2300, %v511
    %v2305 = vmul.f32 %v2303, %v511
    %v2306 = vsub.f32 %v2294, %v2304
    %v2307 = vsub.f32 %v2295, %v2305
    %v2308 = vmul.f32 %v2306, %v2306
    %v2309 = vmul.f32 %v2307, %v2307
    %v2310 = vsel %vm394, %v2308, 0.0
    %2311 = vadd.xlane.f32.xlu0 %v2310
    %v2312 = vpop.xlane.xlu0 %2311
    %v2313 = vsel %vm394, %v2309, 0.0
    %2314 = vadd.xlane.f32.xlu0 %v2313
    %v2315 = vpop.xlane.xlu0 %2314
    %v2316 = vmul.f32 %v2312, %v511
    %v2317 = vmul.f32 %v2315, %v511
    %v2318 = vadd.f32 %v2316, 1e-05
    %v2319 = vadd.f32 %v2317, 1e-05
    %v2320 = vrsqrt.pop %v2318
    %v2321 = vrsqrt.pop %v2319
    %v2322 = vmul.f32 %v2306, %v2320
    %v2323 = vmul.f32 %v2307, %v2321
    %v2325 = vlaneseq
    %v2326 = vshrl.u32 %v2325, 7
    %v2327 = vsub.s32 0, %v2326
    %v2328 = vrot.slane %v2296, %v2327
    %v2330 = vmul.f32 %v2322, %v2328
    %v2331 = vmul.f32 %v2323, %v2328
    %v2333 = vlaneseq
    %v2334 = vshrl.u32 %v2333, 7
    %v2335 = vsub.s32 0, %v2334
    %v2336 = vrot.slane %v2297, %v2335
    %v2338 = vadd.f32 %v2330, %v2336
    %v2339 = vadd.f32 %v2331, %v2336
    %v2341 = vlaneseq
    %v2342 = vshrl.u32 %v2341, 7
    %v2343 = vsub.s32 0, %v2342
    %v2344 = vrot.slane %v485, %v2343
    %v2347 = vsel %vm394, %v2338, 0
    %v2350 = vsel %vm394, %v2339, 0
    %2352 = vmatprep.subr.mxu0 0.0
    %2353 = vmatpush1.msra.mxu0 %v481
    %2354 = vmatprep.subr.mxu0 0.0
    %2355 = vmatpush1.msra.mxu0 %v482
    %2356 = vmatprep.subr.mxu0 0.0
    %2357 = vmatpush1.msra.mxu0 %v483
    %2358 = vmatprep.subr.mxu0 0.0
    %2359 = vmatpush1.msra.mxu0 %v484
    %2360 = vmatprep.subr.mxu0 0.0
    %2361 = vmatpush1.msra.mxu0 0.0
    %2362 = vmatprep.subr.mxu0 0.0
    %2363 = vmatpush1.msra.mxu0 0.0
    %2364 = vmatprep.subr.mxu0 0.0
    %2365 = vmatpush1.msra.mxu0 0.0
    %2366 = vmatprep.subr.mxu0 0.0
    %2367 = vmatpush1.msra.mxu0 0.0
    %2368 = vmatprep.subr.mxu0 0.0
    %2369 = vmatpush1.msra.mxu0 0.0
    %2370 = vmatprep.subr.mxu0 0.0
    %2371 = vmatpush1.msra.mxu0 0.0
    %2372 = vmatprep.subr.mxu0 0.0
    %2373 = vmatpush1.msra.mxu0 0.0
    %2374 = vmatprep.subr.mxu0 0.0
    %2375 = vmatpush1.msra.mxu0 0.0
    %2376 = vmatprep.subr.mxu0 0.0
    %2377 = vmatpush1.msra.mxu0 0.0
    %2378 = vmatprep.subr.mxu0 0.0
    %2379 = vmatpush1.msra.mxu0 0.0
    %2380 = vmatprep.subr.mxu0 0.0
    %2381 = vmatpush1.msra.mxu0 0.0
    %2382 = vmatprep.subr.mxu0 0.0
    %2383 = vmatpush1.msra.mxu0 0.0
    %2384 = vmatprep.subr.mxu0 0.0
    %2385 = vmatpush1.msra.mxu0 0.0
    %2386 = vmatprep.subr.mxu0 0.0
    %2387 = vmatpush1.msra.mxu0 0.0
    %2388 = vmatprep.subr.mxu0 0.0
    %2389 = vmatpush1.msra.mxu0 0.0
    %2390 = vmatprep.subr.mxu0 0.0
    %2391 = vmatpush1.msra.mxu0 0.0
    %2392 = vmatprep.subr.mxu0 0.0
    %2393 = vmatpush1.msra.mxu0 0.0
    %2394 = vmatprep.subr.mxu0 0.0
    %2395 = vmatpush1.msra.mxu0 0.0
    %2396 = vmatprep.subr.mxu0 0.0
    %2397 = vmatpush1.msra.mxu0 0.0
    %2398 = vmatprep.subr.mxu0 0.0
    %2399 = vmatpush1.msra.mxu0 0.0
    %2400 = vmatprep.subr.mxu0 0.0
    %2401 = vmatpush1.msra.mxu0 0.0
    %2402 = vmatprep.subr.mxu0 0.0
    %2403 = vmatpush1.msra.mxu0 0.0
    %2404 = vmatprep.subr.mxu0 0.0
    %2405 = vmatpush1.msra.mxu0 0.0
    %2406 = vmatprep.subr.mxu0 0.0
    %2407 = vmatpush1.msra.mxu0 0.0
    %2408 = vmatprep.subr.mxu0 0.0
    %2409 = vmatpush1.msra.mxu0 0.0
    %2410 = vmatprep.subr.mxu0 0.0
    %2411 = vmatpush1.msra.mxu0 0.0
    %2412 = vmatprep.subr.mxu0 0.0
    %2413 = vmatpush1.msra.mxu0 0.0
    %2414 = vmatprep.subr.mxu0 0.0
    %2415 = vmatpush1.msra.mxu0 0.0
    %2416 = vmatprep.mubr.f32.mxu0 0.0
    %2417 = vmatmul.mubr.f32.gmra.mrb[0].mxu0 %v2347
    %v2418 = vpop.f32.mrb[0].mxu0
    %v2419 = vadd.f32 %v2344, %v2418
    %v2420 = vpop.f32.mrb[0].mxu0
    %2421 = vmatprep.mubr.f32.mxu0 0.0
    %2422 = vmatmul.mubr.f32.gmra.mrb[0].mxu0 %v2350
    %v2423 = vpop.f32.mrb[0].mxu0
    %v2424 = vadd.f32 %v2344, %v2423
    %v2425 = vpop.f32.mrb[0].mxu0
    %2426 = vdwg.mxu0
    %v2427 = vmul.f32 %v2419, 1.702
    %v2428 = vmul.f32 %v2424, 1.702
    %v2429 = vxor.u32 %v2427, 2147483648
    %v2430 = vxor.u32 %v2428, 2147483648
    %v2431 = vmul.f32 %v2429, 1.442695
    %v2432 = vpow.pop %v2431
    %v2433 = vmul.f32 %v2430, 1.442695
    %v2434 = vpow.pop %v2433
    %v2435 = vadd.f32 %v2432, 1.0
    %v2436 = vadd.f32 %v2434, 1.0
    %v2437 = vrcp.pop %v2435
    %v2438 = vmul.f32 1.0, %v2437
    %v2439 = vrcp.pop %v2436
    %v2440 = vmul.f32 1.0, %v2439
    %v2441 = vmul.f32 %v2419, %v2438
    %v2442 = vmul.f32 %v2424, %v2440
    %2443 = vmatprep.subr.mxu0 0.0
    %2444 = vmatpush1.msra.mxu0 %v486
    %2445 = vmatprep.subr.mxu0 0.0
    %2446 = vmatpush1.msra.mxu0 %v487
    %2447 = vmatprep.subr.mxu0 0.0
    %2448 = vmatpush1.msra.mxu0 %v488
    %2449 = vmatprep.subr.mxu0 0.0
    %2450 = vmatpush1.msra.mxu0 %v489
    %2451 = vmatprep.subr.mxu0 0.0
    %2452 = vmatpush1.msra.mxu0 %v490
    %2453 = vmatprep.subr.mxu0 0.0
    %2454 = vmatpush1.msra.mxu0 %v491
    %2455 = vmatprep.subr.mxu0 0.0
    %2456 = vmatpush1.msra.mxu0 %v492
    %2457 = vmatprep.subr.mxu0 0.0
    %2458 = vmatpush1.msra.mxu0 %v493
    %2459 = vmatprep.subr.mxu0 0.0
    %2460 = vmatpush1.msra.mxu0 %v494
    %2461 = vmatprep.subr.mxu0 0.0
    %2462 = vmatpush1.msra.mxu0 %v495
    %2463 = vmatprep.subr.mxu0 0.0
    %2464 = vmatpush1.msra.mxu0 %v496
    %2465 = vmatprep.subr.mxu0 0.0
    %2466 = vmatpush1.msra.mxu0 %v497
    %2467 = vmatprep.subr.mxu0 0.0
    %2468 = vmatpush1.msra.mxu0 %v498
    %2469 = vmatprep.subr.mxu0 0.0
    %2470 = vmatpush1.msra.mxu0 %v499
    %2471 = vmatprep.subr.mxu0 0.0
    %2472 = vmatpush1.msra.mxu0 %v500
    %2473 = vmatprep.subr.mxu0 0.0
    %2474 = vmatpush1.msra.mxu0 %v501
    %2475 = vmatprep.subr.mxu0 0.0
    %2476 = vmatpush1.msra.mxu0 0.0
    %2477 = vmatprep.subr.mxu0 0.0
    %2478 = vmatpush1.msra.mxu0 0.0
    %2479 = vmatprep.subr.mxu0 0.0
    %2480 = vmatpush1.msra.mxu0 0.0
    %2481 = vmatprep.subr.mxu0 0.0
    %2482 = vmatpush1.msra.mxu0 0.0
    %2483 = vmatprep.subr.mxu0 0.0
    %2484 = vmatpush1.msra.mxu0 0.0
    %2485 = vmatprep.subr.mxu0 0.0
    %2486 = vmatpush1.msra.mxu0 0.0
    %2487 = vmatprep.subr.mxu0 0.0
    %2488 = vmatpush1.msra.mxu0 0.0
    %2489 = vmatprep.subr.mxu0 0.0
    %2490 = vmatpush1.msra.mxu0 0.0
    %2491 = vmatprep.subr.mxu0 0.0
    %2492 = vmatpush1.msra.mxu0 0.0
    %2493 = vmatprep.subr.mxu0 0.0
    %2494 = vmatpush1.msra.mxu0 0.0
    %2495 = vmatprep.subr.mxu0 0.0
    %2496 = vmatpush1.msra.mxu0 0.0
    %2497 = vmatprep.subr.mxu0 0.0
    %2498 = vmatpush1.msra.mxu0 0.0
    %2499 = vmatprep.subr.mxu0 0.0
    %2500 = vmatpush1.msra.mxu0 0.0
    %2501 = vmatprep.subr.mxu0 0.0
    %2502 = vmatpush1.msra.mxu0 0.0
    %2503 = vmatprep.subr.mxu0 0.0
    %2504 = vmatpush1.msra.mxu0 0.0
    %2505 = vmatprep.subr.mxu0 0.0
    %2506 = vmatpush1.msra.mxu0 0.0
    %2507 = vmatprep.mubr.f32.mxu0 0.0
    %2508 = vmatmul.mubr.f32.gmra.mrb[0].mxu0 %v2441
    %v2509 = vpop.f32.mrb[0].mxu0
    %v2510 = vadd.f32 0.0, %v2509
    %v2511 = vpop.f32.mrb[0].mxu0
    %2512 = vmatprep.mubr.f32.mxu0 0.0
    %2513 = vmatmul.mubr.f32.gmra.mrb[0].mxu0 %v2442
    %v2514 = vpop.f32.mrb[0].mxu0
    %v2515 = vadd.f32 0.0, %v2514
    %v2516 = vpop.f32.mrb[0].mxu0
    %2517 = vdwg.mxu0
    %v2518 = vadd.f32 %v2294, %v2510
    %v2519 = vadd.f32 %v2295, %v2515
    %v2521 = vlaneseq
    %v2522 = vshrl.u32 %v2521, 7
    %v2523 = vsub.s32 0, %v2522
    %v2524 = vrot.slane %v502, %v2523
    %v2526 = vadd.f32 %v2518, %v2524
    %v2527 = vadd.f32 %v2519, %v2524
    %s2528 = scalar_lea.vmem %s12, 32
    %v2529 = vld [vmem:[%s2528] sm:$0xff]
    %v2530 = vld [vmem:[%s2528 + $0x8] sm:$0xff]
    %v2531 = vld [vmem:[%s2528 + $0x10] sm:$0xff]
    %v2532 = vld [vmem:[%s2528 + $0x18] sm:$0xff]
    %s2533 = scalar_lea.vmem %s13, 1
    %v2534 = vld [vmem:[%s2533] sm:$0x1]
    %s2535 = scalar_lea.vmem %s14, 32
    %v2536 = vld [vmem:[%s2535] sm:$0xff]
    %v2537 = vld [vmem:[%s2535 + $0x8] sm:$0xff]
    %v2538 = vld [vmem:[%s2535 + $0x10] sm:$0xff]
    %v2539 = vld [vmem:[%s2535 + $0x18] sm:$0xff]
    %s2540 = scalar_lea.vmem %s15, 1
    %v2541 = vld [vmem:[%s2540] sm:$0x1]
    %s2542 = scalar_lea.vmem %s18, 32
    %v2543 = vld [vmem:[%s2542] sm:$0xff]
    %v2544 = vld [vmem:[%s2542 + $0x8] sm:$0xff]
    %v2545 = vld [vmem:[%s2542 + $0x10] sm:$0xff]
    %v2546 = vld [vmem:[%s2542 + $0x18] sm:$0xff]
    %s2547 = scalar_lea.vmem %s19, 1
    %v2548 = vld [vmem:[%s2547] sm:$0x1]
    %s2549 = scalar_lea.vmem %s20, 128
    %v2550 = vld [vmem:[%s2549] sm:$0xff]
    %v2551 = vld [vmem:[%s2549 + $0x8] sm:$0xff]
    %v2552 = vld [vmem:[%s2549 + $0x10] sm:$0xff]
    %v2553 = vld [vmem:[%s2549 + $0x18] sm:$0xff]
    %v2554 = vld [vmem:[%s2549 + $0x20] sm:$0xff]
    %v2555 = vld [vmem:[%s2549 + $0x28] sm:$0xff]
    %v2556 = vld [vmem:[%s2549 + $0x30] sm:$0xff]
    %v2557 = vld [vmem:[%s2549 + $0x38] sm:$0xff]
    %v2558 = vld [vmem:[%s2549 + $0x40] sm:$0xff]
    %v2559 = vld [vmem:[%s2549 + $0x48] sm:$0xff]
    %v2560 = vld [vmem:[%s2549 + $0x50] sm:$0xff]
    %v2561 = vld [vmem:[%s2549 + $0x58] sm:$0xff]
    %v2562 = vld [vmem:[%s2549 + $0x60] sm:$0xff]
    %v2563 = vld [vmem:[%s2549 + $0x68] sm:$0xff]
    %v2564 = vld [vmem:[%s2549 + $0x70] sm:$0xff]
    %v2565 = vld [vmem:[%s2549 + $0x78] sm:$0xff]
    %s2566 = scalar_lea.vmem %s21, 1
    %v2567 = vld [vmem:[%s2566] sm:$0x1]
    %s2568 = scalar_lea.vmem %s10, 1
    %v2569 = vld [vmem:[%s2568] sm:$0x1]
    %s2570 = scalar_lea.vmem %s11, 1
    %v2571 = vld [vmem:[%s2570] sm:$0x1]
    %v2572 = vsel %vm394, %v2526, 0.0
    %2573 = vadd.xlane.f32.xlu0 %v2572
    %v2574 = vpop.xlane.xlu0 %2573
    %v2575 = vsel %vm394, %v2527, 0.0
    %2576 = vadd.xlane.f32.xlu0 %v2575
    %v2577 = vpop.xlane.xlu0 %2576
    %v2578 = vmul.f32 %v2574, %v511
    %v2579 = vmul.f32 %v2577, %v511
    %v2580 = vsub.f32 %v2526, %v2578
    %v2581 = vsub.f32 %v2527, %v2579
    %v2582 = vmul.f32 %v2580, %v2580
    %v2583 = vmul.f32 %v2581, %v2581
    %v2584 = vsel %vm394, %v2582, 0.0
    %2585 = vadd.xlane.f32.xlu0 %v2584
    %v2586 = vpop.xlane.xlu0 %2585
    %v2587 = vsel %vm394, %v2583, 0.0
    %2588 = vadd.xlane.f32.xlu0 %v2587
    %v2589 = vpop.xlane.xlu0 %2588
    %v2590 = vmul.f32 %v2586, %v511
    %v2591 = vmul.f32 %v2589, %v511
    %v2592 = vadd.f32 %v2590, 1e-05
    %v2593 = vadd.f32 %v2591, 1e-05
    %v2594 = vrsqrt.pop %v2592
    %v2595 = vrsqrt.pop %v2593
    %v2596 = vmul.f32 %v2580, %v2594
    %v2597 = vmul.f32 %v2581, %v2595
    %v2599 = vlaneseq
    %v2600 = vshrl.u32 %v2599, 7
    %v2601 = vsub.s32 0, %v2600
    %v2602 = vrot.slane %v2569, %v2601
    %v2604 = vmul.f32 %v2596, %v2602
    %v2605 = vmul.f32 %v2597, %v2602
    %v2607 = vlaneseq
    %v2608 = vshrl.u32 %v2607, 7
    %v2609 = vsub.s32 0, %v2608
    %v2610 = vrot.slane %v2571, %v2609
    %v2612 = vadd.f32 %v2604, %v2610
    %v2613 = vadd.f32 %v2605, %v2610
    %v2615 = vlaneseq
    %v2616 = vshrl.u32 %v2615, 7
    %v2617 = vsub.s32 0, %v2616
    %v2618 = vrot.slane %v2534, %v2617
    %v2621 = vsel %vm394, %v2612, 0
    %v2624 = vsel %vm394, %v2613, 0
    %2626 = vmatprep.subr.mxu0 0.0
    %2627 = vmatpush1.msra.mxu0 %v2529
    %2628 = vmatprep.subr.mxu0 0.0
    %2629 = vmatpush1.msra.mxu0 %v2530
    %2630 = vmatprep.subr.mxu0 0.0
    %2631 = vmatpush1.msra.mxu0 %v2531
    %2632 = vmatprep.subr.mxu0 0.0
    %2633 = vmatpush1.msra.mxu0 %v2532
    %2634 = vmatprep.subr.mxu0 0.0
    %2635 = vmatpush1.msra.mxu0 0.0
    %2636 = vmatprep.subr.mxu0 0.0
    %2637 = vmatpush1.msra.mxu0 0.0
    %2638 = vmatprep.subr.mxu0 0.0
    %2639 = vmatpush1.msra.mxu0 0.0
    %2640 = vmatprep.subr.mxu0 0.0
    %2641 = vmatpush1.msra.mxu0 0.0
    %2642 = vmatprep.subr.mxu0 0.0
    %2643 = vmatpush1.msra.mxu0 0.0
    %2644 = vmatprep.subr.mxu0 0.0
    %2645 = vmatpush1.msra.mxu0 0.0
    %2646 = vmatprep.subr.mxu0 0.0
    %2647 = vmatpush1.msra.mxu0 0.0
    %2648 = vmatprep.subr.mxu0 0.0
    %2649 = vmatpush1.msra.mxu0 0.0
    %2650 = vmatprep.subr.mxu0 0.0
    %2651 = vmatpush1.msra.mxu0 0.0
    %2652 = vmatprep.subr.mxu0 0.0
    %2653 = vmatpush1.msra.mxu0 0.0
    %2654 = vmatprep.subr.mxu0 0.0
    %2655 = vmatpush1.msra.mxu0 0.0
    %2656 = vmatprep.subr.mxu0 0.0
    %2657 = vmatpush1.msra.mxu0 0.0
    %2658 = vmatprep.subr.mxu0 0.0
    %2659 = vmatpush1.msra.mxu0 0.0
    %2660 = vmatprep.subr.mxu0 0.0
    %2661 = vmatpush1.msra.mxu0 0.0
    %2662 = vmatprep.subr.mxu0 0.0
    %2663 = vmatpush1.msra.mxu0 0.0
    %2664 = vmatprep.subr.mxu0 0.0
    %2665 = vmatpush1.msra.mxu0 0.0
    %2666 = vmatprep.subr.mxu0 0.0
    %2667 = vmatpush1.msra.mxu0 0.0
    %2668 = vmatprep.subr.mxu0 0.0
    %2669 = vmatpush1.msra.mxu0 0.0
    %2670 = vmatprep.subr.mxu0 0.0
    %2671 = vmatpush1.msra.mxu0 0.0
    %2672 = vmatprep.subr.mxu0 0.0
    %2673 = vmatpush1.msra.mxu0 0.0
    %2674 = vmatprep.subr.mxu0 0.0
    %2675 = vmatpush1.msra.mxu0 0.0
    %2676 = vmatprep.subr.mxu0 0.0
    %2677 = vmatpush1.msra.mxu0 0.0
    %2678 = vmatprep.subr.mxu0 0.0
    %2679 = vmatpush1.msra.mxu0 0.0
    %2680 = vmatprep.subr.mxu0 0.0
    %2681 = vmatpush1.msra.mxu0 0.0
    %2682 = vmatprep.subr.mxu0 0.0
    %2683 = vmatpush1.msra.mxu0 0.0
    %2684 = vmatprep.subr.mxu0 0.0
    %2685 = vmatpush1.msra.mxu0 0.0
    %2686 = vmatprep.subr.mxu0 0.0
    %2687 = vmatpush1.msra.mxu0 0.0
    %2688 = vmatprep.subr.mxu0 0.0
    %2689 = vmatpush1.msra.mxu0 0.0
    %2690 = vmatprep.mubr.f32.mxu0 0.0
    %2691 = vmatmul.mubr.f32.gmra.mrb[0].mxu0 %v2621
    %v2692 = vpop.f32.mrb[0].mxu0
    %v2693 = vadd.f32 %v2618, %v2692
    %v2694 = vpop.f32.mrb[0].mxu0
    %2695 = vmatprep.mubr.f32.mxu0 0.0
    %2696 = vmatmul.mubr.f32.gmra.mrb[0].mxu0 %v2624
    %v2697 = vpop.f32.mrb[0].mxu0
    %v2698 = vadd.f32 %v2618, %v2697
    %v2699 = vpop.f32.mrb[0].mxu0
    %2700 = vdwg.mxu0
    %v2701 = vmul.f32 %v2693, 0.35355338
    %v2702 = vmul.f32 %v2698, 0.35355338
    %2704 = vrot.lane.b32.xlu0 %v2693, 96
    %v2705 = vpop.permute.xlu0 %2704
    %v2707 = vsel %vm640, %v2701, 0
    %v2709 = vsel %vm640, %v2705, 0
    %2711 = vmatprep.subr.mxu0 0.0
    %2712 = vmatpush1.xpose.msra.mxu0 %v2709
    %2713 = vmatprep.subr.mxu0 0.0
    %2714 = vmatpush1.xpose.msra.mxu0 0.0
    %2715 = vmatprep.subr.mxu0 0.0
    %2716 = vmatpush1.xpose.msra.mxu0 0.0
    %2717 = vmatprep.subr.mxu0 0.0
    %2718 = vmatpush1.xpose.msra.mxu0 0.0
    %2719 = vmatprep.subr.mxu0 0.0
    %2720 = vmatpush1.xpose.msra.mxu0 0.0
    %2721 = vmatprep.subr.mxu0 0.0
    %2722 = vmatpush1.xpose.msra.mxu0 0.0
    %2723 = vmatprep.subr.mxu0 0.0
    %2724 = vmatpush1.xpose.msra.mxu0 0.0
    %2725 = vmatprep.subr.mxu0 0.0
    %2726 = vmatpush1.xpose.msra.mxu0 0.0
    %2727 = vmatprep.subr.mxu0 0.0
    %2728 = vmatpush1.xpose.msra.mxu0 0.0
    %2729 = vmatprep.subr.mxu0 0.0
    %2730 = vmatpush1.xpose.msra.mxu0 0.0
    %2731 = vmatprep.subr.mxu0 0.0
    %2732 = vmatpush1.xpose.msra.mxu0 0.0
    %2733 = vmatprep.subr.mxu0 0.0
    %2734 = vmatpush1.xpose.msra.mxu0 0.0
    %2735 = vmatprep.subr.mxu0 0.0
    %2736 = vmatpush1.xpose.msra.mxu0 0.0
    %2737 = vmatprep.subr.mxu0 0.0
    %2738 = vmatpush1.xpose.msra.mxu0 0.0
    %2739 = vmatprep.subr.mxu0 0.0
    %2740 = vmatpush1.xpose.msra.mxu0 0.0
    %2741 = vmatprep.subr.mxu0 0.0
    %2742 = vmatpush1.xpose.msra.mxu0 0.0
    %2743 = vmatprep.subr.mxu0 0.0
    %2744 = vmatpush1.xpose.msra.mxu0 0.0
    %2745 = vmatprep.subr.mxu0 0.0
    %2746 = vmatpush1.xpose.msra.mxu0 0.0
    %2747 = vmatprep.subr.mxu0 0.0
    %2748 = vmatpush1.xpose.msra.mxu0 0.0
    %2749 = vmatprep.subr.mxu0 0.0
    %2750 = vmatpush1.xpose.msra.mxu0 0.0
    %2751 = vmatprep.subr.mxu0 0.0
    %2752 = vmatpush1.xpose.msra.mxu0 0.0
    %2753 = vmatprep.subr.mxu0 0.0
    %2754 = vmatpush1.xpose.msra.mxu0 0.0
    %2755 = vmatprep.subr.mxu0 0.0
    %2756 = vmatpush1.xpose.msra.mxu0 0.0
    %2757 = vmatprep.subr.mxu0 0.0
    %2758 = vmatpush1.xpose.msra.mxu0 0.0
    %2759 = vmatprep.subr.mxu0 0.0
    %2760 = vmatpush1.xpose.msra.mxu0 0.0
    %2761 = vmatprep.subr.mxu0 0.0
    %2762 = vmatpush1.xpose.msra.mxu0 0.0
    %2763 = vmatprep.subr.mxu0 0.0
    %2764 = vmatpush1.xpose.msra.mxu0 0.0
    %2765 = vmatprep.subr.mxu0 0.0
    %2766 = vmatpush1.xpose.msra.mxu0 0.0
    %2767 = vmatprep.subr.mxu0 0.0
    %2768 = vmatpush1.xpose.msra.mxu0 0.0
    %2769 = vmatprep.subr.mxu0 0.0
    %2770 = vmatpush1.xpose.msra.mxu0 0.0
    %2771 = vmatprep.subr.mxu0 0.0
    %2772 = vmatpush1.xpose.msra.mxu0 0.0
    %2773 = vmatprep.subr.mxu0 0.0
    %2774 = vmatpush1.xpose.msra.mxu0 0.0
    %2775 = vmatprep.mubr.f32.mxu0 0.0
    %2776 = vmatmul.mubr.f32.gmra.mrb[0].mxu0 %v2707
    %v2777 = vpop.f32.mrb[0].mxu0
    %v2778 = vadd.f32 %v470, %v2777
    %v2779 = vpop.f32.mrb[0].mxu0
    %2780 = vdwg.mxu0
    %2782 = vrot.lane.b32.xlu0 %v2698, 96
    %v2783 = vpop.permute.xlu0 %2782
    %v2785 = vsel %vm640, %v2702, 0
    %v2787 = vsel %vm640, %v2783, 0
    %2789 = vmatprep.subr.mxu0 0.0
    %2790 = vmatpush1.xpose.msra.mxu0 %v2787
    %2791 = vmatprep.subr.mxu0 0.0
    %2792 = vmatpush1.xpose.msra.mxu0 0.0
    %2793 = vmatprep.subr.mxu0 0.0
    %2794 = vmatpush1.xpose.msra.mxu0 0.0
    %2795 = vmatprep.subr.mxu0 0.0
    %2796 = vmatpush1.xpose.msra.mxu0 0.0
    %2797 = vmatprep.subr.mxu0 0.0
    %2798 = vmatpush1.xpose.msra.mxu0 0.0
    %2799 = vmatprep.subr.mxu0 0.0
    %2800 = vmatpush1.xpose.msra.mxu0 0.0
    %2801 = vmatprep.subr.mxu0 0.0
    %2802 = vmatpush1.xpose.msra.mxu0 0.0
    %2803 = vmatprep.subr.mxu0 0.0
    %2804 = vmatpush1.xpose.msra.mxu0 0.0
    %2805 = vmatprep.subr.mxu0 0.0
    %2806 = vmatpush1.xpose.msra.mxu0 0.0
    %2807 = vmatprep.subr.mxu0 0.0
    %2808 = vmatpush1.xpose.msra.mxu0 0.0
    %2809 = vmatprep.subr.mxu0 0.0
    %2810 = vmatpush1.xpose.msra.mxu0 0.0
    %2811 = vmatprep.subr.mxu0 0.0
    %2812 = vmatpush1.xpose.msra.mxu0 0.0
    %2813 = vmatprep.subr.mxu0 0.0
    %2814 = vmatpush1.xpose.msra.mxu0 0.0
    %2815 = vmatprep.subr.mxu0 0.0
    %2816 = vmatpush1.xpose.msra.mxu0 0.0
    %2817 = vmatprep.subr.mxu0 0.0
    %2818 = vmatpush1.xpose.msra.mxu0 0.0
    %2819 = vmatprep.subr.mxu0 0.0
    %2820 = vmatpush1.xpose.msra.mxu0 0.0
    %2821 = vmatprep.subr.mxu0 0.0
    %2822 = vmatpush1.xpose.msra.mxu0 0.0
    %2823 = vmatprep.subr.mxu0 0.0
    %2824 = vmatpush1.xpose.msra.mxu0 0.0
    %2825 = vmatprep.subr.mxu0 0.0
    %2826 = vmatpush1.xpose.msra.mxu0 0.0
    %2827 = vmatprep.subr.mxu0 0.0
    %2828 = vmatpush1.xpose.msra.mxu0 0.0
    %2829 = vmatprep.subr.mxu0 0.0
    %2830 = vmatpush1.xpose.msra.mxu0 0.0
    %2831 = vmatprep.subr.mxu0 0.0
    %2832 = vmatpush1.xpose.msra.mxu0 0.0
    %2833 = vmatprep.subr.mxu0 0.0
    %2834 = vmatpush1.xpose.msra.mxu0 0.0
    %2835 = vmatprep.subr.mxu0 0.0
    %2836 = vmatpush1.xpose.msra.mxu0 0.0
    %2837 = vmatprep.subr.mxu0 0.0
    %2838 = vmatpush1.xpose.msra.mxu0 0.0
    %2839 = vmatprep.subr.mxu0 0.0
    %2840 = vmatpush1.xpose.msra.mxu0 0.0
    %2841 = vmatprep.subr.mxu0 0.0
    %2842 = vmatpush1.xpose.msra.mxu0 0.0
    %2843 = vmatprep.subr.mxu0 0.0
    %2844 = vmatpush1.xpose.msra.mxu0 0.0
    %2845 = vmatprep.subr.mxu0 0.0
    %2846 = vmatpush1.xpose.msra.mxu0 0.0
    %2847 = vmatprep.subr.mxu0 0.0
    %2848 = vmatpush1.xpose.msra.mxu0 0.0
    %2849 = vmatprep.subr.mxu0 0.0
    %2850 = vmatpush1.xpose.msra.mxu0 0.0
    %2851 = vmatprep.subr.mxu0 0.0
    %2852 = vmatpush1.xpose.msra.mxu0 0.0
    %2853 = vmatprep.mubr.f32.mxu0 0.0
    %2854 = vmatmul.mubr.f32.gmra.mrb[0].mxu0 %v2785
    %v2855 = vpop.f32.mrb[0].mxu0
    %v2856 = vadd.f32 %v470, %v2855
    %v2857 = vpop.f32.mrb[0].mxu0
    %2858 = vdwg.mxu0
    %v2859 = vsel %vm640, %v2778, -inf
    %2860 = vmax.xlane.f32.xlu0 %v2859
    %v2861 = vpop.xlane.xlu0 %2860
    %v2862 = vsel %vm640, %v2856, -inf
    %2863 = vmax.xlane.f32.xlu0 %v2862
    %v2864 = vpop.xlane.xlu0 %2863
    %v2865 = vsub.f32 %v2778, %v2861
    %v2866 = vsub.f32 %v2856, %v2864
    %v2867 = vmul.f32 %v2865, 1.442695
    %v2868 = vpow.pop %v2867
    %v2869 = vmul.f32 %v2866, 1.442695
    %v2870 = vpow.pop %v2869
    %v2871 = vsel %vm640, %v2868, 0.0
    %2872 = vadd.xlane.f32.xlu0 %v2871
    %v2873 = vpop.xlane.xlu0 %2872
    %v2874 = vsel %vm640, %v2870, 0.0
    %2875 = vadd.xlane.f32.xlu0 %v2874
    %v2876 = vpop.xlane.xlu0 %2875
    %v2877 = vrcp.pop %v2873
    %v2878 = vmul.f32 %v2868, %v2877
    %v2879 = vrcp.pop %v2876
    %v2880 = vmul.f32 %v2870, %v2879
    %2881 = vrot.lane.b32.xlu0 %v2693, 64
    %v2882 = vpop.permute.xlu0 %2881
    %v2885 = vsel %vm640, %v2878, 0
    %2887 = vmatprep.subr.mxu0 0.0
    %2888 = vmatpush1.msra.mxu0 %v2882
    %2889 = vmatprep.subr.mxu0 0.0
    %2890 = vmatpush1.msra.mxu0 0.0
    %2891 = vmatprep.subr.mxu0 0.0
    %2892 = vmatpush1.msra.mxu0 0.0
    %2893 = vmatprep.subr.mxu0 0.0
    %2894 = vmatpush1.msra.mxu0 0.0
    %2895 = vmatprep.subr.mxu0 0.0
    %2896 = vmatpush1.msra.mxu0 0.0
    %2897 = vmatprep.subr.mxu0 0.0
    %2898 = vmatpush1.msra.mxu0 0.0
    %2899 = vmatprep.subr.mxu0 0.0
    %2900 = vmatpush1.msra.mxu0 0.0
    %2901 = vmatprep.subr.mxu0 0.0
    %2902 = vmatpush1.msra.mxu0 0.0
    %2903 = vmatprep.subr.mxu0 0.0
    %2904 = vmatpush1.msra.mxu0 0.0
    %2905 = vmatprep.subr.mxu0 0.0
    %2906 = vmatpush1.msra.mxu0 0.0
    %2907 = vmatprep.subr.mxu0 0.0
    %2908 = vmatpush1.msra.mxu0 0.0
    %2909 = vmatprep.subr.mxu0 0.0
    %2910 = vmatpush1.msra.mxu0 0.0
    %2911 = vmatprep.subr.mxu0 0.0
    %2912 = vmatpush1.msra.mxu0 0.0
    %2913 = vmatprep.subr.mxu0 0.0
    %2914 = vmatpush1.msra.mxu0 0.0
    %2915 = vmatprep.subr.mxu0 0.0
    %2916 = vmatpush1.msra.mxu0 0.0
    %2917 = vmatprep.subr.mxu0 0.0
    %2918 = vmatpush1.msra.mxu0 0.0
    %2919 = vmatprep.subr.mxu0 0.0
    %2920 = vmatpush1.msra.mxu0 0.0
    %2921 = vmatprep.subr.mxu0 0.0
    %2922 = vmatpush1.msra.mxu0 0.0
    %2923 = vmatprep.subr.mxu0 0.0
    %2924 = vmatpush1.msra.mxu0 0.0
    %2925 = vmatprep.subr.mxu0 0.0
    %2926 = vmatpush1.msra.mxu0 0.0
    %2927 = vmatprep.subr.mxu0 0.0
    %2928 = vmatpush1.msra.mxu0 0.0
    %2929 = vmatprep.subr.mxu0 0.0
    %2930 = vmatpush1.msra.mxu0 0.0
    %2931 = vmatprep.subr.mxu0 0.0
    %2932 = vmatpush1.msra.mxu0 0.0
    %2933 = vmatprep.subr.mxu0 0.0
    %2934 = vmatpush1.msra.mxu0 0.0
    %2935 = vmatprep.subr.mxu0 0.0
    %2936 = vmatpush1.msra.mxu0 0.0
    %2937 = vmatprep.subr.mxu0 0.0
    %2938 = vmatpush1.msra.mxu0 0.0
    %2939 = vmatprep.subr.mxu0 0.0
    %2940 = vmatpush1.msra.mxu0 0.0
    %2941 = vmatprep.subr.mxu0 0.0
    %2942 = vmatpush1.msra.mxu0 0.0
    %2943 = vmatprep.subr.mxu0 0.0
    %2944 = vmatpush1.msra.mxu0 0.0
    %2945 = vmatprep.subr.mxu0 0.0
    %2946 = vmatpush1.msra.mxu0 0.0
    %2947 = vmatprep.subr.mxu0 0.0
    %2948 = vmatpush1.msra.mxu0 0.0
    %2949 = vmatprep.subr.mxu0 0.0
    %2950 = vmatpush1.msra.mxu0 0.0
    %2951 = vmatprep.mubr.f32.mxu0 0.0
    %2952 = vmatmul.mubr.f32.gmra.mrb[0].mxu0 %v2885
    %v2953 = vpop.f32.mrb[0].mxu0
    %v2954 = vadd.f32 0.0, %v2953
    %v2955 = vpop.f32.mrb[0].mxu0
    %2956 = vdwg.mxu0
    %2957 = vrot.lane.b32.xlu0 %v2698, 64
    %v2958 = vpop.permute.xlu0 %2957
    %v2961 = vsel %vm640, %v2880, 0
    %2963 = vmatprep.subr.mxu0 0.0
    %2964 = vmatpush1.msra.mxu0 %v2958
    %2965 = vmatprep.subr.mxu0 0.0
    %2966 = vmatpush1.msra.mxu0 0.0
    %2967 = vmatprep.subr.mxu0 0.0
    %2968 = vmatpush1.msra.mxu0 0.0
    %2969 = vmatprep.subr.mxu0 0.0
    %2970 = vmatpush1.msra.mxu0 0.0
    %2971 = vmatprep.subr.mxu0 0.0
    %2972 = vmatpush1.msra.mxu0 0.0
    %2973 = vmatprep.subr.mxu0 0.0
    %2974 = vmatpush1.msra.mxu0 0.0
    %2975 = vmatprep.subr.mxu0 0.0
    %2976 = vmatpush1.msra.mxu0 0.0
    %2977 = vmatprep.subr.mxu0 0.0
    %2978 = vmatpush1.msra.mxu0 0.0
    %2979 = vmatprep.subr.mxu0 0.0
    %2980 = vmatpush1.msra.mxu0 0.0
    %2981 = vmatprep.subr.mxu0 0.0
    %2982 = vmatpush1.msra.mxu0 0.0
    %2983 = vmatprep.subr.mxu0 0.0
    %2984 = vmatpush1.msra.mxu0 0.0
    %2985 = vmatprep.subr.mxu0 0.0
    %2986 = vmatpush1.msra.mxu0 0.0
    %2987 = vmatprep.subr.mxu0 0.0
    %2988 = vmatpush1.msra.mxu0 0.0
    %2989 = vmatprep.subr.mxu0 0.0
    %2990 = vmatpush1.msra.mxu0 0.0
    %2991 = vmatprep.subr.mxu0 0.0
    %2992 = vmatpush1.msra.mxu0 0.0
    %2993 = vmatprep.subr.mxu0 0.0
    %2994 = vmatpush1.msra.mxu0 0.0
    %2995 = vmatprep.subr.mxu0 0.0
    %2996 = vmatpush1.msra.mxu0 0.0
    %2997 = vmatprep.subr.mxu0 0.0
    %2998 = vmatpush1.msra.mxu0 0.0
    %2999 = vmatprep.subr.mxu0 0.0
    %3000 = vmatpush1.msra.mxu0 0.0
    %3001 = vmatprep.subr.mxu0 0.0
    %3002 = vmatpush1.msra.mxu0 0.0
    %3003 = vmatprep.subr.mxu0 0.0
    %3004 = vmatpush1.msra.mxu0 0.0
    %3005 = vmatprep.subr.mxu0 0.0
    %3006 = vmatpush1.msra.mxu0 0.0
    %3007 = vmatprep.subr.mxu0 0.0
    %3008 = vmatpush1.msra.mxu0 0.0
    %3009 = vmatprep.subr.mxu0 0.0
    %3010 = vmatpush1.msra.mxu0 0.0
    %3011 = vmatprep.subr.mxu0 0.0
    %3012 = vmatpush1.msra.mxu0 0.0
    %3013 = vmatprep.subr.mxu0 0.0
    %3014 = vmatpush1.msra.mxu0 0.0
    %3015 = vmatprep.subr.mxu0 0.0
    %3016 = vmatpush1.msra.mxu0 0.0
    %3017 = vmatprep.subr.mxu0 0.0
    %3018 = vmatpush1.msra.mxu0 0.0
    %3019 = vmatprep.subr.mxu0 0.0
    %3020 = vmatpush1.msra.mxu0 0.0
    %3021 = vmatprep.subr.mxu0 0.0
    %3022 = vmatpush1.msra.mxu0 0.0
    %3023 = vmatprep.subr.mxu0 0.0
    %3024 = vmatpush1.msra.mxu0 0.0
    %3025 = vmatprep.subr.mxu0 0.0
    %3026 = vmatpush1.msra.mxu0 0.0
    %3027 = vmatprep.mubr.f32.mxu0 0.0
    %3028 = vmatmul.mubr.f32.gmra.mrb[0].mxu0 %v2961
    %v3029 = vpop.f32.mrb[0].mxu0
    %v3030 = vadd.f32 0.0, %v3029
    %v3031 = vpop.f32.mrb[0].mxu0
    %3032 = vdwg.mxu0
    %3033 = vrot.lane.b32.xlu0 %v2701, 120
    %v3034 = vpop.permute.xlu0 %3033
    %3035 = vrot.lane.b32.xlu0 %v2693, 88
    %v3036 = vpop.permute.xlu0 %3035
    %v3037 = vsel %vm640, %v3034, 0
    %v3039 = vsel %vm640, %v3036, 0
    %3041 = vmatprep.subr.mxu0 0.0
    %3042 = vmatpush1.xpose.msra.mxu0 %v3039
    %3043 = vmatprep.subr.mxu0 0.0
    %3044 = vmatpush1.xpose.msra.mxu0 0.0
    %3045 = vmatprep.subr.mxu0 0.0
    %3046 = vmatpush1.xpose.msra.mxu0 0.0
    %3047 = vmatprep.subr.mxu0 0.0
    %3048 = vmatpush1.xpose.msra.mxu0 0.0
    %3049 = vmatprep.subr.mxu0 0.0
    %3050 = vmatpush1.xpose.msra.mxu0 0.0
    %3051 = vmatprep.subr.mxu0 0.0
    %3052 = vmatpush1.xpose.msra.mxu0 0.0
    %3053 = vmatprep.subr.mxu0 0.0
    %3054 = vmatpush1.xpose.msra.mxu0 0.0
    %3055 = vmatprep.subr.mxu0 0.0
    %3056 = vmatpush1.xpose.msra.mxu0 0.0
    %3057 = vmatprep.subr.mxu0 0.0
    %3058 = vmatpush1.xpose.msra.mxu0 0.0
    %3059 = vmatprep.subr.mxu0 0.0
    %3060 = vmatpush1.xpose.msra.mxu0 0.0
    %3061 = vmatprep.subr.mxu0 0.0
    %3062 = vmatpush1.xpose.msra.mxu0 0.0
    %3063 = vmatprep.subr.mxu0 0.0
    %3064 = vmatpush1.xpose.msra.mxu0 0.0
    %3065 = vmatprep.subr.mxu0 0.0
    %3066 = vmatpush1.xpose.msra.mxu0 0.0
    %3067 = vmatprep.subr.mxu0 0.0
    %3068 = vmatpush1.xpose.msra.mxu0 0.0
    %3069 = vmatprep.subr.mxu0 0.0
    %3070 = vmatpush1.xpose.msra.mxu0 0.0
    %3071 = vmatprep.subr.mxu0 0.0
    %3072 = vmatpush1.xpose.msra.mxu0 0.0
    %3073 = vmatprep.subr.mxu0 0.0
    %3074 = vmatpush1.xpose.msra.mxu0 0.0
    %3075 = vmatprep.subr.mxu0 0.0
    %3076 = vmatpush1.xpose.msra.mxu0 0.0
    %3077 = vmatprep.subr.mxu0 0.0
    %3078 = vmatpush1.xpose.msra.mxu0 0.0
    %3079 = vmatprep.subr.mxu0 0.0
    %3080 = vmatpush1.xpose.msra.mxu0 0.0
    %3081 = vmatprep.subr.mxu0 0.0
    %3082 = vmatpush1.xpose.msra.mxu0 0.0
    %3083 = vmatprep.subr.mxu0 0.0
    %3084 = vmatpush1.xpose.msra.mxu0 0.0
    %3085 = vmatprep.subr.mxu0 0.0
    %3086 = vmatpush1.xpose.msra.mxu0 0.0
    %3087 = vmatprep.subr.mxu0 0.0
    %3088 = vmatpush1.xpose.msra.mxu0 0.0
    %3089 = vmatprep.subr.mxu0 0.0
    %3090 = vmatpush1.xpose.msra.mxu0 0.0
    %3091 = vmatprep.subr.mxu0 0.0
    %3092 = vmatpush1.xpose.msra.mxu0 0.0
    %3093 = vmatprep.subr.mxu0 0.0
    %3094 = vmatpush1.xpose.msra.mxu0 0.0
    %3095 = vmatprep.subr.mxu0 0.0
    %3096 = vmatpush1.xpose.msra.mxu0 0.0
    %3097 = vmatprep.subr.mxu0 0.0
    %3098 = vmatpush1.xpose.msra.mxu0 0.0
    %3099 = vmatprep.subr.mxu0 0.0
    %3100 = vmatpush1.xpose.msra.mxu0 0.0
    %3101 = vmatprep.subr.mxu0 0.0
    %3102 = vmatpush1.xpose.msra.mxu0 0.0
    %3103 = vmatprep.subr.mxu0 0.0
    %3104 = vmatpush1.xpose.msra.mxu0 0.0
    %3105 = vmatprep.mubr.f32.mxu0 0.0
    %3106 = vmatmul.mubr.f32.gmra.mrb[0].mxu0 %v3037
    %v3107 = vpop.f32.mrb[0].mxu0
    %v3108 = vadd.f32 %v470, %v3107
    %v3109 = vpop.f32.mrb[0].mxu0
    %3110 = vdwg.mxu0
    %3111 = vrot.lane.b32.xlu0 %v2702, 120
    %v3112 = vpop.permute.xlu0 %3111
    %3113 = vrot.lane.b32.xlu0 %v2698, 88
    %v3114 = vpop.permute.xlu0 %3113
    %v3115 = vsel %vm640, %v3112, 0
    %v3117 = vsel %vm640, %v3114, 0
    %3119 = vmatprep.subr.mxu0 0.0
    %3120 = vmatpush1.xpose.msra.mxu0 %v3117
    %3121 = vmatprep.subr.mxu0 0.0
    %3122 = vmatpush1.xpose.msra.mxu0 0.0
    %3123 = vmatprep.subr.mxu0 0.0
    %3124 = vmatpush1.xpose.msra.mxu0 0.0
    %3125 = vmatprep.subr.mxu0 0.0
    %3126 = vmatpush1.xpose.msra.mxu0 0.0
    %3127 = vmatprep.subr.mxu0 0.0
    %3128 = vmatpush1.xpose.msra.mxu0 0.0
    %3129 = vmatprep.subr.mxu0 0.0
    %3130 = vmatpush1.xpose.msra.mxu0 0.0
    %3131 = vmatprep.subr.mxu0 0.0
    %3132 = vmatpush1.xpose.msra.mxu0 0.0
    %3133 = vmatprep.subr.mxu0 0.0
    %3134 = vmatpush1.xpose.msra.mxu0 0.0
    %3135 = vmatprep.subr.mxu0 0.0
    %3136 = vmatpush1.xpose.msra.mxu0 0.0
    %3137 = vmatprep.subr.mxu0 0.0
    %3138 = vmatpush1.xpose.msra.mxu0 0.0
    %3139 = vmatprep.subr.mxu0 0.0
    %3140 = vmatpush1.xpose.msra.mxu0 0.0
    %3141 = vmatprep.subr.mxu0 0.0
    %3142 = vmatpush1.xpose.msra.mxu0 0.0
    %3143 = vmatprep.subr.mxu0 0.0
    %3144 = vmatpush1.xpose.msra.mxu0 0.0
    %3145 = vmatprep.subr.mxu0 0.0
    %3146 = vmatpush1.xpose.msra.mxu0 0.0
    %3147 = vmatprep.subr.mxu0 0.0
    %3148 = vmatpush1.xpose.msra.mxu0 0.0
    %3149 = vmatprep.subr.mxu0 0.0
    %3150 = vmatpush1.xpose.msra.mxu0 0.0
    %3151 = vmatprep.subr.mxu0 0.0
    %3152 = vmatpush1.xpose.msra.mxu0 0.0
    %3153 = vmatprep.subr.mxu0 0.0
    %3154 = vmatpush1.xpose.msra.mxu0 0.0
    %3155 = vmatprep.subr.mxu0 0.0
    %3156 = vmatpush1.xpose.msra.mxu0 0.0
    %3157 = vmatprep.subr.mxu0 0.0
    %3158 = vmatpush1.xpose.msra.mxu0 0.0
    %3159 = vmatprep.subr.mxu0 0.0
    %3160 = vmatpush1.xpose.msra.mxu0 0.0
    %3161 = vmatprep.subr.mxu0 0.0
    %3162 = vmatpush1.xpose.msra.mxu0 0.0
    %3163 = vmatprep.subr.mxu0 0.0
    %3164 = vmatpush1.xpose.msra.mxu0 0.0
    %3165 = vmatprep.subr.mxu0 0.0
    %3166 = vmatpush1.xpose.msra.mxu0 0.0
    %3167 = vmatprep.subr.mxu0 0.0
    %3168 = vmatpush1.xpose.msra.mxu0 0.0
    %3169 = vmatprep.subr.mxu0 0.0
    %3170 = vmatpush1.xpose.msra.mxu0 0.0
    %3171 = vmatprep.subr.mxu0 0.0
    %3172 = vmatpush1.xpose.msra.mxu0 0.0
    %3173 = vmatprep.subr.mxu0 0.0
    %3174 = vmatpush1.xpose.msra.mxu0 0.0
    %3175 = vmatprep.subr.mxu0 0.0
    %3176 = vmatpush1.xpose.msra.mxu0 0.0
    %3177 = vmatprep.subr.mxu0 0.0
    %3178 = vmatpush1.xpose.msra.mxu0 0.0
    %3179 = vmatprep.subr.mxu0 0.0
    %3180 = vmatpush1.xpose.msra.mxu0 0.0
    %3181 = vmatprep.subr.mxu0 0.0
    %3182 = vmatpush1.xpose.msra.mxu0 0.0
    %3183 = vmatprep.mubr.f32.mxu0 0.0
    %3184 = vmatmul.mubr.f32.gmra.mrb[0].mxu0 %v3115
    %v3185 = vpop.f32.mrb[0].mxu0
    %v3186 = vadd.f32 %v470, %v3185
    %v3187 = vpop.f32.mrb[0].mxu0
    %3188 = vdwg.mxu0
    %v3189 = vsel %vm640, %v3108, -inf
    %3190 = vmax.xlane.f32.xlu0 %v3189
    %v3191 = vpop.xlane.xlu0 %3190
    %v3192 = vsel %vm640, %v3186, -inf
    %3193 = vmax.xlane.f32.xlu0 %v3192
    %v3194 = vpop.xlane.xlu0 %3193
    %v3195 = vsub.f32 %v3108, %v3191
    %v3196 = vsub.f32 %v3186, %v3194
    %v3197 = vmul.f32 %v3195, 1.442695
    %v3198 = vpow.pop %v3197
    %v3199 = vmul.f32 %v3196, 1.442695
    %v3200 = vpow.pop %v3199
    %v3201 = vsel %vm640, %v3198, 0.0
    %3202 = vadd.xlane.f32.xlu0 %v3201
    %v3203 = vpop.xlane.xlu0 %3202
    %v3204 = vsel %vm640, %v3200, 0.0
    %3205 = vadd.xlane.f32.xlu0 %v3204
    %v3206 = vpop.xlane.xlu0 %3205
    %v3207 = vrcp.pop %v3203
    %v3208 = vmul.f32 %v3198, %v3207
    %v3209 = vrcp.pop %v3206
    %v3210 = vmul.f32 %v3200, %v3209
    %3211 = vrot.lane.b32.xlu0 %v2693, 56
    %v3212 = vpop.permute.xlu0 %3211
    %v3215 = vsel %vm640, %v3208, 0
    %3217 = vmatprep.subr.mxu0 0.0
    %3218 = vmatpush1.msra.mxu0 %v3212
    %3219 = vmatprep.subr.mxu0 0.0
    %3220 = vmatpush1.msra.mxu0 0.0
    %3221 = vmatprep.subr.mxu0 0.0
    %3222 = vmatpush1.msra.mxu0 0.0
    %3223 = vmatprep.subr.mxu0 0.0
    %3224 = vmatpush1.msra.mxu0 0.0
    %3225 = vmatprep.subr.mxu0 0.0
    %3226 = vmatpush1.msra.mxu0 0.0
    %3227 = vmatprep.subr.mxu0 0.0
    %3228 = vmatpush1.msra.mxu0 0.0
    %3229 = vmatprep.subr.mxu0 0.0
    %3230 = vmatpush1.msra.mxu0 0.0
    %3231 = vmatprep.subr.mxu0 0.0
    %3232 = vmatpush1.msra.mxu0 0.0
    %3233 = vmatprep.subr.mxu0 0.0
    %3234 = vmatpush1.msra.mxu0 0.0
    %3235 = vmatprep.subr.mxu0 0.0
    %3236 = vmatpush1.msra.mxu0 0.0
    %3237 = vmatprep.subr.mxu0 0.0
    %3238 = vmatpush1.msra.mxu0 0.0
    %3239 = vmatprep.subr.mxu0 0.0
    %3240 = vmatpush1.msra.mxu0 0.0
    %3241 = vmatprep.subr.mxu0 0.0
    %3242 = vmatpush1.msra.mxu0 0.0
    %3243 = vmatprep.subr.mxu0 0.0
    %3244 = vmatpush1.msra.mxu0 0.0
    %3245 = vmatprep.subr.mxu0 0.0
    %3246 = vmatpush1.msra.mxu0 0.0
    %3247 = vmatprep.subr.mxu0 0.0
    %3248 = vmatpush1.msra.mxu0 0.0
    %3249 = vmatprep.subr.mxu0 0.0
    %3250 = vmatpush1.msra.mxu0 0.0
    %3251 = vmatprep.subr.mxu0 0.0
    %3252 = vmatpush1.msra.mxu0 0.0
    %3253 = vmatprep.subr.mxu0 0.0
    %3254 = vmatpush1.msra.mxu0 0.0
    %3255 = vmatprep.subr.mxu0 0.0
    %3256 = vmatpush1.msra.mxu0 0.0
    %3257 = vmatprep.subr.mxu0 0.0
    %3258 = vmatpush1.msra.mxu0 0.0
    %3259 = vmatprep.subr.mxu0 0.0
    %3260 = vmatpush1.msra.mxu0 0.0
    %3261 = vmatprep.subr.mxu0 0.0
    %3262 = vmatpush1.msra.mxu0 0.0
    %3263 = vmatprep.subr.mxu0 0.0
    %3264 = vmatpush1.msra.mxu0 0.0
    %3265 = vmatprep.subr.mxu0 0.0
    %3266 = vmatpush1.msra.mxu0 0.0
    %3267 = vmatprep.subr.mxu0 0.0
    %3268 = vmatpush1.msra.mxu0 0.0
    %3269 = vmatprep.subr.mxu0 0.0
    %3270 = vmatpush1.msra.mxu0 0.0
    %3271 = vmatprep.subr.mxu0 0.0
    %3272 = vmatpush1.msra.mxu0 0.0
    %3273 = vmatprep.subr.mxu0 0.0
    %3274 = vmatpush1.msra.mxu0 0.0
    %3275 = vmatprep.subr.mxu0 0.0
    %3276 = vmatpush1.msra.mxu0 0.0
    %3277 = vmatprep.subr.mxu0 0.0
    %3278 = vmatpush1.msra.mxu0 0.0
    %3279 = vmatprep.subr.mxu0 0.0
    %3280 = vmatpush1.msra.mxu0 0.0
    %3281 = vmatprep.mubr.f32.mxu0 0.0
    %3282 = vmatmul.mubr.f32.gmra.mrb[0].mxu0 %v3215
    %v3283 = vpop.f32.mrb[0].mxu0
    %v3284 = vadd.f32 0.0, %v3283
    %v3285 = vpop.f32.mrb[0].mxu0
    %3286 = vdwg.mxu0
    %3287 = vrot.lane.b32.xlu0 %v2698, 56
    %v3288 = vpop.permute.xlu0 %3287
    %v3291 = vsel %vm640, %v3210, 0
    %3293 = vmatprep.subr.mxu0 0.0
    %3294 = vmatpush1.msra.mxu0 %v3288
    %3295 = vmatprep.subr.mxu0 0.0
    %3296 = vmatpush1.msra.mxu0 0.0
    %3297 = vmatprep.subr.mxu0 0.0
    %3298 = vmatpush1.msra.mxu0 0.0
    %3299 = vmatprep.subr.mxu0 0.0
    %3300 = vmatpush1.msra.mxu0 0.0
    %3301 = vmatprep.subr.mxu0 0.0
    %3302 = vmatpush1.msra.mxu0 0.0
    %3303 = vmatprep.subr.mxu0 0.0
    %3304 = vmatpush1.msra.mxu0 0.0
    %3305 = vmatprep.subr.mxu0 0.0
    %3306 = vmatpush1.msra.mxu0 0.0
    %3307 = vmatprep.subr.mxu0 0.0
    %3308 = vmatpush1.msra.mxu0 0.0
    %3309 = vmatprep.subr.mxu0 0.0
    %3310 = vmatpush1.msra.mxu0 0.0
    %3311 = vmatprep.subr.mxu0 0.0
    %3312 = vmatpush1.msra.mxu0 0.0
    %3313 = vmatprep.subr.mxu0 0.0
    %3314 = vmatpush1.msra.mxu0 0.0
    %3315 = vmatprep.subr.mxu0 0.0
    %3316 = vmatpush1.msra.mxu0 0.0
    %3317 = vmatprep.subr.mxu0 0.0
    %3318 = vmatpush1.msra.mxu0 0.0
    %3319 = vmatprep.subr.mxu0 0.0
    %3320 = vmatpush1.msra.mxu0 0.0
    %3321 = vmatprep.subr.mxu0 0.0
    %3322 = vmatpush1.msra.mxu0 0.0
    %3323 = vmatprep.subr.mxu0 0.0
    %3324 = vmatpush1.msra.mxu0 0.0
    %3325 = vmatprep.subr.mxu0 0.0
    %3326 = vmatpush1.msra.mxu0 0.0
    %3327 = vmatprep.subr.mxu0 0.0
    %3328 = vmatpush1.msra.mxu0 0.0
    %3329 = vmatprep.subr.mxu0 0.0
    %3330 = vmatpush1.msra.mxu0 0.0
    %3331 = vmatprep.subr.mxu0 0.0
    %3332 = vmatpush1.msra.mxu0 0.0
    %3333 = vmatprep.subr.mxu0 0.0
    %3334 = vmatpush1.msra.mxu0 0.0
    %3335 = vmatprep.subr.mxu0 0.0
    %3336 = vmatpush1.msra.mxu0 0.0
    %3337 = vmatprep.subr.mxu0 0.0
    %3338 = vmatpush1.msra.mxu0 0.0
    %3339 = vmatprep.subr.mxu0 0.0
    %3340 = vmatpush1.msra.mxu0 0.0
    %3341 = vmatprep.subr.mxu0 0.0
    %3342 = vmatpush1.msra.mxu0 0.0
    %3343 = vmatprep.subr.mxu0 0.0
    %3344 = vmatpush1.msra.mxu0 0.0
    %3345 = vmatprep.subr.mxu0 0.0
    %3346 = vmatpush1.msra.mxu0 0.0
    %3347 = vmatprep.subr.mxu0 0.0
    %3348 = vmatpush1.msra.mxu0 0.0
    %3349 = vmatprep.subr.mxu0 0.0
    %3350 = vmatpush1.msra.mxu0 0.0
    %3351 = vmatprep.subr.mxu0 0.0
    %3352 = vmatpush1.msra.mxu0 0.0
    %3353 = vmatprep.subr.mxu0 0.0
    %3354 = vmatpush1.msra.mxu0 0.0
    %3355 = vmatprep.subr.mxu0 0.0
    %3356 = vmatpush1.msra.mxu0 0.0
    %3357 = vmatprep.mubr.f32.mxu0 0.0
    %3358 = vmatmul.mubr.f32.gmra.mrb[0].mxu0 %v3291
    %v3359 = vpop.f32.mrb[0].mxu0
    %v3360 = vadd.f32 0.0, %v3359
    %v3361 = vpop.f32.mrb[0].mxu0
    %3362 = vdwg.mxu0
    %v3364 = vsel %vm640, %v3284, 0
    %v3367 = vsel %vm640, %v3360, 0
    %3369 = vmatprep.subr.mxu0 0.0
    %3370 = vmatpush1.msra.mxu0 %v2537
    %3371 = vmatprep.subr.mxu0 0.0
    %3372 = vmatpush1.msra.mxu0 0.0
    %3373 = vmatprep.subr.mxu0 0.0
    %3374 = vmatpush1.msra.mxu0 0.0
    %3375 = vmatprep.subr.mxu0 0.0
    %3376 = vmatpush1.msra.mxu0 0.0
    %3377 = vmatprep.subr.mxu0 0.0
    %3378 = vmatpush1.msra.mxu0 0.0
    %3379 = vmatprep.subr.mxu0 0.0
    %3380 = vmatpush1.msra.mxu0 0.0
    %3381 = vmatprep.subr.mxu0 0.0
    %3382 = vmatpush1.msra.mxu0 0.0
    %3383 = vmatprep.subr.mxu0 0.0
    %3384 = vmatpush1.msra.mxu0 0.0
    %3385 = vmatprep.subr.mxu0 0.0
    %3386 = vmatpush1.msra.mxu0 0.0
    %3387 = vmatprep.subr.mxu0 0.0
    %3388 = vmatpush1.msra.mxu0 0.0
    %3389 = vmatprep.subr.mxu0 0.0
    %3390 = vmatpush1.msra.mxu0 0.0
    %3391 = vmatprep.subr.mxu0 0.0
    %3392 = vmatpush1.msra.mxu0 0.0
    %3393 = vmatprep.subr.mxu0 0.0
    %3394 = vmatpush1.msra.mxu0 0.0
    %3395 = vmatprep.subr.mxu0 0.0
    %3396 = vmatpush1.msra.mxu0 0.0
    %3397 = vmatprep.subr.mxu0 0.0
    %3398 = vmatpush1.msra.mxu0 0.0
    %3399 = vmatprep.subr.mxu0 0.0
    %3400 = vmatpush1.msra.mxu0 0.0
    %3401 = vmatprep.subr.mxu0 0.0
    %3402 = vmatpush1.msra.mxu0 0.0
    %3403 = vmatprep.subr.mxu0 0.0
    %3404 = vmatpush1.msra.mxu0 0.0
    %3405 = vmatprep.subr.mxu0 0.0
    %3406 = vmatpush1.msra.mxu0 0.0
    %3407 = vmatprep.subr.mxu0 0.0
    %3408 = vmatpush1.msra.mxu0 0.0
    %3409 = vmatprep.subr.mxu0 0.0
    %3410 = vmatpush1.msra.mxu0 0.0
    %3411 = vmatprep.subr.mxu0 0.0
    %3412 = vmatpush1.msra.mxu0 0.0
    %3413 = vmatprep.subr.mxu0 0.0
    %3414 = vmatpush1.msra.mxu0 0.0
    %3415 = vmatprep.subr.mxu0 0.0
    %3416 = vmatpush1.msra.mxu0 0.0
    %3417 = vmatprep.subr.mxu0 0.0
    %3418 = vmatpush1.msra.mxu0 0.0
    %3419 = vmatprep.subr.mxu0 0.0
    %3420 = vmatpush1.msra.mxu0 0.0
    %3421 = vmatprep.subr.mxu0 0.0
    %3422 = vmatpush1.msra.mxu0 0.0
    %3423 = vmatprep.subr.mxu0 0.0
    %3424 = vmatpush1.msra.mxu0 0.0
    %3425 = vmatprep.subr.mxu0 0.0
    %3426 = vmatpush1.msra.mxu0 0.0
    %3427 = vmatprep.subr.mxu0 0.0
    %3428 = vmatpush1.msra.mxu0 0.0
    %3429 = vmatprep.subr.mxu0 0.0
    %3430 = vmatpush1.msra.mxu0 0.0
    %3431 = vmatprep.subr.mxu0 0.0
    %3432 = vmatpush1.msra.mxu0 0.0
    %3433 = vmatprep.mubr.f32.mxu0 0.0
    %3434 = vmatmul.mubr.f32.gmra.mrb[0].mxu0 %v3364
    %v3435 = vpop.f32.mrb[0].mxu0
    %v3436 = vadd.f32 0.0, %v3435
    %v3437 = vpop.f32.mrb[0].mxu0
    %3438 = vmatprep.mubr.f32.mxu0 0.0
    %3439 = vmatmul.mubr.f32.gmra.mrb[0].mxu0 %v3367
    %v3440 = vpop.f32.mrb[0].mxu0
    %v3441 = vadd.f32 0.0, %v3440
    %v3442 = vpop.f32.mrb[0].mxu0
    %3443 = vdwg.mxu0
    %v3445 = vsel %vm640, %v2954, 0
    %v3448 = vsel %vm640, %v3030, 0
    %3450 = vmatprep.subr.mxu0 0.0
    %3451 = vmatpush1.msra.mxu0 %v2536
    %3452 = vmatprep.subr.mxu0 0.0
    %3453 = vmatpush1.msra.mxu0 0.0
    %3454 = vmatprep.subr.mxu0 0.0
    %3455 = vmatpush1.msra.mxu0 0.0
    %3456 = vmatprep.subr.mxu0 0.0
    %3457 = vmatpush1.msra.mxu0 0.0
    %3458 = vmatprep.subr.mxu0 0.0
    %3459 = vmatpush1.msra.mxu0 0.0
    %3460 = vmatprep.subr.mxu0 0.0
    %3461 = vmatpush1.msra.mxu0 0.0
    %3462 = vmatprep.subr.mxu0 0.0
    %3463 = vmatpush1.msra.mxu0 0.0
    %3464 = vmatprep.subr.mxu0 0.0
    %3465 = vmatpush1.msra.mxu0 0.0
    %3466 = vmatprep.subr.mxu0 0.0
    %3467 = vmatpush1.msra.mxu0 0.0
    %3468 = vmatprep.subr.mxu0 0.0
    %3469 = vmatpush1.msra.mxu0 0.0
    %3470 = vmatprep.subr.mxu0 0.0
    %3471 = vmatpush1.msra.mxu0 0.0
    %3472 = vmatprep.subr.mxu0 0.0
    %3473 = vmatpush1.msra.mxu0 0.0
    %3474 = vmatprep.subr.mxu0 0.0
    %3475 = vmatpush1.msra.mxu0 0.0
    %3476 = vmatprep.subr.mxu0 0.0
    %3477 = vmatpush1.msra.mxu0 0.0
    %3478 = vmatprep.subr.mxu0 0.0
    %3479 = vmatpush1.msra.mxu0 0.0
    %3480 = vmatprep.subr.mxu0 0.0
    %3481 = vmatpush1.msra.mxu0 0.0
    %3482 = vmatprep.subr.mxu0 0.0
    %3483 = vmatpush1.msra.mxu0 0.0
    %3484 = vmatprep.subr.mxu0 0.0
    %3485 = vmatpush1.msra.mxu0 0.0
    %3486 = vmatprep.subr.mxu0 0.0
    %3487 = vmatpush1.msra.mxu0 0.0
    %3488 = vmatprep.subr.mxu0 0.0
    %3489 = vmatpush1.msra.mxu0 0.0
    %3490 = vmatprep.subr.mxu0 0.0
    %3491 = vmatpush1.msra.mxu0 0.0
    %3492 = vmatprep.subr.mxu0 0.0
    %3493 = vmatpush1.msra.mxu0 0.0
    %3494 = vmatprep.subr.mxu0 0.0
    %3495 = vmatpush1.msra.mxu0 0.0
    %3496 = vmatprep.subr.mxu0 0.0
    %3497 = vmatpush1.msra.mxu0 0.0
    %3498 = vmatprep.subr.mxu0 0.0
    %3499 = vmatpush1.msra.mxu0 0.0
    %3500 = vmatprep.subr.mxu0 0.0
    %3501 = vmatpush1.msra.mxu0 0.0
    %3502 = vmatprep.subr.mxu0 0.0
    %3503 = vmatpush1.msra.mxu0 0.0
    %3504 = vmatprep.subr.mxu0 0.0
    %3505 = vmatpush1.msra.mxu0 0.0
    %3506 = vmatprep.subr.mxu0 0.0
    %3507 = vmatpush1.msra.mxu0 0.0
    %3508 = vmatprep.subr.mxu0 0.0
    %3509 = vmatpush1.msra.mxu0 0.0
    %3510 = vmatprep.subr.mxu0 0.0
    %3511 = vmatpush1.msra.mxu0 0.0
    %3512 = vmatprep.subr.mxu0 0.0
    %3513 = vmatpush1.msra.mxu0 0.0
    %3514 = vmatprep.mubr.f32.mxu0 0.0
    %3515 = vmatmul.mubr.f32.gmra.mrb[0].mxu0 %v3445
    %v3516 = vpop.f32.mrb[0].mxu0
    %v3517 = vadd.f32 %v3436, %v3516
    %v3518 = vpop.f32.mrb[0].mxu0
    %3519 = vmatprep.mubr.f32.mxu0 0.0
    %3520 = vmatmul.mubr.f32.gmra.mrb[0].mxu0 %v3448
    %v3521 = vpop.f32.mrb[0].mxu0
    %v3522 = vadd.f32 %v3441, %v3521
    %v3523 = vpop.f32.mrb[0].mxu0
    %3524 = vdwg.mxu0
    %3525 = vrot.lane.b32.xlu0 %v2701, 112
    %v3526 = vpop.permute.xlu0 %3525
    %3527 = vrot.lane.b32.xlu0 %v2693, 80
    %v3528 = vpop.permute.xlu0 %3527
    %v3529 = vsel %vm640, %v3526, 0
    %v3531 = vsel %vm640, %v3528, 0
    %3533 = vmatprep.subr.mxu0 0.0
    %3534 = vmatpush1.xpose.msra.mxu0 %v3531
    %3535 = vmatprep.subr.mxu0 0.0
    %3536 = vmatpush1.xpose.msra.mxu0 0.0
    %3537 = vmatprep.subr.mxu0 0.0
    %3538 = vmatpush1.xpose.msra.mxu0 0.0
    %3539 = vmatprep.subr.mxu0 0.0
    %3540 = vmatpush1.xpose.msra.mxu0 0.0
    %3541 = vmatprep.subr.mxu0 0.0
    %3542 = vmatpush1.xpose.msra.mxu0 0.0
    %3543 = vmatprep.subr.mxu0 0.0
    %3544 = vmatpush1.xpose.msra.mxu0 0.0
    %3545 = vmatprep.subr.mxu0 0.0
    %3546 = vmatpush1.xpose.msra.mxu0 0.0
    %3547 = vmatprep.subr.mxu0 0.0
    %3548 = vmatpush1.xpose.msra.mxu0 0.0
    %3549 = vmatprep.subr.mxu0 0.0
    %3550 = vmatpush1.xpose.msra.mxu0 0.0
    %3551 = vmatprep.subr.mxu0 0.0
    %3552 = vmatpush1.xpose.msra.mxu0 0.0
    %3553 = vmatprep.subr.mxu0 0.0
    %3554 = vmatpush1.xpose.msra.mxu0 0.0
    %3555 = vmatprep.subr.mxu0 0.0
    %3556 = vmatpush1.xpose.msra.mxu0 0.0
    %3557 = vmatprep.subr.mxu0 0.0
    %3558 = vmatpush1.xpose.msra.mxu0 0.0
    %3559 = vmatprep.subr.mxu0 0.0
    %3560 = vmatpush1.xpose.msra.mxu0 0.0
    %3561 = vmatprep.subr.mxu0 0.0
    %3562 = vmatpush1.xpose.msra.mxu0 0.0
    %3563 = vmatprep.subr.mxu0 0.0
    %3564 = vmatpush1.xpose.msra.mxu0 0.0
    %3565 = vmatprep.subr.mxu0 0.0
    %3566 = vmatpush1.xpose.msra.mxu0 0.0
    %3567 = vmatprep.subr.mxu0 0.0
    %3568 = vmatpush1.xpose.msra.mxu0 0.0
    %3569 = vmatprep.subr.mxu0 0.0
    %3570 = vmatpush1.xpose.msra.mxu0 0.0
    %3571 = vmatprep.subr.mxu0 0.0
    %3572 = vmatpush1.xpose.msra.mxu0 0.0
    %3573 = vmatprep.subr.mxu0 0.0
    %3574 = vmatpush1.xpose.msra.mxu0 0.0
    %3575 = vmatprep.subr.mxu0 0.0
    %3576 = vmatpush1.xpose.msra.mxu0 0.0
    %3577 = vmatprep.subr.mxu0 0.0
    %3578 = vmatpush1.xpose.msra.mxu0 0.0
    %3579 = vmatprep.subr.mxu0 0.0
    %3580 = vmatpush1.xpose.msra.mxu0 0.0
    %3581 = vmatprep.subr.mxu0 0.0
    %3582 = vmatpush1.xpose.msra.mxu0 0.0
    %3583 = vmatprep.subr.mxu0 0.0
    %3584 = vmatpush1.xpose.msra.mxu0 0.0
    %3585 = vmatprep.subr.mxu0 0.0
    %3586 = vmatpush1.xpose.msra.mxu0 0.0
    %3587 = vmatprep.subr.mxu0 0.0
    %3588 = vmatpush1.xpose.msra.mxu0 0.0
    %3589 = vmatprep.subr.mxu0 0.0
    %3590 = vmatpush1.xpose.msra.mxu0 0.0
    %3591 = vmatprep.subr.mxu0 0.0
    %3592 = vmatpush1.xpose.msra.mxu0 0.0
    %3593 = vmatprep.subr.mxu0 0.0
    %3594 = vmatpush1.xpose.msra.mxu0 0.0
    %3595 = vmatprep.subr.mxu0 0.0
    %3596 = vmatpush1.xpose.msra.mxu0 0.0
    %3597 = vmatprep.mubr.f32.mxu0 0.0
    %3598 = vmatmul.mubr.f32.gmra.mrb[0].mxu0 %v3529
    %v3599 = vpop.f32.mrb[0].mxu0
    %v3600 = vadd.f32 %v470, %v3599
    %v3601 = vpop.f32.mrb[0].mxu0
    %3602 = vdwg.mxu0
    %3603 = vrot.lane.b32.xlu0 %v2702, 112
    %v3604 = vpop.permute.xlu0 %3603
    %3605 = vrot.lane.b32.xlu0 %v2698, 80
    %v3606 = vpop.permute.xlu0 %3605
    %v3607 = vsel %vm640, %v3604, 0
    %v3609 = vsel %vm640, %v3606, 0
    %3611 = vmatprep.subr.mxu0 0.0
    %3612 = vmatpush1.xpose.msra.mxu0 %v3609
    %3613 = vmatprep.subr.mxu0 0.0
    %3614 = vmatpush1.xpose.msra.mxu0 0.0
    %3615 = vmatprep.subr.mxu0 0.0
    %3616 = vmatpush1.xpose.msra.mxu0 0.0
    %3617 = vmatprep.subr.mxu0 0.0
    %3618 = vmatpush1.xpose.msra.mxu0 0.0
    %3619 = vmatprep.subr.mxu0 0.0
    %3620 = vmatpush1.xpose.msra.mxu0 0.0
    %3621 = vmatprep.subr.mxu0 0.0
    %3622 = vmatpush1.xpose.msra.mxu0 0.0
    %3623 = vmatprep.subr.mxu0 0.0
    %3624 = vmatpush1.xpose.msra.mxu0 0.0
    %3625 = vmatprep.subr.mxu0 0.0
    %3626 = vmatpush1.xpose.msra.mxu0 0.0
    %3627 = vmatprep.subr.mxu0 0.0
    %3628 = vmatpush1.xpose.msra.mxu0 0.0
    %3629 = vmatprep.subr.mxu0 0.0
    %3630 = vmatpush1.xpose.msra.mxu0 0.0
    %3631 = vmatprep.subr.mxu0 0.0
    %3632 = vmatpush1.xpose.msra.mxu0 0.0
    %3633 = vmatprep.subr.mxu0 0.0
    %3634 = vmatpush1.xpose.msra.mxu0 0.0
    %3635 = vmatprep.subr.mxu0 0.0
    %3636 = vmatpush1.xpose.msra.mxu0 0.0
    %3637 = vmatprep.subr.mxu0 0.0
    %3638 = vmatpush1.xpose.msra.mxu0 0.0
    %3639 = vmatprep.subr.mxu0 0.0
    %3640 = vmatpush1.xpose.msra.mxu0 0.0
    %3641 = vmatprep.subr.mxu0 0.0
    %3642 = vmatpush1.xpose.msra.mxu0 0.0
    %3643 = vmatprep.subr.mxu0 0.0
    %3644 = vmatpush1.xpose.msra.mxu0 0.0
    %3645 = vmatprep.subr.mxu0 0.0
    %3646 = vmatpush1.xpose.msra.mxu0 0.0
    %3647 = vmatprep.subr.mxu0 0.0
    %3648 = vmatpush1.xpose.msra.mxu0 0.0
    %3649 = vmatprep.subr.mxu0 0.0
    %3650 = vmatpush1.xpose.msra.mxu0 0.0
    %3651 = vmatprep.subr.mxu0 0.0
    %3652 = vmatpush1.xpose.msra.mxu0 0.0
    %3653 = vmatprep.subr.mxu0 0.0
    %3654 = vmatpush1.xpose.msra.mxu0 0.0
    %3655 = vmatprep.subr.mxu0 0.0
    %3656 = vmatpush1.xpose.msra.mxu0 0.0
    %3657 = vmatprep.subr.mxu0 0.0
    %3658 = vmatpush1.xpose.msra.mxu0 0.0
    %3659 = vmatprep.subr.mxu0 0.0
    %3660 = vmatpush1.xpose.msra.mxu0 0.0
    %3661 = vmatprep.subr.mxu0 0.0
    %3662 = vmatpush1.xpose.msra.mxu0 0.0
    %3663 = vmatprep.subr.mxu0 0.0
    %3664 = vmatpush1.xpose.msra.mxu0 0.0
    %3665 = vmatprep.subr.mxu0 0.0
    %3666 = vmatpush1.xpose.msra.mxu0 0.0
    %3667 = vmatprep.subr.mxu0 0.0
    %3668 = vmatpush1.xpose.msra.mxu0 0.0
    %3669 = vmatprep.subr.mxu0 0.0
    %3670 = vmatpush1.xpose.msra.mxu0 0.0
    %3671 = vmatprep.subr.mxu0 0.0
    %3672 = vmatpush1.xpose.msra.mxu0 0.0
    %3673 = vmatprep.subr.mxu0 0.0
    %3674 = vmatpush1.xpose.msra.mxu0 0.0
    %3675 = vmatprep.mubr.f32.mxu0 0.0
    %3676 = vmatmul.mubr.f32.gmra.mrb[0].mxu0 %v3607
    %v3677 = vpop.f32.mrb[0].mxu0
    %v3678 = vadd.f32 %v470, %v3677
    %v3679 = vpop.f32.mrb[0].mxu0
    %3680 = vdwg.mxu0
    %v3681 = vsel %vm640, %v3600, -inf
    %3682 = vmax.xlane.f32.xlu0 %v3681
    %v3683 = vpop.xlane.xlu0 %3682
    %v3684 = vsel %vm640, %v3678, -inf
    %3685 = vmax.xlane.f32.xlu0 %v3684
    %v3686 = vpop.xlane.xlu0 %3685
    %v3687 = vsub.f32 %v3600, %v3683
    %v3688 = vsub.f32 %v3678, %v3686
    %v3689 = vmul.f32 %v3687, 1.442695
    %v3690 = vpow.pop %v3689
    %v3691 = vmul.f32 %v3688, 1.442695
    %v3692 = vpow.pop %v3691
    %v3693 = vsel %vm640, %v3690, 0.0
    %3694 = vadd.xlane.f32.xlu0 %v3693
    %v3695 = vpop.xlane.xlu0 %3694
    %v3696 = vsel %vm640, %v3692, 0.0
    %3697 = vadd.xlane.f32.xlu0 %v3696
    %v3698 = vpop.xlane.xlu0 %3697
    %v3699 = vrcp.pop %v3695
    %v3700 = vmul.f32 %v3690, %v3699
    %v3701 = vrcp.pop %v3698
    %v3702 = vmul.f32 %v3692, %v3701
    %3703 = vrot.lane.b32.xlu0 %v2693, 48
    %v3704 = vpop.permute.xlu0 %3703
    %v3707 = vsel %vm640, %v3700, 0
    %3709 = vmatprep.subr.mxu0 0.0
    %3710 = vmatpush1.msra.mxu0 %v3704
    %3711 = vmatprep.subr.mxu0 0.0
    %3712 = vmatpush1.msra.mxu0 0.0
    %3713 = vmatprep.subr.mxu0 0.0
    %3714 = vmatpush1.msra.mxu0 0.0
    %3715 = vmatprep.subr.mxu0 0.0
    %3716 = vmatpush1.msra.mxu0 0.0
    %3717 = vmatprep.subr.mxu0 0.0
    %3718 = vmatpush1.msra.mxu0 0.0
    %3719 = vmatprep.subr.mxu0 0.0
    %3720 = vmatpush1.msra.mxu0 0.0
    %3721 = vmatprep.subr.mxu0 0.0
    %3722 = vmatpush1.msra.mxu0 0.0
    %3723 = vmatprep.subr.mxu0 0.0
    %3724 = vmatpush1.msra.mxu0 0.0
    %3725 = vmatprep.subr.mxu0 0.0
    %3726 = vmatpush1.msra.mxu0 0.0
    %3727 = vmatprep.subr.mxu0 0.0
    %3728 = vmatpush1.msra.mxu0 0.0
    %3729 = vmatprep.subr.mxu0 0.0
    %3730 = vmatpush1.msra.mxu0 0.0
    %3731 = vmatprep.subr.mxu0 0.0
    %3732 = vmatpush1.msra.mxu0 0.0
    %3733 = vmatprep.subr.mxu0 0.0
    %3734 = vmatpush1.msra.mxu0 0.0
    %3735 = vmatprep.subr.mxu0 0.0
    %3736 = vmatpush1.msra.mxu0 0.0
    %3737 = vmatprep.subr.mxu0 0.0
    %3738 = vmatpush1.msra.mxu0 0.0
    %3739 = vmatprep.subr.mxu0 0.0
    %3740 = vmatpush1.msra.mxu0 0.0
    %3741 = vmatprep.subr.mxu0 0.0
    %3742 = vmatpush1.msra.mxu0 0.0
    %3743 = vmatprep.subr.mxu0 0.0
    %3744 = vmatpush1.msra.mxu0 0.0
    %3745 = vmatprep.subr.mxu0 0.0
    %3746 = vmatpush1.msra.mxu0 0.0
    %3747 = vmatprep.subr.mxu0 0.0
    %3748 = vmatpush1.msra.mxu0 0.0
    %3749 = vmatprep.subr.mxu0 0.0
    %3750 = vmatpush1.msra.mxu0 0.0
    %3751 = vmatprep.subr.mxu0 0.0
    %3752 = vmatpush1.msra.mxu0 0.0
    %3753 = vmatprep.subr.mxu0 0.0
    %3754 = vmatpush1.msra.mxu0 0.0
    %3755 = vmatprep.subr.mxu0 0.0
    %3756 = vmatpush1.msra.mxu0 0.0
    %3757 = vmatprep.subr.mxu0 0.0
    %3758 = vmatpush1.msra.mxu0 0.0
    %3759 = vmatprep.subr.mxu0 0.0
    %3760 = vmatpush1.msra.mxu0 0.0
    %3761 = vmatprep.subr.mxu0 0.0
    %3762 = vmatpush1.msra.mxu0 0.0
    %3763 = vmatprep.subr.mxu0 0.0
    %3764 = vmatpush1.msra.mxu0 0.0
    %3765 = vmatprep.subr.mxu0 0.0
    %3766 = vmatpush1.msra.mxu0 0.0
    %3767 = vmatprep.subr.mxu0 0.0
    %3768 = vmatpush1.msra.mxu0 0.0
    %3769 = vmatprep.subr.mxu0 0.0
    %3770 = vmatpush1.msra.mxu0 0.0
    %3771 = vmatprep.subr.mxu0 0.0
    %3772 = vmatpush1.msra.mxu0 0.0
    %3773 = vmatprep.mubr.f32.mxu0 0.0
    %3774 = vmatmul.mubr.f32.gmra.mrb[0].mxu0 %v3707
    %v3775 = vpop.f32.mrb[0].mxu0
    %v3776 = vadd.f32 0.0, %v3775
    %v3777 = vpop.f32.mrb[0].mxu0
    %3778 = vdwg.mxu0
    %3779 = vrot.lane.b32.xlu0 %v2698, 48
    %v3780 = vpop.permute.xlu0 %3779
    %v3783 = vsel %vm640, %v3702, 0
    %3785 = vmatprep.subr.mxu0 0.0
    %3786 = vmatpush1.msra.mxu0 %v3780
    %3787 = vmatprep.subr.mxu0 0.0
    %3788 = vmatpush1.msra.mxu0 0.0
    %3789 = vmatprep.subr.mxu0 0.0
    %3790 = vmatpush1.msra.mxu0 0.0
    %3791 = vmatprep.subr.mxu0 0.0
    %3792 = vmatpush1.msra.mxu0 0.0
    %3793 = vmatprep.subr.mxu0 0.0
    %3794 = vmatpush1.msra.mxu0 0.0
    %3795 = vmatprep.subr.mxu0 0.0
    %3796 = vmatpush1.msra.mxu0 0.0
    %3797 = vmatprep.subr.mxu0 0.0
    %3798 = vmatpush1.msra.mxu0 0.0
    %3799 = vmatprep.subr.mxu0 0.0
    %3800 = vmatpush1.msra.mxu0 0.0
    %3801 = vmatprep.subr.mxu0 0.0
    %3802 = vmatpush1.msra.mxu0 0.0
    %3803 = vmatprep.subr.mxu0 0.0
    %3804 = vmatpush1.msra.mxu0 0.0
    %3805 = vmatprep.subr.mxu0 0.0
    %3806 = vmatpush1.msra.mxu0 0.0
    %3807 = vmatprep.subr.mxu0 0.0
    %3808 = vmatpush1.msra.mxu0 0.0
    %3809 = vmatprep.subr.mxu0 0.0
    %3810 = vmatpush1.msra.mxu0 0.0
    %3811 = vmatprep.subr.mxu0 0.0
    %3812 = vmatpush1.msra.mxu0 0.0
    %3813 = vmatprep.subr.mxu0 0.0
    %3814 = vmatpush1.msra.mxu0 0.0
    %3815 = vmatprep.subr.mxu0 0.0
    %3816 = vmatpush1.msra.mxu0 0.0
    %3817 = vmatprep.subr.mxu0 0.0
    %3818 = vmatpush1.msra.mxu0 0.0
    %3819 = vmatprep.subr.mxu0 0.0
    %3820 = vmatpush1.msra.mxu0 0.0
    %3821 = vmatprep.subr.mxu0 0.0
    %3822 = vmatpush1.msra.mxu0 0.0
    %3823 = vmatprep.subr.mxu0 0.0
    %3824 = vmatpush1.msra.mxu0 0.0
    %3825 = vmatprep.subr.mxu0 0.0
    %3826 = vmatpush1.msra.mxu0 0.0
    %3827 = vmatprep.subr.mxu0 0.0
    %3828 = vmatpush1.msra.mxu0 0.0
    %3829 = vmatprep.subr.mxu0 0.0
    %3830 = vmatpush1.msra.mxu0 0.0
    %3831 = vmatprep.subr.mxu0 0.0
    %3832 = vmatpush1.msra.mxu0 0.0
    %3833 = vmatprep.subr.mxu0 0.0
    %3834 = vmatpush1.msra.mxu0 0.0
    %3835 = vmatprep.subr.mxu0 0.0
    %3836 = vmatpush1.msra.mxu0 0.0
    %3837 = vmatprep.subr.mxu0 0.0
    %3838 = vmatpush1.msra.mxu0 0.0
    %3839 = vmatprep.subr.mxu0 0.0
    %3840 = vmatpush1.msra.mxu0 0.0
    %3841 = vmatprep.subr.mxu0 0.0
    %3842 = vmatpush1.msra.mxu0 0.0
    %3843 = vmatprep.subr.mxu0 0.0
    %3844 = vmatpush1.msra.mxu0 0.0
    %3845 = vmatprep.subr.mxu0 0.0
    %3846 = vmatpush1.msra.mxu0 0.0
    %3847 = vmatprep.subr.mxu0 0.0
    %3848 = vmatpush1.msra.mxu0 0.0
    %3849 = vmatprep.mubr.f32.mxu0 0.0
    %3850 = vmatmul.mubr.f32.gmra.mrb[0].mxu0 %v3783
    %v3851 = vpop.f32.mrb[0].mxu0
    %v3852 = vadd.f32 0.0, %v3851
    %v3853 = vpop.f32.mrb[0].mxu0
    %3854 = vdwg.mxu0
    %v3856 = vsel %vm640, %v3776, 0
    %v3859 = vsel %vm640, %v3852, 0
    %3861 = vmatprep.subr.mxu0 0.0
    %3862 = vmatpush1.msra.mxu0 %v2538
    %3863 = vmatprep.subr.mxu0 0.0
    %3864 = vmatpush1.msra.mxu0 0.0
    %3865 = vmatprep.subr.mxu0 0.0
    %3866 = vmatpush1.msra.mxu0 0.0
    %3867 = vmatprep.subr.mxu0 0.0
    %3868 = vmatpush1.msra.mxu0 0.0
    %3869 = vmatprep.subr.mxu0 0.0
    %3870 = vmatpush1.msra.mxu0 0.0
    %3871 = vmatprep.subr.mxu0 0.0
    %3872 = vmatpush1.msra.mxu0 0.0
    %3873 = vmatprep.subr.mxu0 0.0
    %3874 = vmatpush1.msra.mxu0 0.0
    %3875 = vmatprep.subr.mxu0 0.0
    %3876 = vmatpush1.msra.mxu0 0.0
    %3877 = vmatprep.subr.mxu0 0.0
    %3878 = vmatpush1.msra.mxu0 0.0
    %3879 = vmatprep.subr.mxu0 0.0
    %3880 = vmatpush1.msra.mxu0 0.0
    %3881 = vmatprep.subr.mxu0 0.0
    %3882 = vmatpush1.msra.mxu0 0.0
    %3883 = vmatprep.subr.mxu0 0.0
    %3884 = vmatpush1.msra.mxu0 0.0
    %3885 = vmatprep.subr.mxu0 0.0
    %3886 = vmatpush1.msra.mxu0 0.0
    %3887 = vmatprep.subr.mxu0 0.0
    %3888 = vmatpush1.msra.mxu0 0.0
    %3889 = vmatprep.subr.mxu0 0.0
    %3890 = vmatpush1.msra.mxu0 0.0
    %3891 = vmatprep.subr.mxu0 0.0
    %3892 = vmatpush1.msra.mxu0 0.0
    %3893 = vmatprep.subr.mxu0 0.0
    %3894 = vmatpush1.msra.mxu0 0.0
    %3895 = vmatprep.subr.mxu0 0.0
    %3896 = vmatpush1.msra.mxu0 0.0
    %3897 = vmatprep.subr.mxu0 0.0
    %3898 = vmatpush1.msra.mxu0 0.0
    %3899 = vmatprep.subr.mxu0 0.0
    %3900 = vmatpush1.msra.mxu0 0.0
    %3901 = vmatprep.subr.mxu0 0.0
    %3902 = vmatpush1.msra.mxu0 0.0
    %3903 = vmatprep.subr.mxu0 0.0
    %3904 = vmatpush1.msra.mxu0 0.0
    %3905 = vmatprep.subr.mxu0 0.0
    %3906 = vmatpush1.msra.mxu0 0.0
    %3907 = vmatprep.subr.mxu0 0.0
    %3908 = vmatpush1.msra.mxu0 0.0
    %3909 = vmatprep.subr.mxu0 0.0
    %3910 = vmatpush1.msra.mxu0 0.0
    %3911 = vmatprep.subr.mxu0 0.0
    %3912 = vmatpush1.msra.mxu0 0.0
    %3913 = vmatprep.subr.mxu0 0.0
    %3914 = vmatpush1.msra.mxu0 0.0
    %3915 = vmatprep.subr.mxu0 0.0
    %3916 = vmatpush1.msra.mxu0 0.0
    %3917 = vmatprep.subr.mxu0 0.0
    %3918 = vmatpush1.msra.mxu0 0.0
    %3919 = vmatprep.subr.mxu0 0.0
    %3920 = vmatpush1.msra.mxu0 0.0
    %3921 = vmatprep.subr.mxu0 0.0
    %3922 = vmatpush1.msra.mxu0 0.0
    %3923 = vmatprep.subr.mxu0 0.0
    %3924 = vmatpush1.msra.mxu0 0.0
    %3925 = vmatprep.mubr.f32.mxu0 0.0
    %3926 = vmatmul.mubr.f32.gmra.mrb[0].mxu0 %v3856
    %v3927 = vpop.f32.mrb[0].mxu0
    %v3928 = vadd.f32 0.0, %v3927
    %v3929 = vpop.f32.mrb[0].mxu0
    %3930 = vmatprep.mubr.f32.mxu0 0.0
    %3931 = vmatmul.mubr.f32.gmra.mrb[0].mxu0 %v3859
    %v3932 = vpop.f32.mrb[0].mxu0
    %v3933 = vadd.f32 0.0, %v3932
    %v3934 = vpop.f32.mrb[0].mxu0
    %3935 = vdwg.mxu0
    %v3936 = vadd.f32 %v3517, %v3928
    %v3937 = vadd.f32 %v3522, %v3933
    %3938 = vrot.lane.b32.xlu0 %v2701, 104
    %v3939 = vpop.permute.xlu0 %3938
    %3940 = vrot.lane.b32.xlu0 %v2693, 72
    %v3941 = vpop.permute.xlu0 %3940
    %v3942 = vsel %vm640, %v3939, 0
    %v3944 = vsel %vm640, %v3941, 0
    %3946 = vmatprep.subr.mxu0 0.0
    %3947 = vmatpush1.xpose.msra.mxu0 %v3944
    %3948 = vmatprep.subr.mxu0 0.0
    %3949 = vmatpush1.xpose.msra.mxu0 0.0
    %3950 = vmatprep.subr.mxu0 0.0
    %3951 = vmatpush1.xpose.msra.mxu0 0.0
    %3952 = vmatprep.subr.mxu0 0.0
    %3953 = vmatpush1.xpose.msra.mxu0 0.0
    %3954 = vmatprep.subr.mxu0 0.0
    %3955 = vmatpush1.xpose.msra.mxu0 0.0
    %3956 = vmatprep.subr.mxu0 0.0
    %3957 = vmatpush1.xpose.msra.mxu0 0.0
    %3958 = vmatprep.subr.mxu0 0.0
    %3959 = vmatpush1.xpose.msra.mxu0 0.0
    %3960 = vmatprep.subr.mxu0 0.0
    %3961 = vmatpush1.xpose.msra.mxu0 0.0
    %3962 = vmatprep.subr.mxu0 0.0
    %3963 = vmatpush1.xpose.msra.mxu0 0.0
    %3964 = vmatprep.subr.mxu0 0.0
    %3965 = vmatpush1.xpose.msra.mxu0 0.0
    %3966 = vmatprep.subr.mxu0 0.0
    %3967 = vmatpush1.xpose.msra.mxu0 0.0
    %3968 = vmatprep.subr.mxu0 0.0
    %3969 = vmatpush1.xpose.msra.mxu0 0.0
    %3970 = vmatprep.subr.mxu0 0.0
    %3971 = vmatpush1.xpose.msra.mxu0 0.0
    %3972 = vmatprep.subr.mxu0 0.0
    %3973 = vmatpush1.xpose.msra.mxu0 0.0
    %3974 = vmatprep.subr.mxu0 0.0
    %3975 = vmatpush1.xpose.msra.mxu0 0.0
    %3976 = vmatprep.subr.mxu0 0.0
    %3977 = vmatpush1.xpose.msra.mxu0 0.0
    %3978 = vmatprep.subr.mxu0 0.0
    %3979 = vmatpush1.xpose.msra.mxu0 0.0
    %3980 = vmatprep.subr.mxu0 0.0
    %3981 = vmatpush1.xpose.msra.mxu0 0.0
    %3982 = vmatprep.subr.mxu0 0.0
    %3983 = vmatpush1.xpose.msra.mxu0 0.0
    %3984 = vmatprep.subr.mxu0 0.0
    %3985 = vmatpush1.xpose.msra.mxu0 0.0
    %3986 = vmatprep.subr.mxu0 0.0
    %3987 = vmatpush1.xpose.msra.mxu0 0.0
    %3988 = vmatprep.subr.mxu0 0.0
    %3989 = vmatpush1.xpose.msra.mxu0 0.0
    %3990 = vmatprep.subr.mxu0 0.0
    %3991 = vmatpush1.xpose.msra.mxu0 0.0
    %3992 = vmatprep.subr.mxu0 0.0
    %3993 = vmatpush1.xpose.msra.mxu0 0.0
    %3994 = vmatprep.subr.mxu0 0.0
    %3995 = vmatpush1.xpose.msra.mxu0 0.0
    %3996 = vmatprep.subr.mxu0 0.0
    %3997 = vmatpush1.xpose.msra.mxu0 0.0
    %3998 = vmatprep.subr.mxu0 0.0
    %3999 = vmatpush1.xpose.msra.mxu0 0.0
    %4000 = vmatprep.subr.mxu0 0.0
    %4001 = vmatpush1.xpose.msra.mxu0 0.0
    %4002 = vmatprep.subr.mxu0 0.0
    %4003 = vmatpush1.xpose.msra.mxu0 0.0
    %4004 = vmatprep.subr.mxu0 0.0
    %4005 = vmatpush1.xpose.msra.mxu0 0.0
    %4006 = vmatprep.subr.mxu0 0.0
    %4007 = vmatpush1.xpose.msra.mxu0 0.0
    %4008 = vmatprep.subr.mxu0 0.0
    %4009 = vmatpush1.xpose.msra.mxu0 0.0
    %4010 = vmatprep.mubr.f32.mxu0 0.0
    %4011 = vmatmul.mubr.f32.gmra.mrb[0].mxu0 %v3942
    %v4012 = vpop.f32.mrb[0].mxu0
    %v4013 = vadd.f32 %v470, %v4012
    %v4014 = vpop.f32.mrb[0].mxu0
    %4015 = vdwg.mxu0
    %4016 = vrot.lane.b32.xlu0 %v2702, 104
    %v4017 = vpop.permute.xlu0 %4016
    %4018 = vrot.lane.b32.xlu0 %v2698, 72
    %v4019 = vpop.permute.xlu0 %4018
    %v4020 = vsel %vm640, %v4017, 0
    %v4022 = vsel %vm640, %v4019, 0
    %4024 = vmatprep.subr.mxu0 0.0
    %4025 = vmatpush1.xpose.msra.mxu0 %v4022
    %4026 = vmatprep.subr.mxu0 0.0
    %4027 = vmatpush1.xpose.msra.mxu0 0.0
    %4028 = vmatprep.subr.mxu0 0.0
    %4029 = vmatpush1.xpose.msra.mxu0 0.0
    %4030 = vmatprep.subr.mxu0 0.0
    %4031 = vmatpush1.xpose.msra.mxu0 0.0
    %4032 = vmatprep.subr.mxu0 0.0
    %4033 = vmatpush1.xpose.msra.mxu0 0.0
    %4034 = vmatprep.subr.mxu0 0.0
    %4035 = vmatpush1.xpose.msra.mxu0 0.0
    %4036 = vmatprep.subr.mxu0 0.0
    %4037 = vmatpush1.xpose.msra.mxu0 0.0
    %4038 = vmatprep.subr.mxu0 0.0
    %4039 = vmatpush1.xpose.msra.mxu0 0.0
    %4040 = vmatprep.subr.mxu0 0.0
    %4041 = vmatpush1.xpose.msra.mxu0 0.0
    %4042 = vmatprep.subr.mxu0 0.0
    %4043 = vmatpush1.xpose.msra.mxu0 0.0
    %4044 = vmatprep.subr.mxu0 0.0
    %4045 = vmatpush1.xpose.msra.mxu0 0.0
    %4046 = vmatprep.subr.mxu0 0.0
    %4047 = vmatpush1.xpose.msra.mxu0 0.0
    %4048 = vmatprep.subr.mxu0 0.0
    %4049 = vmatpush1.xpose.msra.mxu0 0.0
    %4050 = vmatprep.subr.mxu0 0.0
    %4051 = vmatpush1.xpose.msra.mxu0 0.0
    %4052 = vmatprep.subr.mxu0 0.0
    %4053 = vmatpush1.xpose.msra.mxu0 0.0
    %4054 = vmatprep.subr.mxu0 0.0
    %4055 = vmatpush1.xpose.msra.mxu0 0.0
    %4056 = vmatprep.subr.mxu0 0.0
    %4057 = vmatpush1.xpose.msra.mxu0 0.0
    %4058 = vmatprep.subr.mxu0 0.0
    %4059 = vmatpush1.xpose.msra.mxu0 0.0
    %4060 = vmatprep.subr.mxu0 0.0
    %4061 = vmatpush1.xpose.msra.mxu0 0.0
    %4062 = vmatprep.subr.mxu0 0.0
    %4063 = vmatpush1.xpose.msra.mxu0 0.0
    %4064 = vmatprep.subr.mxu0 0.0
    %4065 = vmatpush1.xpose.msra.mxu0 0.0
    %4066 = vmatprep.subr.mxu0 0.0
    %4067 = vmatpush1.xpose.msra.mxu0 0.0
    %4068 = vmatprep.subr.mxu0 0.0
    %4069 = vmatpush1.xpose.msra.mxu0 0.0
    %4070 = vmatprep.subr.mxu0 0.0
    %4071 = vmatpush1.xpose.msra.mxu0 0.0
    %4072 = vmatprep.subr.mxu0 0.0
    %4073 = vmatpush1.xpose.msra.mxu0 0.0
    %4074 = vmatprep.subr.mxu0 0.0
    %4075 = vmatpush1.xpose.msra.mxu0 0.0
    %4076 = vmatprep.subr.mxu0 0.0
    %4077 = vmatpush1.xpose.msra.mxu0 0.0
    %4078 = vmatprep.subr.mxu0 0.0
    %4079 = vmatpush1.xpose.msra.mxu0 0.0
    %4080 = vmatprep.subr.mxu0 0.0
    %4081 = vmatpush1.xpose.msra.mxu0 0.0
    %4082 = vmatprep.subr.mxu0 0.0
    %4083 = vmatpush1.xpose.msra.mxu0 0.0
    %4084 = vmatprep.subr.mxu0 0.0
    %4085 = vmatpush1.xpose.msra.mxu0 0.0
    %4086 = vmatprep.subr.mxu0 0.0
    %4087 = vmatpush1.xpose.msra.mxu0 0.0
    %4088 = vmatprep.mubr.f32.mxu0 0.0
    %4089 = vmatmul.mubr.f32.gmra.mrb[0].mxu0 %v4020
    %v4090 = vpop.f32.mrb[0].mxu0
    %v4091 = vadd.f32 %v470, %v4090
    %v4092 = vpop.f32.mrb[0].mxu0
    %4093 = vdwg.mxu0
    %v4094 = vsel %vm640, %v4013, -inf
    %4095 = vmax.xlane.f32.xlu0 %v4094
    %v4096 = vpop.xlane.xlu0 %4095
    %v4097 = vsel %vm640, %v4091, -inf
    %4098 = vmax.xlane.f32.xlu0 %v4097
    %v4099 = vpop.xlane.xlu0 %4098
    %v4100 = vsub.f32 %v4013, %v4096
    %v4101 = vsub.f32 %v4091, %v4099
    %v4102 = vmul.f32 %v4100, 1.442695
    %v4103 = vpow.pop %v4102
    %v4104 = vmul.f32 %v4101, 1.442695
    %v4105 = vpow.pop %v4104
    %v4106 = vsel %vm640, %v4103, 0.0
    %4107 = vadd.xlane.f32.xlu0 %v4106
    %v4108 = vpop.xlane.xlu0 %4107
    %v4109 = vsel %vm640, %v4105, 0.0
    %4110 = vadd.xlane.f32.xlu0 %v4109
    %v4111 = vpop.xlane.xlu0 %4110
    %v4112 = vrcp.pop %v4108
    %v4113 = vmul.f32 %v4103, %v4112
    %v4114 = vrcp.pop %v4111
    %v4115 = vmul.f32 %v4105, %v4114
    %4116 = vrot.lane.b32.xlu0 %v2693, 40
    %v4117 = vpop.permute.xlu0 %4116
    %v4120 = vsel %vm640, %v4113, 0
    %4122 = vmatprep.subr.mxu0 0.0
    %4123 = vmatpush1.msra.mxu0 %v4117
    %4124 = vmatprep.subr.mxu0 0.0
    %4125 = vmatpush1.msra.mxu0 0.0
    %4126 = vmatprep.subr.mxu0 0.0
    %4127 = vmatpush1.msra.mxu0 0.0
    %4128 = vmatprep.subr.mxu0 0.0
    %4129 = vmatpush1.msra.mxu0 0.0
    %4130 = vmatprep.subr.mxu0 0.0
    %4131 = vmatpush1.msra.mxu0 0.0
    %4132 = vmatprep.subr.mxu0 0.0
    %4133 = vmatpush1.msra.mxu0 0.0
    %4134 = vmatprep.subr.mxu0 0.0
    %4135 = vmatpush1.msra.mxu0 0.0
    %4136 = vmatprep.subr.mxu0 0.0
    %4137 = vmatpush1.msra.mxu0 0.0
    %4138 = vmatprep.subr.mxu0 0.0
    %4139 = vmatpush1.msra.mxu0 0.0
    %4140 = vmatprep.subr.mxu0 0.0
    %4141 = vmatpush1.msra.mxu0 0.0
    %4142 = vmatprep.subr.mxu0 0.0
    %4143 = vmatpush1.msra.mxu0 0.0
    %4144 = vmatprep.subr.mxu0 0.0
    %4145 = vmatpush1.msra.mxu0 0.0
    %4146 = vmatprep.subr.mxu0 0.0
    %4147 = vmatpush1.msra.mxu0 0.0
    %4148 = vmatprep.subr.mxu0 0.0
    %4149 = vmatpush1.msra.mxu0 0.0
    %4150 = vmatprep.subr.mxu0 0.0
    %4151 = vmatpush1.msra.mxu0 0.0
    %4152 = vmatprep.subr.mxu0 0.0
    %4153 = vmatpush1.msra.mxu0 0.0
    %4154 = vmatprep.subr.mxu0 0.0
    %4155 = vmatpush1.msra.mxu0 0.0
    %4156 = vmatprep.subr.mxu0 0.0
    %4157 = vmatpush1.msra.mxu0 0.0
    %4158 = vmatprep.subr.mxu0 0.0
    %4159 = vmatpush1.msra.mxu0 0.0
    %4160 = vmatprep.subr.mxu0 0.0
    %4161 = vmatpush1.msra.mxu0 0.0
    %4162 = vmatprep.subr.mxu0 0.0
    %4163 = vmatpush1.msra.mxu0 0.0
    %4164 = vmatprep.subr.mxu0 0.0
    %4165 = vmatpush1.msra.mxu0 0.0
    %4166 = vmatprep.subr.mxu0 0.0
    %4167 = vmatpush1.msra.mxu0 0.0
    %4168 = vmatprep.subr.mxu0 0.0
    %4169 = vmatpush1.msra.mxu0 0.0
    %4170 = vmatprep.subr.mxu0 0.0
    %4171 = vmatpush1.msra.mxu0 0.0
    %4172 = vmatprep.subr.mxu0 0.0
    %4173 = vmatpush1.msra.mxu0 0.0
    %4174 = vmatprep.subr.mxu0 0.0
    %4175 = vmatpush1.msra.mxu0 0.0
    %4176 = vmatprep.subr.mxu0 0.0
    %4177 = vmatpush1.msra.mxu0 0.0
    %4178 = vmatprep.subr.mxu0 0.0
    %4179 = vmatpush1.msra.mxu0 0.0
    %4180 = vmatprep.subr.mxu0 0.0
    %4181 = vmatpush1.msra.mxu0 0.0
    %4182 = vmatprep.subr.mxu0 0.0
    %4183 = vmatpush1.msra.mxu0 0.0
    %4184 = vmatprep.subr.mxu0 0.0
    %4185 = vmatpush1.msra.mxu0 0.0
    %4186 = vmatprep.mubr.f32.mxu0 0.0
    %4187 = vmatmul.mubr.f32.gmra.mrb[0].mxu0 %v4120
    %v4188 = vpop.f32.mrb[0].mxu0
    %v4189 = vadd.f32 0.0, %v4188
    %v4190 = vpop.f32.mrb[0].mxu0
    %4191 = vdwg.mxu0
    %4192 = vrot.lane.b32.xlu0 %v2698, 40
    %v4193 = vpop.permute.xlu0 %4192
    %v4196 = vsel %vm640, %v4115, 0
    %4198 = vmatprep.subr.mxu0 0.0
    %4199 = vmatpush1.msra.mxu0 %v4193
    %4200 = vmatprep.subr.mxu0 0.0
    %4201 = vmatpush1.msra.mxu0 0.0
    %4202 = vmatprep.subr.mxu0 0.0
    %4203 = vmatpush1.msra.mxu0 0.0
    %4204 = vmatprep.subr.mxu0 0.0
    %4205 = vmatpush1.msra.mxu0 0.0
    %4206 = vmatprep.subr.mxu0 0.0
    %4207 = vmatpush1.msra.mxu0 0.0
    %4208 = vmatprep.subr.mxu0 0.0
    %4209 = vmatpush1.msra.mxu0 0.0
    %4210 = vmatprep.subr.mxu0 0.0
    %4211 = vmatpush1.msra.mxu0 0.0
    %4212 = vmatprep.subr.mxu0 0.0
    %4213 = vmatpush1.msra.mxu0 0.0
    %4214 = vmatprep.subr.mxu0 0.0
    %4215 = vmatpush1.msra.mxu0 0.0
    %4216 = vmatprep.subr.mxu0 0.0
    %4217 = vmatpush1.msra.mxu0 0.0
    %4218 = vmatprep.subr.mxu0 0.0
    %4219 = vmatpush1.msra.mxu0 0.0
    %4220 = vmatprep.subr.mxu0 0.0
    %4221 = vmatpush1.msra.mxu0 0.0
    %4222 = vmatprep.subr.mxu0 0.0
    %4223 = vmatpush1.msra.mxu0 0.0
    %4224 = vmatprep.subr.mxu0 0.0
    %4225 = vmatpush1.msra.mxu0 0.0
    %4226 = vmatprep.subr.mxu0 0.0
    %4227 = vmatpush1.msra.mxu0 0.0
    %4228 = vmatprep.subr.mxu0 0.0
    %4229 = vmatpush1.msra.mxu0 0.0
    %4230 = vmatprep.subr.mxu0 0.0
    %4231 = vmatpush1.msra.mxu0 0.0
    %4232 = vmatprep.subr.mxu0 0.0
    %4233 = vmatpush1.msra.mxu0 0.0
    %4234 = vmatprep.subr.mxu0 0.0
    %4235 = vmatpush1.msra.mxu0 0.0
    %4236 = vmatprep.subr.mxu0 0.0
    %4237 = vmatpush1.msra.mxu0 0.0
    %4238 = vmatprep.subr.mxu0 0.0
    %4239 = vmatpush1.msra.mxu0 0.0
    %4240 = vmatprep.subr.mxu0 0.0
    %4241 = vmatpush1.msra.mxu0 0.0
    %4242 = vmatprep.subr.mxu0 0.0
    %4243 = vmatpush1.msra.mxu0 0.0
    %4244 = vmatprep.subr.mxu0 0.0
    %4245 = vmatpush1.msra.mxu0 0.0
    %4246 = vmatprep.subr.mxu0 0.0
    %4247 = vmatpush1.msra.mxu0 0.0
    %4248 = vmatprep.subr.mxu0 0.0
    %4249 = vmatpush1.msra.mxu0 0.0
    %4250 = vmatprep.subr.mxu0 0.0
    %4251 = vmatpush1.msra.mxu0 0.0
    %4252 = vmatprep.subr.mxu0 0.0
    %4253 = vmatpush1.msra.mxu0 0.0
    %4254 = vmatprep.subr.mxu0 0.0
    %4255 = vmatpush1.msra.mxu0 0.0
    %4256 = vmatprep.subr.mxu0 0.0
    %4257 = vmatpush1.msra.mxu0 0.0
    %4258 = vmatprep.subr.mxu0 0.0
    %4259 = vmatpush1.msra.mxu0 0.0
    %4260 = vmatprep.subr.mxu0 0.0
    %4261 = vmatpush1.msra.mxu0 0.0
    %4262 = vmatprep.mubr.f32.mxu0 0.0
    %4263 = vmatmul.mubr.f32.gmra.mrb[0].mxu0 %v4196
    %v4264 = vpop.f32.mrb[0].mxu0
    %v4265 = vadd.f32 0.0, %v4264
    %v4266 = vpop.f32.mrb[0].mxu0
    %4267 = vdwg.mxu0
    %v4269 = vsel %vm640, %v4189, 0
    %v4272 = vsel %vm640, %v4265, 0
    %4274 = vmatprep.subr.mxu0 0.0
    %4275 = vmatpush1.msra.mxu0 %v2539
    %4276 = vmatprep.subr.mxu0 0.0
    %4277 = vmatpush1.msra.mxu0 0.0
    %4278 = vmatprep.subr.mxu0 0.0
    %4279 = vmatpush1.msra.mxu0 0.0
    %4280 = vmatprep.subr.mxu0 0.0
    %4281 = vmatpush1.msra.mxu0 0.0
    %4282 = vmatprep.subr.mxu0 0.0
    %4283 = vmatpush1.msra.mxu0 0.0
    %4284 = vmatprep.subr.mxu0 0.0
    %4285 = vmatpush1.msra.mxu0 0.0
    %4286 = vmatprep.subr.mxu0 0.0
    %4287 = vmatpush1.msra.mxu0 0.0
    %4288 = vmatprep.subr.mxu0 0.0
    %4289 = vmatpush1.msra.mxu0 0.0
    %4290 = vmatprep.subr.mxu0 0.0
    %4291 = vmatpush1.msra.mxu0 0.0
    %4292 = vmatprep.subr.mxu0 0.0
    %4293 = vmatpush1.msra.mxu0 0.0
    %4294 = vmatprep.subr.mxu0 0.0
    %4295 = vmatpush1.msra.mxu0 0.0
    %4296 = vmatprep.subr.mxu0 0.0
    %4297 = vmatpush1.msra.mxu0 0.0
    %4298 = vmatprep.subr.mxu0 0.0
    %4299 = vmatpush1.msra.mxu0 0.0
    %4300 = vmatprep.subr.mxu0 0.0
    %4301 = vmatpush1.msra.mxu0 0.0
    %4302 = vmatprep.subr.mxu0 0.0
    %4303 = vmatpush1.msra.mxu0 0.0
    %4304 = vmatprep.subr.mxu0 0.0
    %4305 = vmatpush1.msra.mxu0 0.0
    %4306 = vmatprep.subr.mxu0 0.0
    %4307 = vmatpush1.msra.mxu0 0.0
    %4308 = vmatprep.subr.mxu0 0.0
    %4309 = vmatpush1.msra.mxu0 0.0
    %4310 = vmatprep.subr.mxu0 0.0
    %4311 = vmatpush1.msra.mxu0 0.0
    %4312 = vmatprep.subr.mxu0 0.0
    %4313 = vmatpush1.msra.mxu0 0.0
    %4314 = vmatprep.subr.mxu0 0.0
    %4315 = vmatpush1.msra.mxu0 0.0
    %4316 = vmatprep.subr.mxu0 0.0
    %4317 = vmatpush1.msra.mxu0 0.0
    %4318 = vmatprep.subr.mxu0 0.0
    %4319 = vmatpush1.msra.mxu0 0.0
    %4320 = vmatprep.subr.mxu0 0.0
    %4321 = vmatpush1.msra.mxu0 0.0
    %4322 = vmatprep.subr.mxu0 0.0
    %4323 = vmatpush1.msra.mxu0 0.0
    %4324 = vmatprep.subr.mxu0 0.0
    %4325 = vmatpush1.msra.mxu0 0.0
    %4326 = vmatprep.subr.mxu0 0.0
    %4327 = vmatpush1.msra.mxu0 0.0
    %4328 = vmatprep.subr.mxu0 0.0
    %4329 = vmatpush1.msra.mxu0 0.0
    %4330 = vmatprep.subr.mxu0 0.0
    %4331 = vmatpush1.msra.mxu0 0.0
    %4332 = vmatprep.subr.mxu0 0.0
    %4333 = vmatpush1.msra.mxu0 0.0
    %4334 = vmatprep.subr.mxu0 0.0
    %4335 = vmatpush1.msra.mxu0 0.0
    %4336 = vmatprep.subr.mxu0 0.0
    %4337 = vmatpush1.msra.mxu0 0.0
    %4338 = vmatprep.mubr.f32.mxu0 0.0
    %4339 = vmatmul.mubr.f32.gmra.mrb[0].mxu0 %v4269
    %v4340 = vpop.f32.mrb[0].mxu0
    %v4341 = vadd.f32 0.0, %v4340
    %v4342 = vpop.f32.mrb[0].mxu0
    %4343 = vmatprep.mubr.f32.mxu0 0.0
    %4344 = vmatmul.mubr.f32.gmra.mrb[0].mxu0 %v4272
    %v4345 = vpop.f32.mrb[0].mxu0
    %v4346 = vadd.f32 0.0, %v4345
    %v4347 = vpop.f32.mrb[0].mxu0
    %4348 = vdwg.mxu0
    %v4349 = vadd.f32 %v3936, %v4341
    %v4350 = vadd.f32 %v3937, %v4346
    %v4351 = vadd.f32 %v2526, %v4349
    %v4352 = vadd.f32 %v2527, %v4350
    %v4354 = vlaneseq
    %v4355 = vshrl.u32 %v4354, 7
    %v4356 = vsub.s32 0, %v4355
    %v4357 = vrot.slane %v2541, %v4356
    %v4359 = vadd.f32 %v4351, %v4357
    %v4360 = vadd.f32 %v4352, %v4357
    %s4361 = scalar_lea.vmem %s16, 1
    %v4362 = vld [vmem:[%s4361] sm:$0x1]
    %s4363 = scalar_lea.vmem %s17, 1
    %v4364 = vld [vmem:[%s4363] sm:$0x1]
    %v4365 = vsel %vm394, %v4359, 0.0
    %4366 = vadd.xlane.f32.xlu0 %v4365
    %v4367 = vpop.xlane.xlu0 %4366
    %v4368 = vsel %vm394, %v4360, 0.0
    %4369 = vadd.xlane.f32.xlu0 %v4368
    %v4370 = vpop.xlane.xlu0 %4369
    %v4371 = vmul.f32 %v4367, %v511
    %v4372 = vmul.f32 %v4370, %v511
    %v4373 = vsub.f32 %v4359, %v4371
    %v4374 = vsub.f32 %v4360, %v4372
    %v4375 = vmul.f32 %v4373, %v4373
    %v4376 = vmul.f32 %v4374, %v4374
    %v4377 = vsel %vm394, %v4375, 0.0
    %4378 = vadd.xlane.f32.xlu0 %v4377
    %v4379 = vpop.xlane.xlu0 %4378
    %v4380 = vsel %vm394, %v4376, 0.0
    %4381 = vadd.xlane.f32.xlu0 %v4380
    %v4382 = vpop.xlane.xlu0 %4381
    %v4383 = vmul.f32 %v4379, %v511
    %v4384 = vmul.f32 %v4382, %v511
    %v4385 = vadd.f32 %v4383, 1e-05
    %v4386 = vadd.f32 %v4384, 1e-05
    %v4387 = vrsqrt.pop %v4385
    %v4388 = vrsqrt.pop %v4386
    %v4389 = vmul.f32 %v4373, %v4387
    %v4390 = vmul.f32 %v4374, %v4388
    %v4392 = vlaneseq
    %v4393 = vshrl.u32 %v4392, 7
    %v4394 = vsub.s32 0, %v4393
    %v4395 = vrot.slane %v4362, %v4394
    %v4397 = vmul.f32 %v4389, %v4395
    %v4398 = vmul.f32 %v4390, %v4395
    %v4400 = vlaneseq
    %v4401 = vshrl.u32 %v4400, 7
    %v4402 = vsub.s32 0, %v4401
    %v4403 = vrot.slane %v4364, %v4402
    %v4405 = vadd.f32 %v4397, %v4403
    %v4406 = vadd.f32 %v4398, %v4403
    %v4408 = vlaneseq
    %v4409 = vshrl.u32 %v4408, 7
    %v4410 = vsub.s32 0, %v4409
    %v4411 = vrot.slane %v2548, %v4410
    %v4414 = vsel %vm394, %v4405, 0
    %v4417 = vsel %vm394, %v4406, 0
    %4419 = vmatprep.subr.mxu0 0.0
    %4420 = vmatpush1.msra.mxu0 %v2543
    %4421 = vmatprep.subr.mxu0 0.0
    %4422 = vmatpush1.msra.mxu0 %v2544
    %4423 = vmatprep.subr.mxu0 0.0
    %4424 = vmatpush1.msra.mxu0 %v2545
    %4425 = vmatprep.subr.mxu0 0.0
    %4426 = vmatpush1.msra.mxu0 %v2546
    %4427 = vmatprep.subr.mxu0 0.0
    %4428 = vmatpush1.msra.mxu0 0.0
    %4429 = vmatprep.subr.mxu0 0.0
    %4430 = vmatpush1.msra.mxu0 0.0
    %4431 = vmatprep.subr.mxu0 0.0
    %4432 = vmatpush1.msra.mxu0 0.0
    %4433 = vmatprep.subr.mxu0 0.0
    %4434 = vmatpush1.msra.mxu0 0.0
    %4435 = vmatprep.subr.mxu0 0.0
    %4436 = vmatpush1.msra.mxu0 0.0
    %4437 = vmatprep.subr.mxu0 0.0
    %4438 = vmatpush1.msra.mxu0 0.0
    %4439 = vmatprep.subr.mxu0 0.0
    %4440 = vmatpush1.msra.mxu0 0.0
    %4441 = vmatprep.subr.mxu0 0.0
    %4442 = vmatpush1.msra.mxu0 0.0
    %4443 = vmatprep.subr.mxu0 0.0
    %4444 = vmatpush1.msra.mxu0 0.0
    %4445 = vmatprep.subr.mxu0 0.0
    %4446 = vmatpush1.msra.mxu0 0.0
    %4447 = vmatprep.subr.mxu0 0.0
    %4448 = vmatpush1.msra.mxu0 0.0
    %4449 = vmatprep.subr.mxu0 0.0
    %4450 = vmatpush1.msra.mxu0 0.0
    %4451 = vmatprep.subr.mxu0 0.0
    %4452 = vmatpush1.msra.mxu0 0.0
    %4453 = vmatprep.subr.mxu0 0.0
    %4454 = vmatpush1.msra.mxu0 0.0
    %4455 = vmatprep.subr.mxu0 0.0
    %4456 = vmatpush1.msra.mxu0 0.0
    %4457 = vmatprep.subr.mxu0 0.0
    %4458 = vmatpush1.msra.mxu0 0.0
    %4459 = vmatprep.subr.mxu0 0.0
    %4460 = vmatpush1.msra.mxu0 0.0
    %4461 = vmatprep.subr.mxu0 0.0
    %4462 = vmatpush1.msra.mxu0 0.0
    %4463 = vmatprep.subr.mxu0 0.0
    %4464 = vmatpush1.msra.mxu0 0.0
    %4465 = vmatprep.subr.mxu0 0.0
    %4466 = vmatpush1.msra.mxu0 0.0
    %4467 = vmatprep.subr.mxu0 0.0
    %4468 = vmatpush1.msra.mxu0 0.0
    %4469 = vmatprep.subr.mxu0 0.0
    %4470 = vmatpush1.msra.mxu0 0.0
    %4471 = vmatprep.subr.mxu0 0.0
    %4472 = vmatpush1.msra.mxu0 0.0
    %4473 = vmatprep.subr.mxu0 0.0
    %4474 = vmatpush1.msra.mxu0 0.0
    %4475 = vmatprep.subr.mxu0 0.0
    %4476 = vmatpush1.msra.mxu0 0.0
    %4477 = vmatprep.subr.mxu0 0.0
    %4478 = vmatpush1.msra.mxu0 0.0
    %4479 = vmatprep.subr.mxu0 0.0
    %4480 = vmatpush1.msra.mxu0 0.0
    %4481 = vmatprep.subr.mxu0 0.0
    %4482 = vmatpush1.msra.mxu0 0.0
    %4483 = vmatprep.mubr.f32.mxu0 0.0
    %4484 = vmatmul.mubr.f32.gmra.mrb[0].mxu0 %v4414
    %v4485 = vpop.f32.mrb[0].mxu0
    %v4486 = vadd.f32 %v4411, %v4485
    %v4487 = vpop.f32.mrb[0].mxu0
    %4488 = vmatprep.mubr.f32.mxu0 0.0
    %4489 = vmatmul.mubr.f32.gmra.mrb[0].mxu0 %v4417
    %v4490 = vpop.f32.mrb[0].mxu0
    %v4491 = vadd.f32 %v4411, %v4490
    %v4492 = vpop.f32.mrb[0].mxu0
    %4493 = vdwg.mxu0
    %v4494 = vmul.f32 %v4486, 1.702
    %v4495 = vmul.f32 %v4491, 1.702
    %v4496 = vxor.u32 %v4494, 2147483648
    %v4497 = vxor.u32 %v4495, 2147483648
    %v4498 = vmul.f32 %v4496, 1.442695
    %v4499 = vpow.pop %v4498
    %v4500 = vmul.f32 %v4497, 1.442695
    %v4501 = vpow.pop %v4500
    %v4502 = vadd.f32 %v4499, 1.0
    %v4503 = vadd.f32 %v4501, 1.0
    %v4504 = vrcp.pop %v4502
    %v4505 = vmul.f32 1.0, %v4504
    %v4506 = vrcp.pop %v4503
    %v4507 = vmul.f32 1.0, %v4506
    %v4508 = vmul.f32 %v4486, %v4505
    %v4509 = vmul.f32 %v4491, %v4507
    %4510 = vmatprep.subr.mxu0 0.0
    %4511 = vmatpush1.msra.mxu0 %v2550
    %4512 = vmatprep.subr.mxu0 0.0
    %4513 = vmatpush1.msra.mxu0 %v2551
    %4514 = vmatprep.subr.mxu0 0.0
    %4515 = vmatpush1.msra.mxu0 %v2552
    %4516 = vmatprep.subr.mxu0 0.0
    %4517 = vmatpush1.msra.mxu0 %v2553
    %4518 = vmatprep.subr.mxu0 0.0
    %4519 = vmatpush1.msra.mxu0 %v2554
    %4520 = vmatprep.subr.mxu0 0.0
    %4521 = vmatpush1.msra.mxu0 %v2555
    %4522 = vmatprep.subr.mxu0 0.0
    %4523 = vmatpush1.msra.mxu0 %v2556
    %4524 = vmatprep.subr.mxu0 0.0
    %4525 = vmatpush1.msra.mxu0 %v2557
    %4526 = vmatprep.subr.mxu0 0.0
    %4527 = vmatpush1.msra.mxu0 %v2558
    %4528 = vmatprep.subr.mxu0 0.0
    %4529 = vmatpush1.msra.mxu0 %v2559
    %4530 = vmatprep.subr.mxu0 0.0
    %4531 = vmatpush1.msra.mxu0 %v2560
    %4532 = vmatprep.subr.mxu0 0.0
    %4533 = vmatpush1.msra.mxu0 %v2561
    %4534 = vmatprep.subr.mxu0 0.0
    %4535 = vmatpush1.msra.mxu0 %v2562
    %4536 = vmatprep.subr.mxu0 0.0
    %4537 = vmatpush1.msra.mxu0 %v2563
    %4538 = vmatprep.subr.mxu0 0.0
    %4539 = vmatpush1.msra.mxu0 %v2564
    %4540 = vmatprep.subr.mxu0 0.0
    %4541 = vmatpush1.msra.mxu0 %v2565
    %4542 = vmatprep.subr.mxu0 0.0
    %4543 = vmatpush1.msra.mxu0 0.0
    %4544 = vmatprep.subr.mxu0 0.0
    %4545 = vmatpush1.msra.mxu0 0.0
    %4546 = vmatprep.subr.mxu0 0.0
    %4547 = vmatpush1.msra.mxu0 0.0
    %4548 = vmatprep.subr.mxu0 0.0
    %4549 = vmatpush1.msra.mxu0 0.0
    %4550 = vmatprep.subr.mxu0 0.0
    %4551 = vmatpush1.msra.mxu0 0.0
    %4552 = vmatprep.subr.mxu0 0.0
    %4553 = vmatpush1.msra.mxu0 0.0
    %4554 = vmatprep.subr.mxu0 0.0
    %4555 = vmatpush1.msra.mxu0 0.0
    %4556 = vmatprep.subr.mxu0 0.0
    %4557 = vmatpush1.msra.mxu0 0.0
    %4558 = vmatprep.subr.mxu0 0.0
    %4559 = vmatpush1.msra.mxu0 0.0
    %4560 = vmatprep.subr.mxu0 0.0
    %4561 = vmatpush1.msra.mxu0 0.0
    %4562 = vmatprep.subr.mxu0 0.0
    %4563 = vmatpush1.msra.mxu0 0.0
    %4564 = vmatprep.subr.mxu0 0.0
    %4565 = vmatpush1.msra.mxu0 0.0
    %4566 = vmatprep.subr.mxu0 0.0
    %4567 = vmatpush1.msra.mxu0 0.0
    %4568 = vmatprep.subr.mxu0 0.0
    %4569 = vmatpush1.msra.mxu0 0.0
    %4570 = vmatprep.subr.mxu0 0.0
    %4571 = vmatpush1.msra.mxu0 0.0
    %4572 = vmatprep.subr.mxu0 0.0
    %4573 = vmatpush1.msra.mxu0 0.0
    %4574 = vmatprep.mubr.f32.mxu0 0.0
    %4575 = vmatmul.mubr.f32.gmra.mrb[0].mxu0 %v4508
    %v4576 = vpop.f32.mrb[0].mxu0
    %v4577 = vadd.f32 0.0, %v4576
    %v4578 = vpop.f32.mrb[0].mxu0
    %4579 = vmatprep.mubr.f32.mxu0 0.0
    %4580 = vmatmul.mubr.f32.gmra.mrb[0].mxu0 %v4509
    %v4581 = vpop.f32.mrb[0].mxu0
    %v4582 = vadd.f32 0.0, %v4581
    %v4583 = vpop.f32.mrb[0].mxu0
    %4584 = vdwg.mxu0
    %v4585 = vadd.f32 %v4359, %v4577
    %v4586 = vadd.f32 %v4360, %v4582
    %v4588 = vlaneseq
    %v4589 = vshrl.u32 %v4588, 7
    %v4590 = vsub.s32 0, %v4589
    %v4591 = vrot.slane %v2567, %v4590
    %v4593 = vadd.f32 %v4585, %v4591
    %v4594 = vadd.f32 %v4586, %v4591
    %4595 = vst.msk [vmem:[#allocation2] sm:$0xff] %vm394, %v4593
    %4596 = vst.msk [vmem:[#allocation2 + $0x8] sm:$0xff] %vm394, %v4594
    %s4597 = sld [smem:[#allocation4]]
    %s4598 = scalar_lea.vmem [#allocation2], %s4597
    %v4599 = vld [vmem:[%s4598] sm:$0x1]
    %s4600 = sld [smem:[#allocation4 + $0x1]]
    %s4601 = sadd.s32 %s4600, 8
    %s4602 = scalar_lea.vmem [#allocation2], %s4601
    %v4603 = vld [vmem:[%s4602] sm:$0x1]
    %v4605 = vrot.slane %v4603, 7
    %vm4607 = vcmask 1040384
    %v4608 = vsel %vm4607, %v4599, %v4605
    %v4609 = vld [vmem:[%s22] sm:$0x1]
    %v4610 = vld [vmem:[%s23] sm:$0x1]
    %vm4611 = vcmask 254976
    %v4612 = vsel %vm4611, %v4608, 0.0
    %4613 = vadd.xlane.f32.xlu0 %v4612
    %v4614 = vpop.xlane.xlu0 %4613
    %v4615 = vmul.f32 %v4614, %v511
    %v4616 = vsub.f32 %v4608, %v4615
    %v4617 = vmul.f32 %v4616, %v4616
    %v4618 = vsel %vm4611, %v4617, 0.0
    %4619 = vadd.xlane.f32.xlu0 %v4618
    %v4620 = vpop.xlane.xlu0 %4619
    %v4621 = vmul.f32 %v4620, %v511
    %v4622 = vadd.f32 %v4621, 1e-05
    %v4623 = vrsqrt.pop %v4622
    %v4624 = vmul.f32 %v4616, %v4623
    %v4626 = vlaneseq
    %v4627 = vshrl.u32 %v4626, 7
    %v4628 = vsub.s32 0, %v4627
    %v4629 = vrot.slane %v4609, %v4628
    %v4631 = vmul.f32 %v4624, %v4629
    %v4633 = vlaneseq
    %v4634 = vshrl.u32 %v4633, 7
    %v4635 = vsub.s32 0, %v4634
    %v4636 = vrot.slane %v4610, %v4635
    %v4638 = vadd.f32 %v4631, %v4636
    %v4639 = vld [vmem:[%s24] sm:$0xff]
    %v4640 = vld [vmem:[%s24 + $0x8] sm:$0xff]
    %v4641 = vld [vmem:[%s24 + $0x10] sm:$0xff]
    %v4642 = vld [vmem:[%s24 + $0x18] sm:$0xff]
    %v4644 = vsel %vm394, %v4638, 0
    %4646 = vmatprep.subr.mxu0 0.0
    %4647 = vmatpush1.msra.mxu0 %v4639
    %4648 = vmatprep.subr.mxu0 0.0
    %4649 = vmatpush1.msra.mxu0 %v4640
    %4650 = vmatprep.subr.mxu0 0.0
    %4651 = vmatpush1.msra.mxu0 %v4641
    %4652 = vmatprep.subr.mxu0 0.0
    %4653 = vmatpush1.msra.mxu0 %v4642
    %4654 = vmatprep.subr.mxu0 0.0
    %4655 = vmatpush1.msra.mxu0 0.0
    %4656 = vmatprep.subr.mxu0 0.0
    %4657 = vmatpush1.msra.mxu0 0.0
    %4658 = vmatprep.subr.mxu0 0.0
    %4659 = vmatpush1.msra.mxu0 0.0
    %4660 = vmatprep.subr.mxu0 0.0
    %4661 = vmatpush1.msra.mxu0 0.0
    %4662 = vmatprep.subr.mxu0 0.0
    %4663 = vmatpush1.msra.mxu0 0.0
    %4664 = vmatprep.subr.mxu0 0.0
    %4665 = vmatpush1.msra.mxu0 0.0
    %4666 = vmatprep.subr.mxu0 0.0
    %4667 = vmatpush1.msra.mxu0 0.0
    %4668 = vmatprep.subr.mxu0 0.0
    %4669 = vmatpush1.msra.mxu0 0.0
    %4670 = vmatprep.subr.mxu0 0.0
    %4671 = vmatpush1.msra.mxu0 0.0
    %4672 = vmatprep.subr.mxu0 0.0
    %4673 = vmatpush1.msra.mxu0 0.0
    %4674 = vmatprep.subr.mxu0 0.0
    %4675 = vmatpush1.msra.mxu0 0.0
    %4676 = vmatprep.subr.mxu0 0.0
    %4677 = vmatpush1.msra.mxu0 0.0
    %4678 = vmatprep.subr.mxu0 0.0
    %4679 = vmatpush1.msra.mxu0 0.0
    %4680 = vmatprep.subr.mxu0 0.0
    %4681 = vmatpush1.msra.mxu0 0.0
    %4682 = vmatprep.subr.mxu0 0.0
    %4683 = vmatpush1.msra.mxu0 0.0
    %4684 = vmatprep.subr.mxu0 0.0
    %4685 = vmatpush1.msra.mxu0 0.0
    %4686 = vmatprep.subr.mxu0 0.0
    %4687 = vmatpush1.msra.mxu0 0.0
    %4688 = vmatprep.subr.mxu0 0.0
    %4689 = vmatpush1.msra.mxu0 0.0
    %4690 = vmatprep.subr.mxu0 0.0
    %4691 = vmatpush1.msra.mxu0 0.0
    %4692 = vmatprep.subr.mxu0 0.0
    %4693 = vmatpush1.msra.mxu0 0.0
    %4694 = vmatprep.subr.mxu0 0.0
    %4695 = vmatpush1.msra.mxu0 0.0
    %4696 = vmatprep.subr.mxu0 0.0
    %4697 = vmatpush1.msra.mxu0 0.0
    %4698 = vmatprep.subr.mxu0 0.0
    %4699 = vmatpush1.msra.mxu0 0.0
    %4700 = vmatprep.subr.mxu0 0.0
    %4701 = vmatpush1.msra.mxu0 0.0
    %4702 = vmatprep.subr.mxu0 0.0
    %4703 = vmatpush1.msra.mxu0 0.0
    %4704 = vmatprep.subr.mxu0 0.0
    %4705 = vmatpush1.msra.mxu0 0.0
    %4706 = vmatprep.subr.mxu0 0.0
    %4707 = vmatpush1.msra.mxu0 0.0
    %4708 = vmatprep.subr.mxu0 0.0
    %4709 = vmatpush1.msra.mxu0 0.0
    %4710 = vmatprep.mubr.f32.mxu0 0.0
    %4711 = vmatmul.mubr.f32.gmra.mrb[0].mxu0 %v4644
    %v4712 = vpop.f32.mrb[0].mxu0
    %v4713 = vadd.f32 0.0, %v4712
    %v4714 = vpop.f32.mrb[0].mxu0
    %4715 = vdwg.mxu0
    %v4716 = vmul.f32 %v465, %v465
    %v4717 = vsel %vm4611, %v4716, 0.0
    %4718 = vadd.xlane.f32.xlu0 %v4717
    %v4719 = vpop.xlane.xlu0 %4718
    %v4720 = vadd.f32 %v4719, 1e-12
    %v4721 = vrsqrt.pop %v4720
    %v4722 = vmul.f32 %v465, %v4721
    %v4723 = vmul.f32 %v4713, %v4713
    %v4724 = vsel %vm4611, %v4723, 0.0
    %4725 = vadd.xlane.f32.xlu0 %v4724
    %v4726 = vpop.xlane.xlu0 %4725
    %v4727 = vadd.f32 %v4726, 1e-12
    %v4728 = vrsqrt.pop %v4727
    %v4729 = vmul.f32 %v4713, %v4728
    %vm4730 = vcmask 1041408
    %v4731 = vsel %vm4730, %v4722, 0.0
    %v4732 = vsel %vm4730, %v4729, 0.0
    %s4733 = sld [smem:[#allocation3]]
    %v4734 = vstv %s4733
    %v4735 = vmul.f32 %v4734, 1.442695
    %v4736 = vpow.pop %v4735
    %s4737 = vtos %v4736
    %v4739 = vsel %vm394, %v4731, 0
    %v4742 = vsel %vm394, %v4732, 0
    %v4745 = vsel %vm394, 0.0, 0
    %4747 = vmatprep.subr.mxu0 0.0
    %4748 = vmatpush1.xpose.msra.mxu0 %v4742
    %4749 = vmatprep.subr.mxu0 0.0
    %4750 = vmatpush1.xpose.msra.mxu0 %v4745
    %4751 = vmatprep.subr.mxu0 0.0
    %4752 = vmatpush1.xpose.msra.mxu0 %v4745
    %4753 = vmatprep.subr.mxu0 0.0
    %4754 = vmatpush1.xpose.msra.mxu0 %v4745
    %4755 = vmatprep.subr.mxu0 0.0
    %4756 = vmatpush1.xpose.msra.mxu0 %v4745
    %4757 = vmatprep.subr.mxu0 0.0
    %4758 = vmatpush1.xpose.msra.mxu0 %v4745
    %4759 = vmatprep.subr.mxu0 0.0
    %4760 = vmatpush1.xpose.msra.mxu0 %v4745
    %4761 = vmatprep.subr.mxu0 0.0
    %4762 = vmatpush1.xpose.msra.mxu0 %v4745
    %4763 = vmatprep.subr.mxu0 0.0
    %4764 = vmatpush1.xpose.msra.mxu0 %v4745
    %4765 = vmatprep.subr.mxu0 0.0
    %4766 = vmatpush1.xpose.msra.mxu0 %v4745
    %4767 = vmatprep.subr.mxu0 0.0
    %4768 = vmatpush1.xpose.msra.mxu0 %v4745
    %4769 = vmatprep.subr.mxu0 0.0
    %4770 = vmatpush1.xpose.msra.mxu0 %v4745
    %4771 = vmatprep.subr.mxu0 0.0
    %4772 = vmatpush1.xpose.msra.mxu0 %v4745
    %4773 = vmatprep.subr.mxu0 0.0
    %4774 = vmatpush1.xpose.msra.mxu0 %v4745
    %4775 = vmatprep.subr.mxu0 0.0
    %4776 = vmatpush1.xpose.msra.mxu0 %v4745
    %4777 = vmatprep.subr.mxu0 0.0
    %4778 = vmatpush1.xpose.msra.mxu0 %v4745
    %4779 = vmatprep.subr.mxu0 0.0
    %4780 = vmatpush1.xpose.msra.mxu0 0.0
    %4781 = vmatprep.subr.mxu0 0.0
    %4782 = vmatpush1.xpose.msra.mxu0 0.0
    %4783 = vmatprep.subr.mxu0 0.0
    %4784 = vmatpush1.xpose.msra.mxu0 0.0
    %4785 = vmatprep.subr.mxu0 0.0
    %4786 = vmatpush1.xpose.msra.mxu0 0.0
    %4787 = vmatprep.subr.mxu0 0.0
    %4788 = vmatpush1.xpose.msra.mxu0 0.0
    %4789 = vmatprep.subr.mxu0 0.0
    %4790 = vmatpush1.xpose.msra.mxu0 0.0
    %4791 = vmatprep.subr.mxu0 0.0
    %4792 = vmatpush1.xpose.msra.mxu0 0.0
    %4793 = vmatprep.subr.mxu0 0.0
    %4794 = vmatpush1.xpose.msra.mxu0 0.0
    %4795 = vmatprep.subr.mxu0 0.0
    %4796 = vmatpush1.xpose.msra.mxu0 0.0
    %4797 = vmatprep.subr.mxu0 0.0
    %4798 = vmatpush1.xpose.msra.mxu0 0.0
    %4799 = vmatprep.subr.mxu0 0.0
    %4800 = vmatpush1.xpose.msra.mxu0 0.0
    %4801 = vmatprep.subr.mxu0 0.0
    %4802 = vmatpush1.xpose.msra.mxu0 0.0
    %4803 = vmatprep.subr.mxu0 0.0
    %4804 = vmatpush1.xpose.msra.mxu0 0.0
    %4805 = vmatprep.subr.mxu0 0.0
    %4806 = vmatpush1.xpose.msra.mxu0 0.0
    %4807 = vmatprep.subr.mxu0 0.0
    %4808 = vmatpush1.xpose.msra.mxu0 0.0
    %4809 = vmatprep.subr.mxu0 0.0
    %4810 = vmatpush1.xpose.msra.mxu0 0.0
    %4811 = vmatprep.mubr.f32.mxu0 0.0
    %4812 = vmatmul.mubr.f32.gmra.mrb[0].mxu0 %v4739
    %v4813 = vpop.f32.mrb[0].mxu0
    %v4814 = vadd.f32 0.0, %v4813
    %v4815 = vpop.f32.mrb[0].mxu0
    %4816 = vdwg.mxu0
    %v4817 = vstv %s4737
    %v4818 = vmul.f32 %v4817, %v4814
    %4819 = vst [vmem:[%s25] sm:$0xff] %v4818
    %4820 = vmatprep.subr.mxu0 0.0
    %4821 = vmatpush1.xpose.msra.mxu0 %v4739
    %4822 = vmatprep.subr.mxu0 0.0
    %4823 = vmatpush1.xpose.msra.mxu0 %v4745
    %4824 = vmatprep.subr.mxu0 0.0
    %4825 = vmatpush1.xpose.msra.mxu0 %v4745
    %4826 = vmatprep.subr.mxu0 0.0
    %4827 = vmatpush1.xpose.msra.mxu0 %v4745
    %4828 = vmatprep.subr.mxu0 0.0
    %4829 = vmatpush1.xpose.msra.mxu0 %v4745
    %4830 = vmatprep.subr.mxu0 0.0
    %4831 = vmatpush1.xpose.msra.mxu0 %v4745
    %4832 = vmatprep.subr.mxu0 0.0
    %4833 = vmatpush1.xpose.msra.mxu0 %v4745
    %4834 = vmatprep.subr.mxu0 0.0
    %4835 = vmatpush1.xpose.msra.mxu0 %v4745
    %4836 = vmatprep.subr.mxu0 0.0
    %4837 = vmatpush1.xpose.msra.mxu0 %v4745
    %4838 = vmatprep.subr.mxu0 0.0
    %4839 = vmatpush1.xpose.msra.mxu0 %v4745
    %4840 = vmatprep.subr.mxu0 0.0
    %4841 = vmatpush1.xpose.msra.mxu0 %v4745
    %4842 = vmatprep.subr.mxu0 0.0
    %4843 = vmatpush1.xpose.msra.mxu0 %v4745
    %4844 = vmatprep.subr.mxu0 0.0
    %4845 = vmatpush1.xpose.msra.mxu0 %v4745
    %4846 = vmatprep.subr.mxu0 0.0
    %4847 = vmatpush1.xpose.msra.mxu0 %v4745
    %4848 = vmatprep.subr.mxu0 0.0
    %4849 = vmatpush1.xpose.msra.mxu0 %v4745
    %4850 = vmatprep.subr.mxu0 0.0
    %4851 = vmatpush1.xpose.msra.mxu0 %v4745
    %4852 = vmatprep.subr.mxu0 0.0
    %4853 = vmatpush1.xpose.msra.mxu0 0.0
    %4854 = vmatprep.subr.mxu0 0.0
    %4855 = vmatpush1.xpose.msra.mxu0 0.0
    %4856 = vmatprep.subr.mxu0 0.0
    %4857 = vmatpush1.xpose.msra.mxu0 0.0
    %4858 = vmatprep.subr.mxu0 0.0
    %4859 = vmatpush1.xpose.msra.mxu0 0.0
    %4860 = vmatprep.subr.mxu0 0.0
    %4861 = vmatpush1.xpose.msra.mxu0 0.0
    %4862 = vmatprep.subr.mxu0 0.0
    %4863 = vmatpush1.xpose.msra.mxu0 0.0
    %4864 = vmatprep.subr.mxu0 0.0
    %4865 = vmatpush1.xpose.msra.mxu0 0.0
    %4866 = vmatprep.subr.mxu0 0.0
    %4867 = vmatpush1.xpose.msra.mxu0 0.0
    %4868 = vmatprep.subr.mxu0 0.0
    %4869 = vmatpush1.xpose.msra.mxu0 0.0
    %4870 = vmatprep.subr.mxu0 0.0
    %4871 = vmatpush1.xpose.msra.mxu0 0.0
    %4872 = vmatprep.subr.mxu0 0.0
    %4873 = vmatpush1.xpose.msra.mxu0 0.0
    %4874 = vmatprep.subr.mxu0 0.0
    %4875 = vmatpush1.xpose.msra.mxu0 0.0
    %4876 = vmatprep.subr.mxu0 0.0
    %4877 = vmatpush1.xpose.msra.mxu0 0.0
    %4878 = vmatprep.subr.mxu0 0.0
    %4879 = vmatpush1.xpose.msra.mxu0 0.0
    %4880 = vmatprep.subr.mxu0 0.0
    %4881 = vmatpush1.xpose.msra.mxu0 0.0
    %4882 = vmatprep.subr.mxu0 0.0
    %4883 = vmatpush1.xpose.msra.mxu0 0.0
    %4884 = vmatprep.mubr.f32.mxu0 0.0
    %4885 = vmatmul.mubr.f32.gmra.mrb[0].mxu0 %v4742
    %v4886 = vpop.f32.mrb[0].mxu0
    %v4887 = vadd.f32 0.0, %v4886
    %v4888 = vpop.f32.mrb[0].mxu0
    %4889 = vdwg.mxu0
    %v4890 = vmul.f32 %v4817, %v4887
    %4891 = vst [vmem:[%s26] sm:$0xff] %v4890
    // Predicated region
    $region106: #{ulip_forward.1} parent=1 // pred_check
      _
    $region107: #{ulip_forward.1} parent=1 // pred_check_branch
      %4893 = sbr.rel (0) target = $region109
    $region108: #{ulip_forward.1} parent=1 // pred_region
      _
    $region109: #{ulip_forward.1} parent=1 // pred_fallthru
      _
    // Predicated region
    $region110: #{ulip_forward.1} parent=1 // pred_check
      _
    $region111: #{ulip_forward.1} parent=1 // pred_check_branch
      %4895 = sbr.rel (0) target = $region113
    $region112: #{ulip_forward.1} parent=1 // pred_region
      _
    $region113: #{ulip_forward.1} parent=1 // pred_fallthru
      _
    // Predicated region
    $region114: #{ulip_forward.1} parent=1 // pred_check
      _
    $region115: #{ulip_forward.1} parent=1 // pred_check_branch
      %4897 = sbr.rel (0) target = $region117
    $region116: #{ulip_forward.1} parent=1 // pred_region
      _
    $region117: #{ulip_forward.1} parent=1 // pred_fallthru
      _
    // Predicated region
    $region118: #{ulip_forward.1} parent=1 // pred_check
      _
    $region119: #{ulip_forward.1} parent=1 // pred_check_branch
      %4899 = sbr.rel (0) target = $region121
    $region120: #{ulip_forward.1} parent=1 // pred_region
      _
    $region121: #{ulip_forward.1} parent=1 // pred_fallthru
      _
    %4900 = vsyncpa [#allocation5], 1

</llo_original>
